<compile_context>
chip_gen: v5e
topology: v5e:2x2
jax: 0.10.0
libtpu: 0.0.40
codegen_flags: <defaults>
</compile_context>

<pallas_src>
import functools

import jax
import jax.numpy as jnp
from jax.experimental import pallas as pl
from jax.experimental.pallas import tpu as pltpu


# ----------------------------- Pallas kernels -------------------------------

def _mlp_kernel_resident(x_ref, wgu_ref, wd_ref, o_ref, *, inter):
    """Whole-I SwiGLU for one row tile; weights are VMEM-resident.

    x_ref  : (tm, C)    activation tile (cast to bf16 in-kernel)
    wgu_ref: (C, 2I)    [W_gate | W_up], bf16
    wd_ref : (I, C)     W_down, bf16
    o_ref  : (tm, C)    output tile
    """
    x = x_ref[...].astype(wgu_ref.dtype)
    gu = jnp.dot(x, wgu_ref[...], preferred_element_type=jnp.float32)   # (tm, 2I)
    g = gu[:, :inter]
    u = gu[:, inter:]
    h = (g * jax.nn.sigmoid(g)) * u                                      # SiLU(g)*u
    o_ref[...] = jnp.dot(h.astype(wd_ref.dtype), wd_ref[...],
                         preferred_element_type=jnp.float32).astype(o_ref.dtype)


def _mlp_kernel_tiled(x_ref, wgu_ref, wd_ref, o_ref, acc_ref, *, ti):
    """One (row-tile, intermediate-tile) step; reduction over I in acc_ref.

    wgu_ref: (C, 2*ti)  per-tile fused slice [g_i | u_i]
    wd_ref : (ti, C)    down_proj slice for intermediate tile i
    acc_ref: (tm, C)    f32 VMEM accumulator (persists across the I axis)
    """
    i = pl.program_id(1)
    x = x_ref[...].astype(wgu_ref.dtype)
    gu = jnp.dot(x, wgu_ref[...], preferred_element_type=jnp.float32)   # (tm, 2*ti)
    g = gu[:, :ti]
    u = gu[:, ti:]
    h = (g * jax.nn.sigmoid(g)) * u
    contrib = jnp.dot(h.astype(wd_ref.dtype), wd_ref[...],
                      preferred_element_type=jnp.float32)

    @pl.when(i == 0)
    def _():
        acc_ref[...] = contrib          # direct write, no zero-init store

    @pl.when(i > 0)
    def _():
        acc_ref[...] += contrib

    @pl.when(i == pl.num_programs(1) - 1)
    def _():
        o_ref[...] = acc_ref[...].astype(o_ref.dtype)


# ------------------------ One-time weight preparation ------------------------

def _pick_tile(total, candidates):
    for c in candidates:
        if total % c == 0 and total >= c:
            return c
    return total


def prepare_mlp_weights(w_gate, w_up, w_down, *,
                        compute_dtype=jnp.bfloat16,
                        resident_weight_budget_bytes=12 * 1024 * 1024,
                        ti=None):
    """Transpose / cast / fuse the torch-layout weights ONCE (load time).

    w_gate, w_up : [I, C]  torch nn.Linear weights (out_features, in_features)
    w_down       : [C, I]
    """
    w_gate = jnp.asarray(w_gate)
    w_up = jnp.asarray(w_up)
    w_down = jnp.asarray(w_down)
    I, C = w_gate.shape
    assert w_up.shape == (I, C) and w_down.shape == (C, I)

    wg_t = w_gate.T.astype(compute_dtype)   # (C, I)
    wu_t = w_up.T.astype(compute_dtype)     # (C, I)
    wd_t = w_down.T.astype(compute_dtype)   # (I, C)

    itemsize = jnp.dtype(compute_dtype).itemsize
    weight_bytes = (2 * C * I + I * C) * itemsize
    resident = (ti is None
                and weight_bytes <= resident_weight_budget_bytes
                and I % 128 == 0)

    if resident:
        ti_eff = I
        # [W_gate | W_up] -> single (C, 2I) matmul operand, fetched once.
        w_gu = jnp.concatenate([wg_t, wu_t], axis=1)
    else:
        ti_eff = _pick_tile(I, (1024, 512, 256, 128)) if ti is None else ti
        assert I % ti_eff == 0
        assert ti_eff == I or ti_eff % 128 == 0
        n_i = I // ti_eff
        # Per-tile interleave: columns are [g_0 | u_0 | g_1 | u_1 | ...].
        w_gu = jnp.concatenate(
            [wg_t.reshape(C, n_i, ti_eff), wu_t.reshape(C, n_i, ti_eff)],
            axis=2).reshape(C, 2 * I)

    return {"w_gu": w_gu, "w_d": wd_t, "ti": ti_eff, "resident": resident,
            "C": C, "I": I, "compute_dtype": compute_dtype}


# ------------------------------- Forward pass --------------------------------

def mlp_forward(x, weights, *, tm=256):
    """SmolLM2 MLP: down_proj(SiLU(gate_proj(x)) * up_proj(x)).

    `weights` must come from `prepare_mlp_weights` (prep hoisted out of the
    hot path).  x: [..., C]; output has the same shape / dtype as x.
    """
    w_gu, w_d = weights["w_gu"], weights["w_d"]
    C, I, ti = weights["C"], weights["I"], weights["ti"]

    orig_shape = x.shape
    assert orig_shape[-1] == C
    out_dtype = x.dtype

    x2 = x.reshape(-1, C)                 # keep input dtype; cast to bf16 in-kernel
    N = x2.shape[0]
    tm_eff = tm if N >= tm else max(8, ((N + 7) // 8) * 8)
    n_m = pl.cdiv(N, tm_eff)
    Np = n_m * tm_eff
    if Np != N:
        x2 = jnp.pad(x2, ((0, Np - N), (0, 0)))

    weight_traffic = (w_gu.size * w_gu.dtype.itemsize
                      + w_d.size * w_d.dtype.itemsize)
    if not weights["resident"]:
        weight_traffic *= n_m             # weights re-streamed per row tile
    cost = pl.CostEstimate(
        flops=6 * Np * C * I,
        transcendentals=Np * I,
        bytes_accessed=int(x2.size * x2.dtype.itemsize
                           + weight_traffic
                           + Np * C * jnp.dtype(out_dtype).itemsize))

    cparams = pltpu.CompilerParams(
        dimension_semantics=(("parallel",) if weights["resident"]
                             else ("parallel", "arbitrary")),
        vmem_limit_bytes=48 * 1024 * 1024)   # headroom on v5e/v6e, safe on v7x (64 MiB)

    if weights["resident"]:
        out = pl.pallas_call(
            functools.partial(_mlp_kernel_resident, inter=I),
            out_shape=jax.ShapeDtypeStruct((Np, C), out_dtype),
            grid_spec=pltpu.PrefetchScalarGridSpec(
                num_scalar_prefetch=0,
                grid=(n_m,),
                in_specs=[
                    pl.BlockSpec((tm_eff, C), lambda m: (m, 0)),
                    pl.BlockSpec((C, 2 * I), lambda m: (0, 0)),   # resident: DMA'd once
                    pl.BlockSpec((I, C), lambda m: (0, 0)),       # resident: DMA'd once
                ],
                out_specs=pl.BlockSpec((tm_eff, C), lambda m: (m, 0)),
            ),
            compiler_params=cparams,
            cost_estimate=cost,
        )(x2, w_gu, w_d)
    else:
        n_i = I // ti
        out = pl.pallas_call(
            functools.partial(_mlp_kernel_tiled, ti=ti),
            out_shape=jax.ShapeDtypeStruct((Np, C), out_dtype),
            grid_spec=pltpu.PrefetchScalarGridSpec(
                num_scalar_prefetch=0,
                grid=(n_m, n_i),                       # reduction axis (I) last
                in_specs=[
                    pl.BlockSpec((tm_eff, C), lambda m, i: (m, 0)),
                    pl.BlockSpec((C, 2 * ti), lambda m, i: (0, i)),  # [g_i | u_i]
                    pl.BlockSpec((ti, C), lambda m, i: (i, 0)),
                ],
                out_specs=pl.BlockSpec((tm_eff, C), lambda m, i: (m, 0)),
                scratch_shapes=[pltpu.VMEM((tm_eff, C), jnp.float32)],
            ),
            compiler_params=cparams,
            cost_estimate=cost,
        )(x2, w_gu, w_d)

    if Np != N:
        out = out[:N]
    return out.reshape(orig_shape)


# --------------------------------- Main --------------------------------------

if __name__ == "__main__":
    # Small, (8,128)-aligned stand-ins for hidden_size / intermediate_size.
    C, I = 256, 512
    B, T = 2, 128
    std = 0.041666666666666664

    key = jax.random.PRNGKey(0)
    kx, kg, ku, kd = jax.random.split(key, 4)
    x = jax.random.normal(kx, (B, T, C), jnp.float32)
    w_gate = jax.random.normal(kg, (I, C), jnp.float32) * std   # torch [out, in]
    w_up   = jax.random.normal(ku, (I, C), jnp.float32) * std
    w_down = jax.random.normal(kd, (C, I), jnp.float32) * std

    # Pure-JAX f32 reference (same math as the torch module).
    g = x @ w_gate.T
    u = x @ w_up.T
    ref = (g * jax.nn.sigmoid(g) * u) @ w_down.T

    # Path A: weights-resident fast path (the SmolLM2-135M case).
    weights_res = prepare_mlp_weights(w_gate, w_up, w_down)
    assert weights_res["resident"]
    out_res = jax.block_until_ready(mlp_forward(x, weights_res))

    # Path B: tiled-I reduction fallback (large-model case), forced via ti=128.
    weights_tiled = prepare_mlp_weights(w_gate, w_up, w_down, ti=128)
    assert not weights_tiled["resident"]
    out_tiled = jax.block_until_ready(mlp_forward(x, weights_tiled))

    for name, out in (("resident", out_res), ("tiled", out_tiled)):
        assert out.shape == ref.shape == (B, T, C)
        assert bool(jnp.all(jnp.isfinite(out))), f"{name}: non-finite output"
        max_err = float(jnp.max(jnp.abs(out - ref)))
        assert max_err < 5e-2, f"{name}: max abs err too large: {max_err}"

    print("KERNEL_OK")
</pallas_src>

<mosaic_0001>
module attributes {stable_mosaic.version = 11 : i64} {
  func.func @_mlp_kernel_resident(%arg0: i32, %arg1: memref<256x256xf32, #tpu.memory_space<vmem>>, %arg2: memref<256x1024xbf16, #tpu.memory_space<vmem>>, %arg3: memref<512x256xbf16, #tpu.memory_space<vmem>>, %arg4: memref<256x256xf32, #tpu.memory_space<vmem>>) attributes {dimension_semantics = [#tpu.dimension_semantics<parallel>], iteration_bounds = array<i64: 1>, scalar_prefetch = 0 : i64, scratch_operands = 0 : i64, tpu.core_type = #tpu.core_type<tc>, window_params = [{transform_indices = @transform_0, window_bounds = array<i64: 256, 256>}, {pipeline_mode = #tpu.pipeline_mode<synchronous>, transform_indices = @transform_1, window_bounds = array<i64: 256, 1024>}, {pipeline_mode = #tpu.pipeline_mode<synchronous>, transform_indices = @transform_2, window_bounds = array<i64: 512, 256>}, {transform_indices = @transform_3, window_bounds = array<i64: 256, 256>}]} {
    %c0 = arith.constant 0 : index
    %c0_0 = arith.constant 0 : index
    %0 = vector.load %arg1[%c0, %c0_0] : memref<256x256xf32, #tpu.memory_space<vmem>>, vector<256x256xf32>
    %1 = arith.truncf %0 : vector<256x256xf32> to vector<256x256xbf16>
    %c0_1 = arith.constant 0 : index
    %c0_2 = arith.constant 0 : index
    %2 = vector.load %arg2[%c0_1, %c0_2] : memref<256x1024xbf16, #tpu.memory_space<vmem>>, vector<256x1024xbf16>
    %cst = arith.constant dense<0.000000e+00> : vector<256x1024xf32>
    %3 = tpu.matmul %1, %2, %cst {dimension_numbers = #tpu.dot_dimension_numbers<[1], [0], [0], [1], [0, 0, 1, 1], [], []>} : vector<256x256xbf16>, vector<256x1024xbf16>, vector<256x1024xf32> -> vector<256x1024xf32>
    %4 = vector.extract_strided_slice %3 {offsets = [0, 0], sizes = [256, 512], strides = [1, 1]} : vector<256x1024xf32> to vector<256x512xf32>
    %5 = vector.extract_strided_slice %3 {offsets = [0, 512], sizes = [256, 512], strides = [1, 1]} : vector<256x1024xf32> to vector<256x512xf32>
    %6 = arith.negf %4 : vector<256x512xf32>
    %7 = math.exp %6 : vector<256x512xf32>
    %cst_3 = arith.constant 1.000000e+00 : f32
    %8 = vector.broadcast %cst_3 : f32 to vector<256x512xf32>
    %9 = arith.addf %8, %7 : vector<256x512xf32>
    %10 = arith.divf %8, %9 : vector<256x512xf32>
    %11 = arith.mulf %4, %10 : vector<256x512xf32>
    %12 = arith.mulf %11, %5 : vector<256x512xf32>
    %13 = arith.truncf %12 : vector<256x512xf32> to vector<256x512xbf16>
    %c0_4 = arith.constant 0 : index
    %c0_5 = arith.constant 0 : index
    %14 = vector.load %arg3[%c0_4, %c0_5] : memref<512x256xbf16, #tpu.memory_space<vmem>>, vector<512x256xbf16>
    %cst_6 = arith.constant dense<0.000000e+00> : vector<256x256xf32>
    %15 = tpu.matmul %13, %14, %cst_6 {dimension_numbers = #tpu.dot_dimension_numbers<[1], [0], [0], [1], [0, 0, 1, 1], [], []>} : vector<256x512xbf16>, vector<512x256xbf16>, vector<256x256xf32> -> vector<256x256xf32>
    %c0_7 = arith.constant 0 : index
    %c0_8 = arith.constant 0 : index
    %16 = vector.load %arg4[%c0_7, %c0_8] : memref<256x256xf32, #tpu.memory_space<vmem>>, vector<256x256xf32>
    tpu.vector_store %arg4[%c0_7, %c0_8], %15 {strides = array<i32>} : memref<256x256xf32, #tpu.memory_space<vmem>>, vector<256x256xf32>,
    return
  }
  func.func @transform_0(%arg0: i32) -> (i32, i32) {
    %c0_i32 = arith.constant 0 : i32
    %c0_i32_0 = arith.constant 0 : i32
    return %arg0, %c0_i32 : i32, i32
  }
  func.func @transform_1(%arg0: i32) -> (i32, i32) {
    %c0_i32 = arith.constant 0 : i32
    %c0_i32_0 = arith.constant 0 : i32
    %c0_i32_1 = arith.constant 0 : i32
    return %c0_i32, %c0_i32_0 : i32, i32
  }
  func.func @transform_2(%arg0: i32) -> (i32, i32) {
    %c0_i32 = arith.constant 0 : i32
    %c0_i32_0 = arith.constant 0 : i32
    %c0_i32_1 = arith.constant 0 : i32
    return %c0_i32, %c0_i32_0 : i32, i32
  }
  func.func @transform_3(%arg0: i32) -> (i32, i32) {
    %c0_i32 = arith.constant 0 : i32
    %c0_i32_0 = arith.constant 0 : i32
    return %arg0, %c0_i32 : i32, i32
  }
}

</mosaic_0001>

<llo_original>
// kernel: tpu_custom_call.1
$region0: #{tpu_custom_call.1}
  #allocation0 [shape = 'u32[]', space=smem, size = 0x4, offset = 0x4, fixed_abs, tag = 'smem constant byte address 0x4 - core index']
  #allocation1 [shape = 'u32[72,128]{1,0:T(1,128)}', space=vmem, size = 0x9000, scoped, tag = 'internal scratch']
  %s0 = inlined_call_operand.hbm [shape: f32[256,256], index: 0, kind: input, shape index: {}]
  %s1 = inlined_call_operand.hbm [shape: bf16[256,1024], index: 1, kind: input, shape index: {}]
  %s2 = inlined_call_operand.hbm [shape: bf16[512,256], index: 2, kind: input, shape index: {}]
  %s3 = inlined_call_operand.hbm [shape: f32[256,256], index: 3, kind: output, shape index: {}]
  %s4 = sld [smem:[#allocation0]]
  $region34: #{tpu_custom_call.1} parent=0
    _
  %s6 = ssub.s32 1, %s4
  %s7 = scalar_select 0, %s6, %s4
  $region1: #{tpu_custom_call.1} parent=0
    #allocation2 [shape = 'u8[262144]{0}', space=vmem, size = 0x40000, scoped, tag = 'input window, operand 0, single buffered']
    #allocation3 [shape = 's32[1]{0}', space=sflag, size = 0x4, scoped, tag = 'scoped memory for tpu_custom_call.1']
    #allocation4 [shape = 's32[1]{0}', space=sflag, size = 0x4, scoped, tag = 'scoped memory for tpu_custom_call.1']
    #allocation5 [shape = 'u8[524288]{0}', space=vmem, size = 0x80000, scoped, tag = 'input window, operand 1, single buffered']
    #allocation6 [shape = 's32[1]{0}', space=sflag, size = 0x4, scoped, tag = 'scoped memory for tpu_custom_call.1']
    #allocation7 [shape = 'u8[262144]{0}', space=vmem, size = 0x40000, scoped, tag = 'input window, operand 2, single buffered']
    #allocation8 [shape = 'u8[262144]{0}', space=vmem, size = 0x40000, scoped, tag = 'output window, operand 0, single buffered']
    %8 = vsyncpa [#allocation3], 0
    %9 = vsyncpa [#allocation6], 0
    %10 = vsyncpa [#allocation4], 0
    // Predicated region
    $region2: #{tpu_custom_call.1} parent=1 // pred_check
      _
    $region3: #{tpu_custom_call.1} parent=1 // pred_check_branch
      %12 = sbr.rel (0) target = $region5
    $region4: #{tpu_custom_call.1} parent=1 // pred_region
      %14 = vsyncadd [#allocation3], 0
      %s15 = sshll.u32 %s0, 4
      %s16 = int_to_ptr.hbm [resolvable:$true] %s15
      %s17 = sshll.u32 [#allocation2], 4
      %s18 = int_to_ptr.vmem [resolvable:$true] %s17
      %23 = dma.hbm_to_vmem [thread:$0]  %s16, 8192, %s18, [#allocation3], 256, 256, 16
    $region5: #{tpu_custom_call.1} parent=1 // pred_fallthru
      _
    // Predicated region
    $region6: #{tpu_custom_call.1} parent=1 // pred_check
      _
    $region7: #{tpu_custom_call.1} parent=1 // pred_check_branch
      %25 = sbr.rel (0) target = $region9
    $region8: #{tpu_custom_call.1} parent=1 // pred_region
      %27 = vsyncadd [#allocation6], 0
      %s28 = sshll.u32 %s1, 4
      %s29 = int_to_ptr.hbm [resolvable:$true] %s28
      %s30 = sshll.u32 [#allocation5], 4
      %s31 = int_to_ptr.vmem [resolvable:$true] %s30
      %36 = dma.hbm_to_vmem [thread:$0]  %s29, 16384, %s31, [#allocation6], 512, 512, 32
    $region9: #{tpu_custom_call.1} parent=1 // pred_fallthru
      _
    // Predicated region
    $region10: #{tpu_custom_call.1} parent=1 // pred_check
      _
    $region11: #{tpu_custom_call.1} parent=1 // pred_check_branch
      %38 = sbr.rel (0) target = $region13
    $region12: #{tpu_custom_call.1} parent=1 // pred_region
      %40 = vsyncadd [#allocation6], 0
      %s41 = sshll.u32 %s2, 4
      %s42 = int_to_ptr.hbm [resolvable:$true] %s41
      %s43 = sshll.u32 [#allocation7], 4
      %s44 = int_to_ptr.vmem [resolvable:$true] %s43
      %49 = dma.hbm_to_vmem [thread:$0]  %s42, 8192, %s44, [#allocation6], 128, 128, 8
    $region13: #{tpu_custom_call.1} parent=1 // pred_fallthru
      _
    // Predicated region
    $region14: #{tpu_custom_call.1} parent=1 // pred_check
      _
    $region15: #{tpu_custom_call.1} parent=1 // pred_check_branch
      %51 = sbr.rel (0) target = $region17
    $region16: #{tpu_custom_call.1} parent=1 // pred_region
      %53 = dma.done [#allocation3], 8192
    $region17: #{tpu_custom_call.1} parent=1 // pred_fallthru
      _
    // Predicated region
    $region18: #{tpu_custom_call.1} parent=1 // pred_check
      _
    $region19: #{tpu_custom_call.1} parent=1 // pred_check_branch
      %55 = sbr.rel (0) target = $region21
    $region20: #{tpu_custom_call.1} parent=1 // pred_region
      %57 = dma.done [#allocation6], 16384
    $region21: #{tpu_custom_call.1} parent=1 // pred_fallthru
      _
    // Predicated region
    $region22: #{tpu_custom_call.1} parent=1 // pred_check
      _
    $region23: #{tpu_custom_call.1} parent=1 // pred_check_branch
      %59 = sbr.rel (0) target = $region25
    $region24: #{tpu_custom_call.1} parent=1 // pred_region
      %61 = dma.done [#allocation6], 8192
    $region25: #{tpu_custom_call.1} parent=1 // pred_fallthru
      _
    %v62 = vld [vmem:[#allocation2] sm:$0xff]
    %v63 = vld [vmem:[#allocation2 + $0x8] sm:$0xff]
    %v64 = vld [vmem:[#allocation2 + $0x10] sm:$0xff]
    %v65 = vld [vmem:[#allocation2 + $0x18] sm:$0xff]
    %v66 = vld [vmem:[#allocation2 + $0x20] sm:$0xff]
    %v67 = vld [vmem:[#allocation2 + $0x28] sm:$0xff]
    %v68 = vld [vmem:[#allocation2 + $0x30] sm:$0xff]
    %v69 = vld [vmem:[#allocation2 + $0x38] sm:$0xff]
    %v70 = vld [vmem:[#allocation2 + $0x40] sm:$0xff]
    %v71 = vld [vmem:[#allocation2 + $0x48] sm:$0xff]
    %v72 = vld [vmem:[#allocation2 + $0x50] sm:$0xff]
    %v73 = vld [vmem:[#allocation2 + $0x58] sm:$0xff]
    %v74 = vld [vmem:[#allocation2 + $0x60] sm:$0xff]
    %v75 = vld [vmem:[#allocation2 + $0x68] sm:$0xff]
    %v76 = vld [vmem:[#allocation2 + $0x70] sm:$0xff]
    %v77 = vld [vmem:[#allocation2 + $0x78] sm:$0xff]
    %v78 = vld [vmem:[#allocation2 + $0x80] sm:$0xff]
    %v79 = vld [vmem:[#allocation2 + $0x88] sm:$0xff]
    %v80 = vld [vmem:[#allocation2 + $0x90] sm:$0xff]
    %v81 = vld [vmem:[#allocation2 + $0x98] sm:$0xff]
    %v82 = vld [vmem:[#allocation2 + $0xa0] sm:$0xff]
    %v83 = vld [vmem:[#allocation2 + $0xa8] sm:$0xff]
    %v84 = vld [vmem:[#allocation2 + $0xb0] sm:$0xff]
    %v85 = vld [vmem:[#allocation2 + $0xb8] sm:$0xff]
    %v86 = vld [vmem:[#allocation2 + $0xc0] sm:$0xff]
    %v87 = vld [vmem:[#allocation2 + $0xc8] sm:$0xff]
    %v88 = vld [vmem:[#allocation2 + $0xd0] sm:$0xff]
    %v89 = vld [vmem:[#allocation2 + $0xd8] sm:$0xff]
    %v90 = vld [vmem:[#allocation2 + $0xe0] sm:$0xff]
    %v91 = vld [vmem:[#allocation2 + $0xe8] sm:$0xff]
    %v92 = vld [vmem:[#allocation2 + $0xf0] sm:$0xff]
    %v93 = vld [vmem:[#allocation2 + $0xf8] sm:$0xff]
    %v94 = vld [vmem:[#allocation2 + $0x100] sm:$0xff]
    %v95 = vld [vmem:[#allocation2 + $0x108] sm:$0xff]
    %v96 = vld [vmem:[#allocation2 + $0x110] sm:$0xff]
    %v97 = vld [vmem:[#allocation2 + $0x118] sm:$0xff]
    %v98 = vld [vmem:[#allocation2 + $0x120] sm:$0xff]
    %v99 = vld [vmem:[#allocation2 + $0x128] sm:$0xff]
    %v100 = vld [vmem:[#allocation2 + $0x130] sm:$0xff]
    %v101 = vld [vmem:[#allocation2 + $0x138] sm:$0xff]
    %v102 = vld [vmem:[#allocation2 + $0x140] sm:$0xff]
    %v103 = vld [vmem:[#allocation2 + $0x148] sm:$0xff]
    %v104 = vld [vmem:[#allocation2 + $0x150] sm:$0xff]
    %v105 = vld [vmem:[#allocation2 + $0x158] sm:$0xff]
    %v106 = vld [vmem:[#allocation2 + $0x160] sm:$0xff]
    %v107 = vld [vmem:[#allocation2 + $0x168] sm:$0xff]
    %v108 = vld [vmem:[#allocation2 + $0x170] sm:$0xff]
    %v109 = vld [vmem:[#allocation2 + $0x178] sm:$0xff]
    %v110 = vld [vmem:[#allocation2 + $0x180] sm:$0xff]
    %v111 = vld [vmem:[#allocation2 + $0x188] sm:$0xff]
    %v112 = vld [vmem:[#allocation2 + $0x190] sm:$0xff]
    %v113 = vld [vmem:[#allocation2 + $0x198] sm:$0xff]
    %v114 = vld [vmem:[#allocation2 + $0x1a0] sm:$0xff]
    %v115 = vld [vmem:[#allocation2 + $0x1a8] sm:$0xff]
    %v116 = vld [vmem:[#allocation2 + $0x1b0] sm:$0xff]
    %v117 = vld [vmem:[#allocation2 + $0x1b8] sm:$0xff]
    %v118 = vld [vmem:[#allocation2 + $0x1c0] sm:$0xff]
    %v119 = vld [vmem:[#allocation2 + $0x1c8] sm:$0xff]
    %v120 = vld [vmem:[#allocation2 + $0x1d0] sm:$0xff]
    %v121 = vld [vmem:[#allocation2 + $0x1d8] sm:$0xff]
    %v122 = vld [vmem:[#allocation2 + $0x1e0] sm:$0xff]
    %v123 = vld [vmem:[#allocation2 + $0x1e8] sm:$0xff]
    %v124 = vld [vmem:[#allocation2 + $0x1f0] sm:$0xff]
    %v125 = vld [vmem:[#allocation2 + $0x1f8] sm:$0xff]
    %v126 = vpack.c.bf16 %v64, %v62
    %v127 = vpack.c.bf16 %v65, %v63
    %v128 = vpack.c.bf16 %v68, %v66
    %v129 = vpack.c.bf16 %v69, %v67
    %v130 = vpack.c.bf16 %v72, %v70
    %v131 = vpack.c.bf16 %v73, %v71
    %v132 = vpack.c.bf16 %v76, %v74
    %v133 = vpack.c.bf16 %v77, %v75
    %v134 = vpack.c.bf16 %v80, %v78
    %v135 = vpack.c.bf16 %v81, %v79
    %v136 = vpack.c.bf16 %v84, %v82
    %v137 = vpack.c.bf16 %v85, %v83
    %v138 = vpack.c.bf16 %v88, %v86
    %v139 = vpack.c.bf16 %v89, %v87
    %v140 = vpack.c.bf16 %v92, %v90
    %v141 = vpack.c.bf16 %v93, %v91
    %v142 = vpack.c.bf16 %v96, %v94
    %v143 = vpack.c.bf16 %v97, %v95
    %v144 = vpack.c.bf16 %v100, %v98
    %v145 = vpack.c.bf16 %v101, %v99
    %v146 = vpack.c.bf16 %v104, %v102
    %v147 = vpack.c.bf16 %v105, %v103
    %v148 = vpack.c.bf16 %v108, %v106
    %v149 = vpack.c.bf16 %v109, %v107
    %v150 = vpack.c.bf16 %v112, %v110
    %v151 = vpack.c.bf16 %v113, %v111
    %v152 = vpack.c.bf16 %v116, %v114
    %v153 = vpack.c.bf16 %v117, %v115
    %v154 = vpack.c.bf16 %v120, %v118
    %v155 = vpack.c.bf16 %v121, %v119
    %v156 = vpack.c.bf16 %v124, %v122
    %v157 = vpack.c.bf16 %v125, %v123
    %v158 = vld [vmem:[#allocation5] sm:$0xff]
    %v159 = vld [vmem:[#allocation5 + $0x8] sm:$0xff]
    %v160 = vld [vmem:[#allocation5 + $0x10] sm:$0xff]
    %v161 = vld [vmem:[#allocation5 + $0x18] sm:$0xff]
    %v162 = vld [vmem:[#allocation5 + $0x20] sm:$0xff]
    %v163 = vld [vmem:[#allocation5 + $0x28] sm:$0xff]
    %v164 = vld [vmem:[#allocation5 + $0x30] sm:$0xff]
    %v165 = vld [vmem:[#allocation5 + $0x38] sm:$0xff]
    %v166 = vld [vmem:[#allocation5 + $0x40] sm:$0xff]
    %v167 = vld [vmem:[#allocation5 + $0x48] sm:$0xff]
    %v168 = vld [vmem:[#allocation5 + $0x50] sm:$0xff]
    %v169 = vld [vmem:[#allocation5 + $0x58] sm:$0xff]
    %v170 = vld [vmem:[#allocation5 + $0x60] sm:$0xff]
    %v171 = vld [vmem:[#allocation5 + $0x68] sm:$0xff]
    %v172 = vld [vmem:[#allocation5 + $0x70] sm:$0xff]
    %v173 = vld [vmem:[#allocation5 + $0x78] sm:$0xff]
    %v174 = vld [vmem:[#allocation5 + $0x80] sm:$0xff]
    %v175 = vld [vmem:[#allocation5 + $0x88] sm:$0xff]
    %v176 = vld [vmem:[#allocation5 + $0x90] sm:$0xff]
    %v177 = vld [vmem:[#allocation5 + $0x98] sm:$0xff]
    %v178 = vld [vmem:[#allocation5 + $0xa0] sm:$0xff]
    %v179 = vld [vmem:[#allocation5 + $0xa8] sm:$0xff]
    %v180 = vld [vmem:[#allocation5 + $0xb0] sm:$0xff]
    %v181 = vld [vmem:[#allocation5 + $0xb8] sm:$0xff]
    %v182 = vld [vmem:[#allocation5 + $0xc0] sm:$0xff]
    %v183 = vld [vmem:[#allocation5 + $0xc8] sm:$0xff]
    %v184 = vld [vmem:[#allocation5 + $0xd0] sm:$0xff]
    %v185 = vld [vmem:[#allocation5 + $0xd8] sm:$0xff]
    %v186 = vld [vmem:[#allocation5 + $0xe0] sm:$0xff]
    %v187 = vld [vmem:[#allocation5 + $0xe8] sm:$0xff]
    %v188 = vld [vmem:[#allocation5 + $0xf0] sm:$0xff]
    %v189 = vld [vmem:[#allocation5 + $0xf8] sm:$0xff]
    %v190 = vld [vmem:[#allocation5 + $0x100] sm:$0xff]
    %v191 = vld [vmem:[#allocation5 + $0x108] sm:$0xff]
    %v192 = vld [vmem:[#allocation5 + $0x110] sm:$0xff]
    %v193 = vld [vmem:[#allocation5 + $0x118] sm:$0xff]
    %v194 = vld [vmem:[#allocation5 + $0x120] sm:$0xff]
    %v195 = vld [vmem:[#allocation5 + $0x128] sm:$0xff]
    %v196 = vld [vmem:[#allocation5 + $0x130] sm:$0xff]
    %v197 = vld [vmem:[#allocation5 + $0x138] sm:$0xff]
    %v198 = vld [vmem:[#allocation5 + $0x140] sm:$0xff]
    %v199 = vld [vmem:[#allocation5 + $0x148] sm:$0xff]
    %v200 = vld [vmem:[#allocation5 + $0x150] sm:$0xff]
    %v201 = vld [vmem:[#allocation5 + $0x158] sm:$0xff]
    %v202 = vld [vmem:[#allocation5 + $0x160] sm:$0xff]
    %v203 = vld [vmem:[#allocation5 + $0x168] sm:$0xff]
    %v204 = vld [vmem:[#allocation5 + $0x170] sm:$0xff]
    %v205 = vld [vmem:[#allocation5 + $0x178] sm:$0xff]
    %v206 = vld [vmem:[#allocation5 + $0x180] sm:$0xff]
    %v207 = vld [vmem:[#allocation5 + $0x188] sm:$0xff]
    %v208 = vld [vmem:[#allocation5 + $0x190] sm:$0xff]
    %v209 = vld [vmem:[#allocation5 + $0x198] sm:$0xff]
    %v210 = vld [vmem:[#allocation5 + $0x1a0] sm:$0xff]
    %v211 = vld [vmem:[#allocation5 + $0x1a8] sm:$0xff]
    %v212 = vld [vmem:[#allocation5 + $0x1b0] sm:$0xff]
    %v213 = vld [vmem:[#allocation5 + $0x1b8] sm:$0xff]
    %v214 = vld [vmem:[#allocation5 + $0x1c0] sm:$0xff]
    %v215 = vld [vmem:[#allocation5 + $0x1c8] sm:$0xff]
    %v216 = vld [vmem:[#allocation5 + $0x1d0] sm:$0xff]
    %v217 = vld [vmem:[#allocation5 + $0x1d8] sm:$0xff]
    %v218 = vld [vmem:[#allocation5 + $0x1e0] sm:$0xff]
    %v219 = vld [vmem:[#allocation5 + $0x1e8] sm:$0xff]
    %v220 = vld [vmem:[#allocation5 + $0x1f0] sm:$0xff]
    %v221 = vld [vmem:[#allocation5 + $0x1f8] sm:$0xff]
    %v222 = vld [vmem:[#allocation5 + $0x200] sm:$0xff]
    %v223 = vld [vmem:[#allocation5 + $0x208] sm:$0xff]
    %v224 = vld [vmem:[#allocation5 + $0x210] sm:$0xff]
    %v225 = vld [vmem:[#allocation5 + $0x218] sm:$0xff]
    %v226 = vld [vmem:[#allocation5 + $0x220] sm:$0xff]
    %v227 = vld [vmem:[#allocation5 + $0x228] sm:$0xff]
    %v228 = vld [vmem:[#allocation5 + $0x230] sm:$0xff]
    %v229 = vld [vmem:[#allocation5 + $0x238] sm:$0xff]
    %v230 = vld [vmem:[#allocation5 + $0x240] sm:$0xff]
    %v231 = vld [vmem:[#allocation5 + $0x248] sm:$0xff]
    %v232 = vld [vmem:[#allocation5 + $0x250] sm:$0xff]
    %v233 = vld [vmem:[#allocation5 + $0x258] sm:$0xff]
    %v234 = vld [vmem:[#allocation5 + $0x260] sm:$0xff]
    %v235 = vld [vmem:[#allocation5 + $0x268] sm:$0xff]
    %v236 = vld [vmem:[#allocation5 + $0x270] sm:$0xff]
    %v237 = vld [vmem:[#allocation5 + $0x278] sm:$0xff]
    %v238 = vld [vmem:[#allocation5 + $0x280] sm:$0xff]
    %v239 = vld [vmem:[#allocation5 + $0x288] sm:$0xff]
    %v240 = vld [vmem:[#allocation5 + $0x290] sm:$0xff]
    %v241 = vld [vmem:[#allocation5 + $0x298] sm:$0xff]
    %v242 = vld [vmem:[#allocation5 + $0x2a0] sm:$0xff]
    %v243 = vld [vmem:[#allocation5 + $0x2a8] sm:$0xff]
    %v244 = vld [vmem:[#allocation5 + $0x2b0] sm:$0xff]
    %v245 = vld [vmem:[#allocation5 + $0x2b8] sm:$0xff]
    %v246 = vld [vmem:[#allocation5 + $0x2c0] sm:$0xff]
    %v247 = vld [vmem:[#allocation5 + $0x2c8] sm:$0xff]
    %v248 = vld [vmem:[#allocation5 + $0x2d0] sm:$0xff]
    %v249 = vld [vmem:[#allocation5 + $0x2d8] sm:$0xff]
    %v250 = vld [vmem:[#allocation5 + $0x2e0] sm:$0xff]
    %v251 = vld [vmem:[#allocation5 + $0x2e8] sm:$0xff]
    %v252 = vld [vmem:[#allocation5 + $0x2f0] sm:$0xff]
    %v253 = vld [vmem:[#allocation5 + $0x2f8] sm:$0xff]
    %v254 = vld [vmem:[#allocation5 + $0x300] sm:$0xff]
    %v255 = vld [vmem:[#allocation5 + $0x308] sm:$0xff]
    %v256 = vld [vmem:[#allocation5 + $0x310] sm:$0xff]
    %v257 = vld [vmem:[#allocation5 + $0x318] sm:$0xff]
    %v258 = vld [vmem:[#allocation5 + $0x320] sm:$0xff]
    %v259 = vld [vmem:[#allocation5 + $0x328] sm:$0xff]
    %v260 = vld [vmem:[#allocation5 + $0x330] sm:$0xff]
    %v261 = vld [vmem:[#allocation5 + $0x338] sm:$0xff]
    %v262 = vld [vmem:[#allocation5 + $0x340] sm:$0xff]
    %v263 = vld [vmem:[#allocation5 + $0x348] sm:$0xff]
    %v264 = vld [vmem:[#allocation5 + $0x350] sm:$0xff]
    %v265 = vld [vmem:[#allocation5 + $0x358] sm:$0xff]
    %v266 = vld [vmem:[#allocation5 + $0x360] sm:$0xff]
    %v267 = vld [vmem:[#allocation5 + $0x368] sm:$0xff]
    %v268 = vld [vmem:[#allocation5 + $0x370] sm:$0xff]
    %v269 = vld [vmem:[#allocation5 + $0x378] sm:$0xff]
    %v270 = vld [vmem:[#allocation5 + $0x380] sm:$0xff]
    %v271 = vld [vmem:[#allocation5 + $0x388] sm:$0xff]
    %v272 = vld [vmem:[#allocation5 + $0x390] sm:$0xff]
    %v273 = vld [vmem:[#allocation5 + $0x398] sm:$0xff]
    %v274 = vld [vmem:[#allocation5 + $0x3a0] sm:$0xff]
    %v275 = vld [vmem:[#allocation5 + $0x3a8] sm:$0xff]
    %v276 = vld [vmem:[#allocation5 + $0x3b0] sm:$0xff]
    %v277 = vld [vmem:[#allocation5 + $0x3b8] sm:$0xff]
    %v278 = vld [vmem:[#allocation5 + $0x3c0] sm:$0xff]
    %v279 = vld [vmem:[#allocation5 + $0x3c8] sm:$0xff]
    %v280 = vld [vmem:[#allocation5 + $0x3d0] sm:$0xff]
    %v281 = vld [vmem:[#allocation5 + $0x3d8] sm:$0xff]
    %v282 = vld [vmem:[#allocation5 + $0x3e0] sm:$0xff]
    %v283 = vld [vmem:[#allocation5 + $0x3e8] sm:$0xff]
    %v284 = vld [vmem:[#allocation5 + $0x3f0] sm:$0xff]
    %v285 = vld [vmem:[#allocation5 + $0x3f8] sm:$0xff]
    %v414 = vunpack.c.l.b16 %v158
    %v415 = vunpack.c.h.b16 %v158
    %v416 = vunpack.c.l.b16 %v159
    %v417 = vunpack.c.h.b16 %v159
    %v418 = vunpack.c.l.b16 %v160
    %v419 = vunpack.c.h.b16 %v160
    %v420 = vunpack.c.l.b16 %v161
    %v421 = vunpack.c.h.b16 %v161
    %v422 = vunpack.c.l.b16 %v162
    %v423 = vunpack.c.h.b16 %v162
    %v424 = vunpack.c.l.b16 %v163
    %v425 = vunpack.c.h.b16 %v163
    %v426 = vunpack.c.l.b16 %v164
    %v427 = vunpack.c.h.b16 %v164
    %v428 = vunpack.c.l.b16 %v165
    %v429 = vunpack.c.h.b16 %v165
    %v430 = vunpack.c.l.b16 %v166
    %v431 = vunpack.c.h.b16 %v166
    %v432 = vunpack.c.l.b16 %v167
    %v433 = vunpack.c.h.b16 %v167
    %v434 = vunpack.c.l.b16 %v168
    %v435 = vunpack.c.h.b16 %v168
    %v436 = vunpack.c.l.b16 %v169
    %v437 = vunpack.c.h.b16 %v169
    %v438 = vunpack.c.l.b16 %v170
    %v439 = vunpack.c.h.b16 %v170
    %v440 = vunpack.c.l.b16 %v171
    %v441 = vunpack.c.h.b16 %v171
    %v442 = vunpack.c.l.b16 %v172
    %v443 = vunpack.c.h.b16 %v172
    %v444 = vunpack.c.l.b16 %v173
    %v445 = vunpack.c.h.b16 %v173
    %v446 = vunpack.c.l.b16 %v174
    %v447 = vunpack.c.h.b16 %v174
    %v448 = vunpack.c.l.b16 %v175
    %v449 = vunpack.c.h.b16 %v175
    %v450 = vunpack.c.l.b16 %v176
    %v451 = vunpack.c.h.b16 %v176
    %v452 = vunpack.c.l.b16 %v177
    %v453 = vunpack.c.h.b16 %v177
    %v454 = vunpack.c.l.b16 %v178
    %v455 = vunpack.c.h.b16 %v178
    %v456 = vunpack.c.l.b16 %v179
    %v457 = vunpack.c.h.b16 %v179
    %v458 = vunpack.c.l.b16 %v180
    %v459 = vunpack.c.h.b16 %v180
    %v460 = vunpack.c.l.b16 %v181
    %v461 = vunpack.c.h.b16 %v181
    %v462 = vunpack.c.l.b16 %v182
    %v463 = vunpack.c.h.b16 %v182
    %v464 = vunpack.c.l.b16 %v183
    %v465 = vunpack.c.h.b16 %v183
    %v466 = vunpack.c.l.b16 %v184
    %v467 = vunpack.c.h.b16 %v184
    %v468 = vunpack.c.l.b16 %v185
    %v469 = vunpack.c.h.b16 %v185
    %v470 = vunpack.c.l.b16 %v186
    %v471 = vunpack.c.h.b16 %v186
    %v472 = vunpack.c.l.b16 %v187
    %v473 = vunpack.c.h.b16 %v187
    %v474 = vunpack.c.l.b16 %v188
    %v475 = vunpack.c.h.b16 %v188
    %v476 = vunpack.c.l.b16 %v189
    %v477 = vunpack.c.h.b16 %v189
    %v478 = vunpack.c.l.b16 %v190
    %v479 = vunpack.c.h.b16 %v190
    %v480 = vunpack.c.l.b16 %v191
    %v481 = vunpack.c.h.b16 %v191
    %v482 = vunpack.c.l.b16 %v192
    %v483 = vunpack.c.h.b16 %v192
    %v484 = vunpack.c.l.b16 %v193
    %v485 = vunpack.c.h.b16 %v193
    %v486 = vunpack.c.l.b16 %v194
    %v487 = vunpack.c.h.b16 %v194
    %v488 = vunpack.c.l.b16 %v195
    %v489 = vunpack.c.h.b16 %v195
    %v490 = vunpack.c.l.b16 %v196
    %v491 = vunpack.c.h.b16 %v196
    %v492 = vunpack.c.l.b16 %v197
    %v493 = vunpack.c.h.b16 %v197
    %v494 = vunpack.c.l.b16 %v198
    %v495 = vunpack.c.h.b16 %v198
    %v496 = vunpack.c.l.b16 %v199
    %v497 = vunpack.c.h.b16 %v199
    %v498 = vunpack.c.l.b16 %v200
    %v499 = vunpack.c.h.b16 %v200
    %v500 = vunpack.c.l.b16 %v201
    %v501 = vunpack.c.h.b16 %v201
    %v502 = vunpack.c.l.b16 %v202
    %v503 = vunpack.c.h.b16 %v202
    %v504 = vunpack.c.l.b16 %v203
    %v505 = vunpack.c.h.b16 %v203
    %v506 = vunpack.c.l.b16 %v204
    %v507 = vunpack.c.h.b16 %v204
    %v508 = vunpack.c.l.b16 %v205
    %v509 = vunpack.c.h.b16 %v205
    %v510 = vunpack.c.l.b16 %v206
    %v511 = vunpack.c.h.b16 %v206
    %v512 = vunpack.c.l.b16 %v207
    %v513 = vunpack.c.h.b16 %v207
    %v514 = vunpack.c.l.b16 %v208
    %v515 = vunpack.c.h.b16 %v208
    %v516 = vunpack.c.l.b16 %v209
    %v517 = vunpack.c.h.b16 %v209
    %v518 = vunpack.c.l.b16 %v210
    %v519 = vunpack.c.h.b16 %v210
    %v520 = vunpack.c.l.b16 %v211
    %v521 = vunpack.c.h.b16 %v211
    %v522 = vunpack.c.l.b16 %v212
    %v523 = vunpack.c.h.b16 %v212
    %v524 = vunpack.c.l.b16 %v213
    %v525 = vunpack.c.h.b16 %v213
    %v526 = vunpack.c.l.b16 %v214
    %v527 = vunpack.c.h.b16 %v214
    %v528 = vunpack.c.l.b16 %v215
    %v529 = vunpack.c.h.b16 %v215
    %v530 = vunpack.c.l.b16 %v216
    %v531 = vunpack.c.h.b16 %v216
    %v532 = vunpack.c.l.b16 %v217
    %v533 = vunpack.c.h.b16 %v217
    %v534 = vunpack.c.l.b16 %v218
    %v535 = vunpack.c.h.b16 %v218
    %v536 = vunpack.c.l.b16 %v219
    %v537 = vunpack.c.h.b16 %v219
    %v538 = vunpack.c.l.b16 %v220
    %v539 = vunpack.c.h.b16 %v220
    %v540 = vunpack.c.l.b16 %v221
    %v541 = vunpack.c.h.b16 %v221
    %v542 = vunpack.c.l.b16 %v222
    %v543 = vunpack.c.h.b16 %v222
    %v544 = vunpack.c.l.b16 %v223
    %v545 = vunpack.c.h.b16 %v223
    %v546 = vunpack.c.l.b16 %v224
    %v547 = vunpack.c.h.b16 %v224
    %v548 = vunpack.c.l.b16 %v225
    %v549 = vunpack.c.h.b16 %v225
    %v550 = vunpack.c.l.b16 %v226
    %v551 = vunpack.c.h.b16 %v226
    %v552 = vunpack.c.l.b16 %v227
    %v553 = vunpack.c.h.b16 %v227
    %v554 = vunpack.c.l.b16 %v228
    %v555 = vunpack.c.h.b16 %v228
    %v556 = vunpack.c.l.b16 %v229
    %v557 = vunpack.c.h.b16 %v229
    %v558 = vunpack.c.l.b16 %v230
    %v559 = vunpack.c.h.b16 %v230
    %v560 = vunpack.c.l.b16 %v231
    %v561 = vunpack.c.h.b16 %v231
    %v562 = vunpack.c.l.b16 %v232
    %v563 = vunpack.c.h.b16 %v232
    %v564 = vunpack.c.l.b16 %v233
    %v565 = vunpack.c.h.b16 %v233
    %v566 = vunpack.c.l.b16 %v234
    %v567 = vunpack.c.h.b16 %v234
    %v568 = vunpack.c.l.b16 %v235
    %v569 = vunpack.c.h.b16 %v235
    %v570 = vunpack.c.l.b16 %v236
    %v571 = vunpack.c.h.b16 %v236
    %v572 = vunpack.c.l.b16 %v237
    %v573 = vunpack.c.h.b16 %v237
    %v574 = vunpack.c.l.b16 %v238
    %v575 = vunpack.c.h.b16 %v238
    %v576 = vunpack.c.l.b16 %v239
    %v577 = vunpack.c.h.b16 %v239
    %v578 = vunpack.c.l.b16 %v240
    %v579 = vunpack.c.h.b16 %v240
    %v580 = vunpack.c.l.b16 %v241
    %v581 = vunpack.c.h.b16 %v241
    %v582 = vunpack.c.l.b16 %v242
    %v583 = vunpack.c.h.b16 %v242
    %v584 = vunpack.c.l.b16 %v243
    %v585 = vunpack.c.h.b16 %v243
    %v586 = vunpack.c.l.b16 %v244
    %v587 = vunpack.c.h.b16 %v244
    %v588 = vunpack.c.l.b16 %v245
    %v589 = vunpack.c.h.b16 %v245
    %v590 = vunpack.c.l.b16 %v246
    %v591 = vunpack.c.h.b16 %v246
    %v592 = vunpack.c.l.b16 %v247
    %v593 = vunpack.c.h.b16 %v247
    %v594 = vunpack.c.l.b16 %v248
    %v595 = vunpack.c.h.b16 %v248
    %v596 = vunpack.c.l.b16 %v249
    %v597 = vunpack.c.h.b16 %v249
    %v598 = vunpack.c.l.b16 %v250
    %v599 = vunpack.c.h.b16 %v250
    %v600 = vunpack.c.l.b16 %v251
    %v601 = vunpack.c.h.b16 %v251
    %v602 = vunpack.c.l.b16 %v252
    %v603 = vunpack.c.h.b16 %v252
    %v604 = vunpack.c.l.b16 %v253
    %v605 = vunpack.c.h.b16 %v253
    %v606 = vunpack.c.l.b16 %v254
    %v607 = vunpack.c.h.b16 %v254
    %v608 = vunpack.c.l.b16 %v255
    %v609 = vunpack.c.h.b16 %v255
    %v610 = vunpack.c.l.b16 %v256
    %v611 = vunpack.c.h.b16 %v256
    %v612 = vunpack.c.l.b16 %v257
    %v613 = vunpack.c.h.b16 %v257
    %v614 = vunpack.c.l.b16 %v258
    %v615 = vunpack.c.h.b16 %v258
    %v616 = vunpack.c.l.b16 %v259
    %v617 = vunpack.c.h.b16 %v259
    %v618 = vunpack.c.l.b16 %v260
    %v619 = vunpack.c.h.b16 %v260
    %v620 = vunpack.c.l.b16 %v261
    %v621 = vunpack.c.h.b16 %v261
    %v622 = vunpack.c.l.b16 %v262
    %v623 = vunpack.c.h.b16 %v262
    %v624 = vunpack.c.l.b16 %v263
    %v625 = vunpack.c.h.b16 %v263
    %v626 = vunpack.c.l.b16 %v264
    %v627 = vunpack.c.h.b16 %v264
    %v628 = vunpack.c.l.b16 %v265
    %v629 = vunpack.c.h.b16 %v265
    %v630 = vunpack.c.l.b16 %v266
    %v631 = vunpack.c.h.b16 %v266
    %v632 = vunpack.c.l.b16 %v267
    %v633 = vunpack.c.h.b16 %v267
    %v634 = vunpack.c.l.b16 %v268
    %v635 = vunpack.c.h.b16 %v268
    %v636 = vunpack.c.l.b16 %v269
    %v637 = vunpack.c.h.b16 %v269
    %v638 = vunpack.c.l.b16 %v270
    %v639 = vunpack.c.h.b16 %v270
    %v640 = vunpack.c.l.b16 %v271
    %v641 = vunpack.c.h.b16 %v271
    %v642 = vunpack.c.l.b16 %v272
    %v643 = vunpack.c.h.b16 %v272
    %v644 = vunpack.c.l.b16 %v273
    %v645 = vunpack.c.h.b16 %v273
    %v646 = vunpack.c.l.b16 %v274
    %v647 = vunpack.c.h.b16 %v274
    %v648 = vunpack.c.l.b16 %v275
    %v649 = vunpack.c.h.b16 %v275
    %v650 = vunpack.c.l.b16 %v276
    %v651 = vunpack.c.h.b16 %v276
    %v652 = vunpack.c.l.b16 %v277
    %v653 = vunpack.c.h.b16 %v277
    %v654 = vunpack.c.l.b16 %v278
    %v655 = vunpack.c.h.b16 %v278
    %v656 = vunpack.c.l.b16 %v279
    %v657 = vunpack.c.h.b16 %v279
    %v658 = vunpack.c.l.b16 %v280
    %v659 = vunpack.c.h.b16 %v280
    %v660 = vunpack.c.l.b16 %v281
    %v661 = vunpack.c.h.b16 %v281
    %v662 = vunpack.c.l.b16 %v282
    %v663 = vunpack.c.h.b16 %v282
    %v664 = vunpack.c.l.b16 %v283
    %v665 = vunpack.c.h.b16 %v283
    %v666 = vunpack.c.l.b16 %v284
    %v667 = vunpack.c.h.b16 %v284
    %v668 = vunpack.c.l.b16 %v285
    %v669 = vunpack.c.h.b16 %v285
    %v670 = vpack.c.b16 %v422, %v414
    %v671 = vpack.c.b16 %v423, %v415
    %v672 = vpack.c.b16 %v424, %v416
    %v673 = vpack.c.b16 %v425, %v417
    %v674 = vpack.c.b16 %v426, %v418
    %v675 = vpack.c.b16 %v427, %v419
    %v676 = vpack.c.b16 %v428, %v420
    %v677 = vpack.c.b16 %v429, %v421
    %v678 = vpack.c.b16 %v438, %v430
    %v679 = vpack.c.b16 %v439, %v431
    %v680 = vpack.c.b16 %v440, %v432
    %v681 = vpack.c.b16 %v441, %v433
    %v682 = vpack.c.b16 %v442, %v434
    %v683 = vpack.c.b16 %v443, %v435
    %v684 = vpack.c.b16 %v444, %v436
    %v685 = vpack.c.b16 %v445, %v437
    %v686 = vpack.c.b16 %v454, %v446
    %v687 = vpack.c.b16 %v455, %v447
    %v688 = vpack.c.b16 %v456, %v448
    %v689 = vpack.c.b16 %v457, %v449
    %v690 = vpack.c.b16 %v458, %v450
    %v691 = vpack.c.b16 %v459, %v451
    %v692 = vpack.c.b16 %v460, %v452
    %v693 = vpack.c.b16 %v461, %v453
    %v694 = vpack.c.b16 %v470, %v462
    %v695 = vpack.c.b16 %v471, %v463
    %v696 = vpack.c.b16 %v472, %v464
    %v697 = vpack.c.b16 %v473, %v465
    %v698 = vpack.c.b16 %v474, %v466
    %v699 = vpack.c.b16 %v475, %v467
    %v700 = vpack.c.b16 %v476, %v468
    %v701 = vpack.c.b16 %v477, %v469
    %v702 = vpack.c.b16 %v486, %v478
    %v703 = vpack.c.b16 %v487, %v479
    %v704 = vpack.c.b16 %v488, %v480
    %v705 = vpack.c.b16 %v489, %v481
    %v706 = vpack.c.b16 %v490, %v482
    %v707 = vpack.c.b16 %v491, %v483
    %v708 = vpack.c.b16 %v492, %v484
    %v709 = vpack.c.b16 %v493, %v485
    %v710 = vpack.c.b16 %v502, %v494
    %v711 = vpack.c.b16 %v503, %v495
    %v712 = vpack.c.b16 %v504, %v496
    %v713 = vpack.c.b16 %v505, %v497
    %v714 = vpack.c.b16 %v506, %v498
    %v715 = vpack.c.b16 %v507, %v499
    %v716 = vpack.c.b16 %v508, %v500
    %v717 = vpack.c.b16 %v509, %v501
    %v718 = vpack.c.b16 %v518, %v510
    %v719 = vpack.c.b16 %v519, %v511
    %v720 = vpack.c.b16 %v520, %v512
    %v721 = vpack.c.b16 %v521, %v513
    %v722 = vpack.c.b16 %v522, %v514
    %v723 = vpack.c.b16 %v523, %v515
    %v724 = vpack.c.b16 %v524, %v516
    %v725 = vpack.c.b16 %v525, %v517
    %v726 = vpack.c.b16 %v534, %v526
    %v727 = vpack.c.b16 %v535, %v527
    %v728 = vpack.c.b16 %v536, %v528
    %v729 = vpack.c.b16 %v537, %v529
    %v730 = vpack.c.b16 %v538, %v530
    %v731 = vpack.c.b16 %v539, %v531
    %v732 = vpack.c.b16 %v540, %v532
    %v733 = vpack.c.b16 %v541, %v533
    %v734 = vpack.c.b16 %v550, %v542
    %v735 = vpack.c.b16 %v551, %v543
    %v736 = vpack.c.b16 %v552, %v544
    %v737 = vpack.c.b16 %v553, %v545
    %v738 = vpack.c.b16 %v554, %v546
    %v739 = vpack.c.b16 %v555, %v547
    %v740 = vpack.c.b16 %v556, %v548
    %v741 = vpack.c.b16 %v557, %v549
    %v742 = vpack.c.b16 %v566, %v558
    %v743 = vpack.c.b16 %v567, %v559
    %v744 = vpack.c.b16 %v568, %v560
    %v745 = vpack.c.b16 %v569, %v561
    %v746 = vpack.c.b16 %v570, %v562
    %v747 = vpack.c.b16 %v571, %v563
    %v748 = vpack.c.b16 %v572, %v564
    %v749 = vpack.c.b16 %v573, %v565
    %v750 = vpack.c.b16 %v582, %v574
    %v751 = vpack.c.b16 %v583, %v575
    %v752 = vpack.c.b16 %v584, %v576
    %v753 = vpack.c.b16 %v585, %v577
    %v754 = vpack.c.b16 %v586, %v578
    %v755 = vpack.c.b16 %v587, %v579
    %v756 = vpack.c.b16 %v588, %v580
    %v757 = vpack.c.b16 %v589, %v581
    %v758 = vpack.c.b16 %v598, %v590
    %v759 = vpack.c.b16 %v599, %v591
    %v760 = vpack.c.b16 %v600, %v592
    %v761 = vpack.c.b16 %v601, %v593
    %v762 = vpack.c.b16 %v602, %v594
    %v763 = vpack.c.b16 %v603, %v595
    %v764 = vpack.c.b16 %v604, %v596
    %v765 = vpack.c.b16 %v605, %v597
    %v766 = vpack.c.b16 %v614, %v606
    %v767 = vpack.c.b16 %v615, %v607
    %v768 = vpack.c.b16 %v616, %v608
    %v769 = vpack.c.b16 %v617, %v609
    %v770 = vpack.c.b16 %v618, %v610
    %v771 = vpack.c.b16 %v619, %v611
    %v772 = vpack.c.b16 %v620, %v612
    %v773 = vpack.c.b16 %v621, %v613
    %v774 = vpack.c.b16 %v630, %v622
    %v775 = vpack.c.b16 %v631, %v623
    %v776 = vpack.c.b16 %v632, %v624
    %v777 = vpack.c.b16 %v633, %v625
    %v778 = vpack.c.b16 %v634, %v626
    %v779 = vpack.c.b16 %v635, %v627
    %v780 = vpack.c.b16 %v636, %v628
    %v781 = vpack.c.b16 %v637, %v629
    %v782 = vpack.c.b16 %v646, %v638
    %v783 = vpack.c.b16 %v647, %v639
    %v784 = vpack.c.b16 %v648, %v640
    %v785 = vpack.c.b16 %v649, %v641
    %v786 = vpack.c.b16 %v650, %v642
    %v787 = vpack.c.b16 %v651, %v643
    %v788 = vpack.c.b16 %v652, %v644
    %v789 = vpack.c.b16 %v653, %v645
    %v790 = vpack.c.b16 %v662, %v654
    %v791 = vpack.c.b16 %v663, %v655
    %v792 = vpack.c.b16 %v664, %v656
    %v793 = vpack.c.b16 %v665, %v657
    %v794 = vpack.c.b16 %v666, %v658
    %v795 = vpack.c.b16 %v667, %v659
    %v796 = vpack.c.b16 %v668, %v660
    %v797 = vpack.c.b16 %v669, %v661
    %926 = vmatpush.bf16.msra.mxu0 %v726
    %927 = vmatpush.bf16.msra.mxu0 %v718
    %928 = vmatpush.bf16.msra.mxu0 %v710
    %929 = vmatpush.bf16.msra.mxu0 %v702
    %930 = vmatpush.bf16.msra.mxu0 %v694
    %931 = vmatpush.bf16.msra.mxu0 %v686
    %932 = vmatpush.bf16.msra.mxu0 %v678
    %933 = vmatpush.bf16.msra.mxu0 %v670
    %934 = vmatmul.bf16.gmra.mxu0 %v126
    %v935 = vpop.f32.mrf.mxu0
    %v936 = vadd.f32 0.0, %v935
    %v937 = vpop.f32.mrf.mxu0
    %v938 = vadd.f32 0.0, %v937
    %939 = vmatmul.bf16.gmra.mxu0 %v128
    %v940 = vpop.f32.mrf.mxu0
    %v941 = vadd.f32 0.0, %v940
    %v942 = vpop.f32.mrf.mxu0
    %v943 = vadd.f32 0.0, %v942
    %944 = vmatmul.bf16.gmra.mxu0 %v130
    %v945 = vpop.f32.mrf.mxu0
    %v946 = vadd.f32 0.0, %v945
    %v947 = vpop.f32.mrf.mxu0
    %v948 = vadd.f32 0.0, %v947
    %949 = vmatmul.bf16.gmra.mxu0 %v132
    %v950 = vpop.f32.mrf.mxu0
    %v951 = vadd.f32 0.0, %v950
    %v952 = vpop.f32.mrf.mxu0
    %v953 = vadd.f32 0.0, %v952
    %954 = vmatmul.bf16.gmra.mxu0 %v134
    %v955 = vpop.f32.mrf.mxu0
    %v956 = vadd.f32 0.0, %v955
    %v957 = vpop.f32.mrf.mxu0
    %v958 = vadd.f32 0.0, %v957
    %959 = vmatmul.bf16.gmra.mxu0 %v136
    %v960 = vpop.f32.mrf.mxu0
    %v961 = vadd.f32 0.0, %v960
    %v962 = vpop.f32.mrf.mxu0
    %v963 = vadd.f32 0.0, %v962
    %964 = vmatmul.bf16.gmra.mxu0 %v138
    %v965 = vpop.f32.mrf.mxu0
    %v966 = vadd.f32 0.0, %v965
    %v967 = vpop.f32.mrf.mxu0
    %v968 = vadd.f32 0.0, %v967
    %969 = vmatmul.bf16.gmra.mxu0 %v140
    %v970 = vpop.f32.mrf.mxu0
    %v971 = vadd.f32 0.0, %v970
    %v972 = vpop.f32.mrf.mxu0
    %v973 = vadd.f32 0.0, %v972
    %974 = vmatmul.bf16.gmra.mxu0 %v142
    %v975 = vpop.f32.mrf.mxu0
    %v976 = vadd.f32 0.0, %v975
    %v977 = vpop.f32.mrf.mxu0
    %v978 = vadd.f32 0.0, %v977
    %979 = vmatmul.bf16.gmra.mxu0 %v144
    %v980 = vpop.f32.mrf.mxu0
    %v981 = vadd.f32 0.0, %v980
    %v982 = vpop.f32.mrf.mxu0
    %v983 = vadd.f32 0.0, %v982
    %984 = vmatmul.bf16.gmra.mxu0 %v146
    %v985 = vpop.f32.mrf.mxu0
    %v986 = vadd.f32 0.0, %v985
    %v987 = vpop.f32.mrf.mxu0
    %v988 = vadd.f32 0.0, %v987
    %989 = vmatmul.bf16.gmra.mxu0 %v148
    %v990 = vpop.f32.mrf.mxu0
    %v991 = vadd.f32 0.0, %v990
    %v992 = vpop.f32.mrf.mxu0
    %v993 = vadd.f32 0.0, %v992
    %994 = vmatmul.bf16.gmra.mxu0 %v150
    %v995 = vpop.f32.mrf.mxu0
    %v996 = vadd.f32 0.0, %v995
    %v997 = vpop.f32.mrf.mxu0
    %v998 = vadd.f32 0.0, %v997
    %999 = vmatmul.bf16.gmra.mxu0 %v152
    %v1000 = vpop.f32.mrf.mxu0
    %v1001 = vadd.f32 0.0, %v1000
    %v1002 = vpop.f32.mrf.mxu0
    %v1003 = vadd.f32 0.0, %v1002
    %1004 = vmatmul.bf16.gmra.mxu0 %v154
    %v1005 = vpop.f32.mrf.mxu0
    %v1006 = vadd.f32 0.0, %v1005
    %v1007 = vpop.f32.mrf.mxu0
    %v1008 = vadd.f32 0.0, %v1007
    %1009 = vmatmul.bf16.gmra.mxu0 %v156
    %v1010 = vpop.f32.mrf.mxu0
    %v1011 = vadd.f32 0.0, %v1010
    %v1012 = vpop.f32.mrf.mxu0
    %v1013 = vadd.f32 0.0, %v1012
    %1014 = vdwg.mxu0
    %1015 = vmatpush.bf16.msra.mxu0 %v790
    %1016 = vmatpush.bf16.msra.mxu0 %v782
    %1017 = vmatpush.bf16.msra.mxu0 %v774
    %1018 = vmatpush.bf16.msra.mxu0 %v766
    %1019 = vmatpush.bf16.msra.mxu0 %v758
    %1020 = vmatpush.bf16.msra.mxu0 %v750
    %1021 = vmatpush.bf16.msra.mxu0 %v742
    %1022 = vmatpush.bf16.msra.mxu0 %v734
    %1023 = vmatmul.bf16.gmra.mxu0 %v127
    %v1024 = vpop.f32.mrf.mxu0
    %v1025 = vadd.f32 %v936, %v1024
    %v1026 = vpop.f32.mrf.mxu0
    %v1027 = vadd.f32 %v938, %v1026
    %1028 = vmatmul.bf16.gmra.mxu0 %v129
    %v1029 = vpop.f32.mrf.mxu0
    %v1030 = vadd.f32 %v941, %v1029
    %v1031 = vpop.f32.mrf.mxu0
    %v1032 = vadd.f32 %v943, %v1031
    %1033 = vmatmul.bf16.gmra.mxu0 %v131
    %v1034 = vpop.f32.mrf.mxu0
    %v1035 = vadd.f32 %v946, %v1034
    %v1036 = vpop.f32.mrf.mxu0
    %v1037 = vadd.f32 %v948, %v1036
    %1038 = vmatmul.bf16.gmra.mxu0 %v133
    %v1039 = vpop.f32.mrf.mxu0
    %v1040 = vadd.f32 %v951, %v1039
    %v1041 = vpop.f32.mrf.mxu0
    %v1042 = vadd.f32 %v953, %v1041
    %1043 = vmatmul.bf16.gmra.mxu0 %v135
    %v1044 = vpop.f32.mrf.mxu0
    %v1045 = vadd.f32 %v956, %v1044
    %v1046 = vpop.f32.mrf.mxu0
    %v1047 = vadd.f32 %v958, %v1046
    %1048 = vmatmul.bf16.gmra.mxu0 %v137
    %v1049 = vpop.f32.mrf.mxu0
    %v1050 = vadd.f32 %v961, %v1049
    %v1051 = vpop.f32.mrf.mxu0
    %v1052 = vadd.f32 %v963, %v1051
    %1053 = vmatmul.bf16.gmra.mxu0 %v139
    %v1054 = vpop.f32.mrf.mxu0
    %v1055 = vadd.f32 %v966, %v1054
    %v1056 = vpop.f32.mrf.mxu0
    %v1057 = vadd.f32 %v968, %v1056
    %1058 = vmatmul.bf16.gmra.mxu0 %v141
    %v1059 = vpop.f32.mrf.mxu0
    %v1060 = vadd.f32 %v971, %v1059
    %v1061 = vpop.f32.mrf.mxu0
    %v1062 = vadd.f32 %v973, %v1061
    %1063 = vmatmul.bf16.gmra.mxu0 %v143
    %v1064 = vpop.f32.mrf.mxu0
    %v1065 = vadd.f32 %v976, %v1064
    %v1066 = vpop.f32.mrf.mxu0
    %v1067 = vadd.f32 %v978, %v1066
    %1068 = vmatmul.bf16.gmra.mxu0 %v145
    %v1069 = vpop.f32.mrf.mxu0
    %v1070 = vadd.f32 %v981, %v1069
    %v1071 = vpop.f32.mrf.mxu0
    %v1072 = vadd.f32 %v983, %v1071
    %1073 = vmatmul.bf16.gmra.mxu0 %v147
    %v1074 = vpop.f32.mrf.mxu0
    %v1075 = vadd.f32 %v986, %v1074
    %v1076 = vpop.f32.mrf.mxu0
    %v1077 = vadd.f32 %v988, %v1076
    %1078 = vmatmul.bf16.gmra.mxu0 %v149
    %v1079 = vpop.f32.mrf.mxu0
    %v1080 = vadd.f32 %v991, %v1079
    %v1081 = vpop.f32.mrf.mxu0
    %v1082 = vadd.f32 %v993, %v1081
    %1083 = vmatmul.bf16.gmra.mxu0 %v151
    %v1084 = vpop.f32.mrf.mxu0
    %v1085 = vadd.f32 %v996, %v1084
    %v1086 = vpop.f32.mrf.mxu0
    %v1087 = vadd.f32 %v998, %v1086
    %1088 = vmatmul.bf16.gmra.mxu0 %v153
    %v1089 = vpop.f32.mrf.mxu0
    %v1090 = vadd.f32 %v1001, %v1089
    %v1091 = vpop.f32.mrf.mxu0
    %v1092 = vadd.f32 %v1003, %v1091
    %1093 = vmatmul.bf16.gmra.mxu0 %v155
    %v1094 = vpop.f32.mrf.mxu0
    %v1095 = vadd.f32 %v1006, %v1094
    %v1096 = vpop.f32.mrf.mxu0
    %v1097 = vadd.f32 %v1008, %v1096
    %1098 = vmatmul.bf16.gmra.mxu0 %v157
    %v1099 = vpop.f32.mrf.mxu0
    %v1100 = vadd.f32 %v1011, %v1099
    %v1101 = vpop.f32.mrf.mxu0
    %v1102 = vadd.f32 %v1013, %v1101
    %1103 = vdwg.mxu0
    %1104 = vmatpush.bf16.msra.mxu0 %v727
    %1105 = vmatpush.bf16.msra.mxu0 %v719
    %1106 = vmatpush.bf16.msra.mxu0 %v711
    %1107 = vmatpush.bf16.msra.mxu0 %v703
    %1108 = vmatpush.bf16.msra.mxu0 %v695
    %1109 = vmatpush.bf16.msra.mxu0 %v687
    %1110 = vmatpush.bf16.msra.mxu0 %v679
    %1111 = vmatpush.bf16.msra.mxu0 %v671
    %1112 = vmatmul.bf16.gmra.mxu0 %v126
    %v1113 = vpop.f32.mrf.mxu0
    %v1114 = vadd.f32 0.0, %v1113
    %v1115 = vpop.f32.mrf.mxu0
    %v1116 = vadd.f32 0.0, %v1115
    %1117 = vmatmul.bf16.gmra.mxu0 %v128
    %v1118 = vpop.f32.mrf.mxu0
    %v1119 = vadd.f32 0.0, %v1118
    %v1120 = vpop.f32.mrf.mxu0
    %v1121 = vadd.f32 0.0, %v1120
    %1122 = vmatmul.bf16.gmra.mxu0 %v130
    %v1123 = vpop.f32.mrf.mxu0
    %v1124 = vadd.f32 0.0, %v1123
    %v1125 = vpop.f32.mrf.mxu0
    %v1126 = vadd.f32 0.0, %v1125
    %1127 = vmatmul.bf16.gmra.mxu0 %v132
    %v1128 = vpop.f32.mrf.mxu0
    %v1129 = vadd.f32 0.0, %v1128
    %v1130 = vpop.f32.mrf.mxu0
    %v1131 = vadd.f32 0.0, %v1130
    %1132 = vmatmul.bf16.gmra.mxu0 %v134
    %v1133 = vpop.f32.mrf.mxu0
    %v1134 = vadd.f32 0.0, %v1133
    %v1135 = vpop.f32.mrf.mxu0
    %v1136 = vadd.f32 0.0, %v1135
    %1137 = vmatmul.bf16.gmra.mxu0 %v136
    %v1138 = vpop.f32.mrf.mxu0
    %v1139 = vadd.f32 0.0, %v1138
    %v1140 = vpop.f32.mrf.mxu0
    %v1141 = vadd.f32 0.0, %v1140
    %1142 = vmatmul.bf16.gmra.mxu0 %v138
    %v1143 = vpop.f32.mrf.mxu0
    %v1144 = vadd.f32 0.0, %v1143
    %v1145 = vpop.f32.mrf.mxu0
    %v1146 = vadd.f32 0.0, %v1145
    %1147 = vmatmul.bf16.gmra.mxu0 %v140
    %v1148 = vpop.f32.mrf.mxu0
    %v1149 = vadd.f32 0.0, %v1148
    %v1150 = vpop.f32.mrf.mxu0
    %v1151 = vadd.f32 0.0, %v1150
    %1152 = vmatmul.bf16.gmra.mxu0 %v142
    %v1153 = vpop.f32.mrf.mxu0
    %v1154 = vadd.f32 0.0, %v1153
    %v1155 = vpop.f32.mrf.mxu0
    %v1156 = vadd.f32 0.0, %v1155
    %1157 = vmatmul.bf16.gmra.mxu0 %v144
    %v1158 = vpop.f32.mrf.mxu0
    %v1159 = vadd.f32 0.0, %v1158
    %v1160 = vpop.f32.mrf.mxu0
    %v1161 = vadd.f32 0.0, %v1160
    %1162 = vmatmul.bf16.gmra.mxu0 %v146
    %v1163 = vpop.f32.mrf.mxu0
    %v1164 = vadd.f32 0.0, %v1163
    %v1165 = vpop.f32.mrf.mxu0
    %v1166 = vadd.f32 0.0, %v1165
    %1167 = vmatmul.bf16.gmra.mxu0 %v148
    %v1168 = vpop.f32.mrf.mxu0
    %v1169 = vadd.f32 0.0, %v1168
    %v1170 = vpop.f32.mrf.mxu0
    %v1171 = vadd.f32 0.0, %v1170
    %1172 = vmatmul.bf16.gmra.mxu0 %v150
    %v1173 = vpop.f32.mrf.mxu0
    %v1174 = vadd.f32 0.0, %v1173
    %v1175 = vpop.f32.mrf.mxu0
    %v1176 = vadd.f32 0.0, %v1175
    %1177 = vmatmul.bf16.gmra.mxu0 %v152
    %v1178 = vpop.f32.mrf.mxu0
    %v1179 = vadd.f32 0.0, %v1178
    %v1180 = vpop.f32.mrf.mxu0
    %v1181 = vadd.f32 0.0, %v1180
    %1182 = vmatmul.bf16.gmra.mxu0 %v154
    %v1183 = vpop.f32.mrf.mxu0
    %v1184 = vadd.f32 0.0, %v1183
    %v1185 = vpop.f32.mrf.mxu0
    %v1186 = vadd.f32 0.0, %v1185
    %1187 = vmatmul.bf16.gmra.mxu0 %v156
    %v1188 = vpop.f32.mrf.mxu0
    %v1189 = vadd.f32 0.0, %v1188
    %v1190 = vpop.f32.mrf.mxu0
    %v1191 = vadd.f32 0.0, %v1190
    %1192 = vdwg.mxu0
    %1193 = vmatpush.bf16.msra.mxu0 %v791
    %1194 = vmatpush.bf16.msra.mxu0 %v783
    %1195 = vmatpush.bf16.msra.mxu0 %v775
    %1196 = vmatpush.bf16.msra.mxu0 %v767
    %1197 = vmatpush.bf16.msra.mxu0 %v759
    %1198 = vmatpush.bf16.msra.mxu0 %v751
    %1199 = vmatpush.bf16.msra.mxu0 %v743
    %1200 = vmatpush.bf16.msra.mxu0 %v735
    %1201 = vmatmul.bf16.gmra.mxu0 %v127
    %v1202 = vpop.f32.mrf.mxu0
    %v1203 = vadd.f32 %v1114, %v1202
    %v1204 = vpop.f32.mrf.mxu0
    %v1205 = vadd.f32 %v1116, %v1204
    %1206 = vmatmul.bf16.gmra.mxu0 %v129
    %v1207 = vpop.f32.mrf.mxu0
    %v1208 = vadd.f32 %v1119, %v1207
    %v1209 = vpop.f32.mrf.mxu0
    %v1210 = vadd.f32 %v1121, %v1209
    %1211 = vmatmul.bf16.gmra.mxu0 %v131
    %v1212 = vpop.f32.mrf.mxu0
    %v1213 = vadd.f32 %v1124, %v1212
    %v1214 = vpop.f32.mrf.mxu0
    %v1215 = vadd.f32 %v1126, %v1214
    %1216 = vmatmul.bf16.gmra.mxu0 %v133
    %v1217 = vpop.f32.mrf.mxu0
    %v1218 = vadd.f32 %v1129, %v1217
    %v1219 = vpop.f32.mrf.mxu0
    %v1220 = vadd.f32 %v1131, %v1219
    %1221 = vmatmul.bf16.gmra.mxu0 %v135
    %v1222 = vpop.f32.mrf.mxu0
    %v1223 = vadd.f32 %v1134, %v1222
    %v1224 = vpop.f32.mrf.mxu0
    %v1225 = vadd.f32 %v1136, %v1224
    %1226 = vmatmul.bf16.gmra.mxu0 %v137
    %v1227 = vpop.f32.mrf.mxu0
    %v1228 = vadd.f32 %v1139, %v1227
    %v1229 = vpop.f32.mrf.mxu0
    %v1230 = vadd.f32 %v1141, %v1229
    %1231 = vmatmul.bf16.gmra.mxu0 %v139
    %v1232 = vpop.f32.mrf.mxu0
    %v1233 = vadd.f32 %v1144, %v1232
    %v1234 = vpop.f32.mrf.mxu0
    %v1235 = vadd.f32 %v1146, %v1234
    %1236 = vmatmul.bf16.gmra.mxu0 %v141
    %v1237 = vpop.f32.mrf.mxu0
    %v1238 = vadd.f32 %v1149, %v1237
    %v1239 = vpop.f32.mrf.mxu0
    %v1240 = vadd.f32 %v1151, %v1239
    %1241 = vmatmul.bf16.gmra.mxu0 %v143
    %v1242 = vpop.f32.mrf.mxu0
    %v1243 = vadd.f32 %v1154, %v1242
    %v1244 = vpop.f32.mrf.mxu0
    %v1245 = vadd.f32 %v1156, %v1244
    %1246 = vmatmul.bf16.gmra.mxu0 %v145
    %v1247 = vpop.f32.mrf.mxu0
    %v1248 = vadd.f32 %v1159, %v1247
    %v1249 = vpop.f32.mrf.mxu0
    %v1250 = vadd.f32 %v1161, %v1249
    %1251 = vmatmul.bf16.gmra.mxu0 %v147
    %v1252 = vpop.f32.mrf.mxu0
    %v1253 = vadd.f32 %v1164, %v1252
    %v1254 = vpop.f32.mrf.mxu0
    %v1255 = vadd.f32 %v1166, %v1254
    %1256 = vmatmul.bf16.gmra.mxu0 %v149
    %v1257 = vpop.f32.mrf.mxu0
    %v1258 = vadd.f32 %v1169, %v1257
    %v1259 = vpop.f32.mrf.mxu0
    %v1260 = vadd.f32 %v1171, %v1259
    %1261 = vmatmul.bf16.gmra.mxu0 %v151
    %v1262 = vpop.f32.mrf.mxu0
    %v1263 = vadd.f32 %v1174, %v1262
    %v1264 = vpop.f32.mrf.mxu0
    %v1265 = vadd.f32 %v1176, %v1264
    %1266 = vmatmul.bf16.gmra.mxu0 %v153
    %v1267 = vpop.f32.mrf.mxu0
    %v1268 = vadd.f32 %v1179, %v1267
    %v1269 = vpop.f32.mrf.mxu0
    %v1270 = vadd.f32 %v1181, %v1269
    %1271 = vmatmul.bf16.gmra.mxu0 %v155
    %v1272 = vpop.f32.mrf.mxu0
    %v1273 = vadd.f32 %v1184, %v1272
    %v1274 = vpop.f32.mrf.mxu0
    %v1275 = vadd.f32 %v1186, %v1274
    %1276 = vmatmul.bf16.gmra.mxu0 %v157
    %v1277 = vpop.f32.mrf.mxu0
    %v1278 = vadd.f32 %v1189, %v1277
    %v1279 = vpop.f32.mrf.mxu0
    %v1280 = vadd.f32 %v1191, %v1279
    %1281 = vdwg.mxu0
    %1282 = vmatpush.bf16.msra.mxu0 %v728
    %1283 = vmatpush.bf16.msra.mxu0 %v720
    %1284 = vmatpush.bf16.msra.mxu0 %v712
    %1285 = vmatpush.bf16.msra.mxu0 %v704
    %1286 = vmatpush.bf16.msra.mxu0 %v696
    %1287 = vmatpush.bf16.msra.mxu0 %v688
    %1288 = vmatpush.bf16.msra.mxu0 %v680
    %1289 = vmatpush.bf16.msra.mxu0 %v672
    %1290 = vmatmul.bf16.gmra.mxu0 %v126
    %v1291 = vpop.f32.mrf.mxu0
    %v1292 = vadd.f32 0.0, %v1291
    %v1293 = vpop.f32.mrf.mxu0
    %v1294 = vadd.f32 0.0, %v1293
    %1295 = vmatmul.bf16.gmra.mxu0 %v128
    %v1296 = vpop.f32.mrf.mxu0
    %v1297 = vadd.f32 0.0, %v1296
    %v1298 = vpop.f32.mrf.mxu0
    %v1299 = vadd.f32 0.0, %v1298
    %1300 = vmatmul.bf16.gmra.mxu0 %v130
    %v1301 = vpop.f32.mrf.mxu0
    %v1302 = vadd.f32 0.0, %v1301
    %v1303 = vpop.f32.mrf.mxu0
    %v1304 = vadd.f32 0.0, %v1303
    %1305 = vmatmul.bf16.gmra.mxu0 %v132
    %v1306 = vpop.f32.mrf.mxu0
    %v1307 = vadd.f32 0.0, %v1306
    %v1308 = vpop.f32.mrf.mxu0
    %v1309 = vadd.f32 0.0, %v1308
    %1310 = vmatmul.bf16.gmra.mxu0 %v134
    %v1311 = vpop.f32.mrf.mxu0
    %v1312 = vadd.f32 0.0, %v1311
    %v1313 = vpop.f32.mrf.mxu0
    %v1314 = vadd.f32 0.0, %v1313
    %1315 = vmatmul.bf16.gmra.mxu0 %v136
    %v1316 = vpop.f32.mrf.mxu0
    %v1317 = vadd.f32 0.0, %v1316
    %v1318 = vpop.f32.mrf.mxu0
    %v1319 = vadd.f32 0.0, %v1318
    %1320 = vmatmul.bf16.gmra.mxu0 %v138
    %v1321 = vpop.f32.mrf.mxu0
    %v1322 = vadd.f32 0.0, %v1321
    %v1323 = vpop.f32.mrf.mxu0
    %v1324 = vadd.f32 0.0, %v1323
    %1325 = vmatmul.bf16.gmra.mxu0 %v140
    %v1326 = vpop.f32.mrf.mxu0
    %v1327 = vadd.f32 0.0, %v1326
    %v1328 = vpop.f32.mrf.mxu0
    %v1329 = vadd.f32 0.0, %v1328
    %1330 = vmatmul.bf16.gmra.mxu0 %v142
    %v1331 = vpop.f32.mrf.mxu0
    %v1332 = vadd.f32 0.0, %v1331
    %v1333 = vpop.f32.mrf.mxu0
    %v1334 = vadd.f32 0.0, %v1333
    %1335 = vmatmul.bf16.gmra.mxu0 %v144
    %v1336 = vpop.f32.mrf.mxu0
    %v1337 = vadd.f32 0.0, %v1336
    %v1338 = vpop.f32.mrf.mxu0
    %v1339 = vadd.f32 0.0, %v1338
    %1340 = vmatmul.bf16.gmra.mxu0 %v146
    %v1341 = vpop.f32.mrf.mxu0
    %v1342 = vadd.f32 0.0, %v1341
    %v1343 = vpop.f32.mrf.mxu0
    %v1344 = vadd.f32 0.0, %v1343
    %1345 = vmatmul.bf16.gmra.mxu0 %v148
    %v1346 = vpop.f32.mrf.mxu0
    %v1347 = vadd.f32 0.0, %v1346
    %v1348 = vpop.f32.mrf.mxu0
    %v1349 = vadd.f32 0.0, %v1348
    %1350 = vmatmul.bf16.gmra.mxu0 %v150
    %v1351 = vpop.f32.mrf.mxu0
    %v1352 = vadd.f32 0.0, %v1351
    %v1353 = vpop.f32.mrf.mxu0
    %v1354 = vadd.f32 0.0, %v1353
    %1355 = vmatmul.bf16.gmra.mxu0 %v152
    %v1356 = vpop.f32.mrf.mxu0
    %v1357 = vadd.f32 0.0, %v1356
    %v1358 = vpop.f32.mrf.mxu0
    %v1359 = vadd.f32 0.0, %v1358
    %1360 = vmatmul.bf16.gmra.mxu0 %v154
    %v1361 = vpop.f32.mrf.mxu0
    %v1362 = vadd.f32 0.0, %v1361
    %v1363 = vpop.f32.mrf.mxu0
    %v1364 = vadd.f32 0.0, %v1363
    %1365 = vmatmul.bf16.gmra.mxu0 %v156
    %v1366 = vpop.f32.mrf.mxu0
    %v1367 = vadd.f32 0.0, %v1366
    %v1368 = vpop.f32.mrf.mxu0
    %v1369 = vadd.f32 0.0, %v1368
    %1370 = vdwg.mxu0
    %1371 = vmatpush.bf16.msra.mxu0 %v792
    %1372 = vmatpush.bf16.msra.mxu0 %v784
    %1373 = vmatpush.bf16.msra.mxu0 %v776
    %1374 = vmatpush.bf16.msra.mxu0 %v768
    %1375 = vmatpush.bf16.msra.mxu0 %v760
    %1376 = vmatpush.bf16.msra.mxu0 %v752
    %1377 = vmatpush.bf16.msra.mxu0 %v744
    %1378 = vmatpush.bf16.msra.mxu0 %v736
    %1379 = vmatmul.bf16.gmra.mxu0 %v127
    %v1380 = vpop.f32.mrf.mxu0
    %v1381 = vadd.f32 %v1292, %v1380
    %v1382 = vpop.f32.mrf.mxu0
    %v1383 = vadd.f32 %v1294, %v1382
    %1384 = vmatmul.bf16.gmra.mxu0 %v129
    %v1385 = vpop.f32.mrf.mxu0
    %v1386 = vadd.f32 %v1297, %v1385
    %v1387 = vpop.f32.mrf.mxu0
    %v1388 = vadd.f32 %v1299, %v1387
    %1389 = vmatmul.bf16.gmra.mxu0 %v131
    %v1390 = vpop.f32.mrf.mxu0
    %v1391 = vadd.f32 %v1302, %v1390
    %v1392 = vpop.f32.mrf.mxu0
    %v1393 = vadd.f32 %v1304, %v1392
    %1394 = vmatmul.bf16.gmra.mxu0 %v133
    %v1395 = vpop.f32.mrf.mxu0
    %v1396 = vadd.f32 %v1307, %v1395
    %v1397 = vpop.f32.mrf.mxu0
    %v1398 = vadd.f32 %v1309, %v1397
    %1399 = vmatmul.bf16.gmra.mxu0 %v135
    %v1400 = vpop.f32.mrf.mxu0
    %v1401 = vadd.f32 %v1312, %v1400
    %v1402 = vpop.f32.mrf.mxu0
    %v1403 = vadd.f32 %v1314, %v1402
    %1404 = vmatmul.bf16.gmra.mxu0 %v137
    %v1405 = vpop.f32.mrf.mxu0
    %v1406 = vadd.f32 %v1317, %v1405
    %v1407 = vpop.f32.mrf.mxu0
    %v1408 = vadd.f32 %v1319, %v1407
    %1409 = vmatmul.bf16.gmra.mxu0 %v139
    %v1410 = vpop.f32.mrf.mxu0
    %v1411 = vadd.f32 %v1322, %v1410
    %v1412 = vpop.f32.mrf.mxu0
    %v1413 = vadd.f32 %v1324, %v1412
    %1414 = vmatmul.bf16.gmra.mxu0 %v141
    %v1415 = vpop.f32.mrf.mxu0
    %v1416 = vadd.f32 %v1327, %v1415
    %v1417 = vpop.f32.mrf.mxu0
    %v1418 = vadd.f32 %v1329, %v1417
    %1419 = vmatmul.bf16.gmra.mxu0 %v143
    %v1420 = vpop.f32.mrf.mxu0
    %v1421 = vadd.f32 %v1332, %v1420
    %v1422 = vpop.f32.mrf.mxu0
    %v1423 = vadd.f32 %v1334, %v1422
    %1424 = vmatmul.bf16.gmra.mxu0 %v145
    %v1425 = vpop.f32.mrf.mxu0
    %v1426 = vadd.f32 %v1337, %v1425
    %v1427 = vpop.f32.mrf.mxu0
    %v1428 = vadd.f32 %v1339, %v1427
    %1429 = vmatmul.bf16.gmra.mxu0 %v147
    %v1430 = vpop.f32.mrf.mxu0
    %v1431 = vadd.f32 %v1342, %v1430
    %v1432 = vpop.f32.mrf.mxu0
    %v1433 = vadd.f32 %v1344, %v1432
    %1434 = vmatmul.bf16.gmra.mxu0 %v149
    %v1435 = vpop.f32.mrf.mxu0
    %v1436 = vadd.f32 %v1347, %v1435
    %v1437 = vpop.f32.mrf.mxu0
    %v1438 = vadd.f32 %v1349, %v1437
    %1439 = vmatmul.bf16.gmra.mxu0 %v151
    %v1440 = vpop.f32.mrf.mxu0
    %v1441 = vadd.f32 %v1352, %v1440
    %v1442 = vpop.f32.mrf.mxu0
    %v1443 = vadd.f32 %v1354, %v1442
    %1444 = vmatmul.bf16.gmra.mxu0 %v153
    %v1445 = vpop.f32.mrf.mxu0
    %v1446 = vadd.f32 %v1357, %v1445
    %v1447 = vpop.f32.mrf.mxu0
    %v1448 = vadd.f32 %v1359, %v1447
    %1449 = vmatmul.bf16.gmra.mxu0 %v155
    %v1450 = vpop.f32.mrf.mxu0
    %v1451 = vadd.f32 %v1362, %v1450
    %v1452 = vpop.f32.mrf.mxu0
    %v1453 = vadd.f32 %v1364, %v1452
    %1454 = vmatmul.bf16.gmra.mxu0 %v157
    %v1455 = vpop.f32.mrf.mxu0
    %v1456 = vadd.f32 %v1367, %v1455
    %v1457 = vpop.f32.mrf.mxu0
    %v1458 = vadd.f32 %v1369, %v1457
    %1459 = vdwg.mxu0
    %1460 = vmatpush.bf16.msra.mxu0 %v729
    %1461 = vmatpush.bf16.msra.mxu0 %v721
    %1462 = vmatpush.bf16.msra.mxu0 %v713
    %1463 = vmatpush.bf16.msra.mxu0 %v705
    %1464 = vmatpush.bf16.msra.mxu0 %v697
    %1465 = vmatpush.bf16.msra.mxu0 %v689
    %1466 = vmatpush.bf16.msra.mxu0 %v681
    %1467 = vmatpush.bf16.msra.mxu0 %v673
    %1468 = vmatmul.bf16.gmra.mxu0 %v126
    %v1469 = vpop.f32.mrf.mxu0
    %v1470 = vadd.f32 0.0, %v1469
    %v1471 = vpop.f32.mrf.mxu0
    %v1472 = vadd.f32 0.0, %v1471
    %1473 = vmatmul.bf16.gmra.mxu0 %v128
    %v1474 = vpop.f32.mrf.mxu0
    %v1475 = vadd.f32 0.0, %v1474
    %v1476 = vpop.f32.mrf.mxu0
    %v1477 = vadd.f32 0.0, %v1476
    %1478 = vmatmul.bf16.gmra.mxu0 %v130
    %v1479 = vpop.f32.mrf.mxu0
    %v1480 = vadd.f32 0.0, %v1479
    %v1481 = vpop.f32.mrf.mxu0
    %v1482 = vadd.f32 0.0, %v1481
    %1483 = vmatmul.bf16.gmra.mxu0 %v132
    %v1484 = vpop.f32.mrf.mxu0
    %v1485 = vadd.f32 0.0, %v1484
    %v1486 = vpop.f32.mrf.mxu0
    %v1487 = vadd.f32 0.0, %v1486
    %1488 = vmatmul.bf16.gmra.mxu0 %v134
    %v1489 = vpop.f32.mrf.mxu0
    %v1490 = vadd.f32 0.0, %v1489
    %v1491 = vpop.f32.mrf.mxu0
    %v1492 = vadd.f32 0.0, %v1491
    %1493 = vmatmul.bf16.gmra.mxu0 %v136
    %v1494 = vpop.f32.mrf.mxu0
    %v1495 = vadd.f32 0.0, %v1494
    %v1496 = vpop.f32.mrf.mxu0
    %v1497 = vadd.f32 0.0, %v1496
    %1498 = vmatmul.bf16.gmra.mxu0 %v138
    %v1499 = vpop.f32.mrf.mxu0
    %v1500 = vadd.f32 0.0, %v1499
    %v1501 = vpop.f32.mrf.mxu0
    %v1502 = vadd.f32 0.0, %v1501
    %1503 = vmatmul.bf16.gmra.mxu0 %v140
    %v1504 = vpop.f32.mrf.mxu0
    %v1505 = vadd.f32 0.0, %v1504
    %v1506 = vpop.f32.mrf.mxu0
    %v1507 = vadd.f32 0.0, %v1506
    %1508 = vmatmul.bf16.gmra.mxu0 %v142
    %v1509 = vpop.f32.mrf.mxu0
    %v1510 = vadd.f32 0.0, %v1509
    %v1511 = vpop.f32.mrf.mxu0
    %v1512 = vadd.f32 0.0, %v1511
    %1513 = vmatmul.bf16.gmra.mxu0 %v144
    %v1514 = vpop.f32.mrf.mxu0
    %v1515 = vadd.f32 0.0, %v1514
    %v1516 = vpop.f32.mrf.mxu0
    %v1517 = vadd.f32 0.0, %v1516
    %1518 = vmatmul.bf16.gmra.mxu0 %v146
    %v1519 = vpop.f32.mrf.mxu0
    %v1520 = vadd.f32 0.0, %v1519
    %v1521 = vpop.f32.mrf.mxu0
    %v1522 = vadd.f32 0.0, %v1521
    %1523 = vmatmul.bf16.gmra.mxu0 %v148
    %v1524 = vpop.f32.mrf.mxu0
    %v1525 = vadd.f32 0.0, %v1524
    %v1526 = vpop.f32.mrf.mxu0
    %v1527 = vadd.f32 0.0, %v1526
    %1528 = vmatmul.bf16.gmra.mxu0 %v150
    %v1529 = vpop.f32.mrf.mxu0
    %v1530 = vadd.f32 0.0, %v1529
    %v1531 = vpop.f32.mrf.mxu0
    %v1532 = vadd.f32 0.0, %v1531
    %1533 = vmatmul.bf16.gmra.mxu0 %v152
    %v1534 = vpop.f32.mrf.mxu0
    %v1535 = vadd.f32 0.0, %v1534
    %v1536 = vpop.f32.mrf.mxu0
    %v1537 = vadd.f32 0.0, %v1536
    %1538 = vmatmul.bf16.gmra.mxu0 %v154
    %v1539 = vpop.f32.mrf.mxu0
    %v1540 = vadd.f32 0.0, %v1539
    %v1541 = vpop.f32.mrf.mxu0
    %v1542 = vadd.f32 0.0, %v1541
    %1543 = vmatmul.bf16.gmra.mxu0 %v156
    %v1544 = vpop.f32.mrf.mxu0
    %v1545 = vadd.f32 0.0, %v1544
    %v1546 = vpop.f32.mrf.mxu0
    %v1547 = vadd.f32 0.0, %v1546
    %1548 = vdwg.mxu0
    %1549 = vmatpush.bf16.msra.mxu0 %v793
    %1550 = vmatpush.bf16.msra.mxu0 %v785
    %1551 = vmatpush.bf16.msra.mxu0 %v777
    %1552 = vmatpush.bf16.msra.mxu0 %v769
    %1553 = vmatpush.bf16.msra.mxu0 %v761
    %1554 = vmatpush.bf16.msra.mxu0 %v753
    %1555 = vmatpush.bf16.msra.mxu0 %v745
    %1556 = vmatpush.bf16.msra.mxu0 %v737
    %1557 = vmatmul.bf16.gmra.mxu0 %v127
    %v1558 = vpop.f32.mrf.mxu0
    %v1559 = vadd.f32 %v1470, %v1558
    %v1560 = vpop.f32.mrf.mxu0
    %v1561 = vadd.f32 %v1472, %v1560
    %1562 = vmatmul.bf16.gmra.mxu0 %v129
    %v1563 = vpop.f32.mrf.mxu0
    %v1564 = vadd.f32 %v1475, %v1563
    %v1565 = vpop.f32.mrf.mxu0
    %v1566 = vadd.f32 %v1477, %v1565
    %1567 = vmatmul.bf16.gmra.mxu0 %v131
    %v1568 = vpop.f32.mrf.mxu0
    %v1569 = vadd.f32 %v1480, %v1568
    %v1570 = vpop.f32.mrf.mxu0
    %v1571 = vadd.f32 %v1482, %v1570
    %1572 = vmatmul.bf16.gmra.mxu0 %v133
    %v1573 = vpop.f32.mrf.mxu0
    %v1574 = vadd.f32 %v1485, %v1573
    %v1575 = vpop.f32.mrf.mxu0
    %v1576 = vadd.f32 %v1487, %v1575
    %1577 = vmatmul.bf16.gmra.mxu0 %v135
    %v1578 = vpop.f32.mrf.mxu0
    %v1579 = vadd.f32 %v1490, %v1578
    %v1580 = vpop.f32.mrf.mxu0
    %v1581 = vadd.f32 %v1492, %v1580
    %1582 = vmatmul.bf16.gmra.mxu0 %v137
    %v1583 = vpop.f32.mrf.mxu0
    %v1584 = vadd.f32 %v1495, %v1583
    %v1585 = vpop.f32.mrf.mxu0
    %v1586 = vadd.f32 %v1497, %v1585
    %1587 = vmatmul.bf16.gmra.mxu0 %v139
    %v1588 = vpop.f32.mrf.mxu0
    %v1589 = vadd.f32 %v1500, %v1588
    %v1590 = vpop.f32.mrf.mxu0
    %v1591 = vadd.f32 %v1502, %v1590
    %1592 = vmatmul.bf16.gmra.mxu0 %v141
    %v1593 = vpop.f32.mrf.mxu0
    %v1594 = vadd.f32 %v1505, %v1593
    %v1595 = vpop.f32.mrf.mxu0
    %v1596 = vadd.f32 %v1507, %v1595
    %1597 = vmatmul.bf16.gmra.mxu0 %v143
    %v1598 = vpop.f32.mrf.mxu0
    %v1599 = vadd.f32 %v1510, %v1598
    %v1600 = vpop.f32.mrf.mxu0
    %v1601 = vadd.f32 %v1512, %v1600
    %1602 = vmatmul.bf16.gmra.mxu0 %v145
    %v1603 = vpop.f32.mrf.mxu0
    %v1604 = vadd.f32 %v1515, %v1603
    %v1605 = vpop.f32.mrf.mxu0
    %v1606 = vadd.f32 %v1517, %v1605
    %1607 = vmatmul.bf16.gmra.mxu0 %v147
    %v1608 = vpop.f32.mrf.mxu0
    %v1609 = vadd.f32 %v1520, %v1608
    %v1610 = vpop.f32.mrf.mxu0
    %v1611 = vadd.f32 %v1522, %v1610
    %1612 = vmatmul.bf16.gmra.mxu0 %v149
    %v1613 = vpop.f32.mrf.mxu0
    %v1614 = vadd.f32 %v1525, %v1613
    %v1615 = vpop.f32.mrf.mxu0
    %v1616 = vadd.f32 %v1527, %v1615
    %1617 = vmatmul.bf16.gmra.mxu0 %v151
    %v1618 = vpop.f32.mrf.mxu0
    %v1619 = vadd.f32 %v1530, %v1618
    %v1620 = vpop.f32.mrf.mxu0
    %v1621 = vadd.f32 %v1532, %v1620
    %1622 = vmatmul.bf16.gmra.mxu0 %v153
    %v1623 = vpop.f32.mrf.mxu0
    %v1624 = vadd.f32 %v1535, %v1623
    %v1625 = vpop.f32.mrf.mxu0
    %v1626 = vadd.f32 %v1537, %v1625
    %1627 = vmatmul.bf16.gmra.mxu0 %v155
    %v1628 = vpop.f32.mrf.mxu0
    %v1629 = vadd.f32 %v1540, %v1628
    %v1630 = vpop.f32.mrf.mxu0
    %v1631 = vadd.f32 %v1542, %v1630
    %1632 = vmatmul.bf16.gmra.mxu0 %v157
    %v1633 = vpop.f32.mrf.mxu0
    %v1634 = vadd.f32 %v1545, %v1633
    %v1635 = vpop.f32.mrf.mxu0
    %v1636 = vadd.f32 %v1547, %v1635
    %1637 = vdwg.mxu0
    %1638 = vmatpush.bf16.msra.mxu0 %v730
    %1639 = vmatpush.bf16.msra.mxu0 %v722
    %1640 = vmatpush.bf16.msra.mxu0 %v714
    %1641 = vmatpush.bf16.msra.mxu0 %v706
    %1642 = vmatpush.bf16.msra.mxu0 %v698
    %1643 = vmatpush.bf16.msra.mxu0 %v690
    %1644 = vmatpush.bf16.msra.mxu0 %v682
    %1645 = vmatpush.bf16.msra.mxu0 %v674
    %1646 = vmatmul.bf16.gmra.mxu0 %v126
    %v1647 = vpop.f32.mrf.mxu0
    %v1648 = vadd.f32 0.0, %v1647
    %v1649 = vpop.f32.mrf.mxu0
    %v1650 = vadd.f32 0.0, %v1649
    %1651 = vmatmul.bf16.gmra.mxu0 %v128
    %v1652 = vpop.f32.mrf.mxu0
    %v1653 = vadd.f32 0.0, %v1652
    %v1654 = vpop.f32.mrf.mxu0
    %v1655 = vadd.f32 0.0, %v1654
    %1656 = vmatmul.bf16.gmra.mxu0 %v130
    %v1657 = vpop.f32.mrf.mxu0
    %v1658 = vadd.f32 0.0, %v1657
    %v1659 = vpop.f32.mrf.mxu0
    %v1660 = vadd.f32 0.0, %v1659
    %1661 = vmatmul.bf16.gmra.mxu0 %v132
    %v1662 = vpop.f32.mrf.mxu0
    %v1663 = vadd.f32 0.0, %v1662
    %v1664 = vpop.f32.mrf.mxu0
    %v1665 = vadd.f32 0.0, %v1664
    %1666 = vmatmul.bf16.gmra.mxu0 %v134
    %v1667 = vpop.f32.mrf.mxu0
    %v1668 = vadd.f32 0.0, %v1667
    %v1669 = vpop.f32.mrf.mxu0
    %v1670 = vadd.f32 0.0, %v1669
    %1671 = vmatmul.bf16.gmra.mxu0 %v136
    %v1672 = vpop.f32.mrf.mxu0
    %v1673 = vadd.f32 0.0, %v1672
    %v1674 = vpop.f32.mrf.mxu0
    %v1675 = vadd.f32 0.0, %v1674
    %1676 = vmatmul.bf16.gmra.mxu0 %v138
    %v1677 = vpop.f32.mrf.mxu0
    %v1678 = vadd.f32 0.0, %v1677
    %v1679 = vpop.f32.mrf.mxu0
    %v1680 = vadd.f32 0.0, %v1679
    %1681 = vmatmul.bf16.gmra.mxu0 %v140
    %v1682 = vpop.f32.mrf.mxu0
    %v1683 = vadd.f32 0.0, %v1682
    %v1684 = vpop.f32.mrf.mxu0
    %v1685 = vadd.f32 0.0, %v1684
    %1686 = vmatmul.bf16.gmra.mxu0 %v142
    %v1687 = vpop.f32.mrf.mxu0
    %v1688 = vadd.f32 0.0, %v1687
    %v1689 = vpop.f32.mrf.mxu0
    %v1690 = vadd.f32 0.0, %v1689
    %1691 = vmatmul.bf16.gmra.mxu0 %v144
    %v1692 = vpop.f32.mrf.mxu0
    %v1693 = vadd.f32 0.0, %v1692
    %v1694 = vpop.f32.mrf.mxu0
    %v1695 = vadd.f32 0.0, %v1694
    %1696 = vmatmul.bf16.gmra.mxu0 %v146
    %v1697 = vpop.f32.mrf.mxu0
    %v1698 = vadd.f32 0.0, %v1697
    %v1699 = vpop.f32.mrf.mxu0
    %v1700 = vadd.f32 0.0, %v1699
    %1701 = vmatmul.bf16.gmra.mxu0 %v148
    %v1702 = vpop.f32.mrf.mxu0
    %v1703 = vadd.f32 0.0, %v1702
    %v1704 = vpop.f32.mrf.mxu0
    %v1705 = vadd.f32 0.0, %v1704
    %1706 = vmatmul.bf16.gmra.mxu0 %v150
    %v1707 = vpop.f32.mrf.mxu0
    %v1708 = vadd.f32 0.0, %v1707
    %v1709 = vpop.f32.mrf.mxu0
    %v1710 = vadd.f32 0.0, %v1709
    %1711 = vmatmul.bf16.gmra.mxu0 %v152
    %v1712 = vpop.f32.mrf.mxu0
    %v1713 = vadd.f32 0.0, %v1712
    %v1714 = vpop.f32.mrf.mxu0
    %v1715 = vadd.f32 0.0, %v1714
    %1716 = vmatmul.bf16.gmra.mxu0 %v154
    %v1717 = vpop.f32.mrf.mxu0
    %v1718 = vadd.f32 0.0, %v1717
    %v1719 = vpop.f32.mrf.mxu0
    %v1720 = vadd.f32 0.0, %v1719
    %1721 = vmatmul.bf16.gmra.mxu0 %v156
    %v1722 = vpop.f32.mrf.mxu0
    %v1723 = vadd.f32 0.0, %v1722
    %v1724 = vpop.f32.mrf.mxu0
    %v1725 = vadd.f32 0.0, %v1724
    %1726 = vdwg.mxu0
    %1727 = vmatpush.bf16.msra.mxu0 %v794
    %1728 = vmatpush.bf16.msra.mxu0 %v786
    %1729 = vmatpush.bf16.msra.mxu0 %v778
    %1730 = vmatpush.bf16.msra.mxu0 %v770
    %1731 = vmatpush.bf16.msra.mxu0 %v762
    %1732 = vmatpush.bf16.msra.mxu0 %v754
    %1733 = vmatpush.bf16.msra.mxu0 %v746
    %1734 = vmatpush.bf16.msra.mxu0 %v738
    %1735 = vmatmul.bf16.gmra.mxu0 %v127
    %v1736 = vpop.f32.mrf.mxu0
    %v1737 = vadd.f32 %v1648, %v1736
    %v1738 = vpop.f32.mrf.mxu0
    %v1739 = vadd.f32 %v1650, %v1738
    %1740 = vmatmul.bf16.gmra.mxu0 %v129
    %v1741 = vpop.f32.mrf.mxu0
    %v1742 = vadd.f32 %v1653, %v1741
    %v1743 = vpop.f32.mrf.mxu0
    %v1744 = vadd.f32 %v1655, %v1743
    %1745 = vmatmul.bf16.gmra.mxu0 %v131
    %v1746 = vpop.f32.mrf.mxu0
    %v1747 = vadd.f32 %v1658, %v1746
    %v1748 = vpop.f32.mrf.mxu0
    %v1749 = vadd.f32 %v1660, %v1748
    %1750 = vmatmul.bf16.gmra.mxu0 %v133
    %v1751 = vpop.f32.mrf.mxu0
    %v1752 = vadd.f32 %v1663, %v1751
    %v1753 = vpop.f32.mrf.mxu0
    %v1754 = vadd.f32 %v1665, %v1753
    %1755 = vmatmul.bf16.gmra.mxu0 %v135
    %v1756 = vpop.f32.mrf.mxu0
    %v1757 = vadd.f32 %v1668, %v1756
    %v1758 = vpop.f32.mrf.mxu0
    %v1759 = vadd.f32 %v1670, %v1758
    %1760 = vmatmul.bf16.gmra.mxu0 %v137
    %v1761 = vpop.f32.mrf.mxu0
    %v1762 = vadd.f32 %v1673, %v1761
    %v1763 = vpop.f32.mrf.mxu0
    %v1764 = vadd.f32 %v1675, %v1763
    %1765 = vmatmul.bf16.gmra.mxu0 %v139
    %v1766 = vpop.f32.mrf.mxu0
    %v1767 = vadd.f32 %v1678, %v1766
    %v1768 = vpop.f32.mrf.mxu0
    %v1769 = vadd.f32 %v1680, %v1768
    %1770 = vmatmul.bf16.gmra.mxu0 %v141
    %v1771 = vpop.f32.mrf.mxu0
    %v1772 = vadd.f32 %v1683, %v1771
    %v1773 = vpop.f32.mrf.mxu0
    %v1774 = vadd.f32 %v1685, %v1773
    %1775 = vmatmul.bf16.gmra.mxu0 %v143
    %v1776 = vpop.f32.mrf.mxu0
    %v1777 = vadd.f32 %v1688, %v1776
    %v1778 = vpop.f32.mrf.mxu0
    %v1779 = vadd.f32 %v1690, %v1778
    %1780 = vmatmul.bf16.gmra.mxu0 %v145
    %v1781 = vpop.f32.mrf.mxu0
    %v1782 = vadd.f32 %v1693, %v1781
    %v1783 = vpop.f32.mrf.mxu0
    %v1784 = vadd.f32 %v1695, %v1783
    %1785 = vmatmul.bf16.gmra.mxu0 %v147
    %v1786 = vpop.f32.mrf.mxu0
    %v1787 = vadd.f32 %v1698, %v1786
    %v1788 = vpop.f32.mrf.mxu0
    %v1789 = vadd.f32 %v1700, %v1788
    %1790 = vmatmul.bf16.gmra.mxu0 %v149
    %v1791 = vpop.f32.mrf.mxu0
    %v1792 = vadd.f32 %v1703, %v1791
    %v1793 = vpop.f32.mrf.mxu0
    %v1794 = vadd.f32 %v1705, %v1793
    %1795 = vmatmul.bf16.gmra.mxu0 %v151
    %v1796 = vpop.f32.mrf.mxu0
    %v1797 = vadd.f32 %v1708, %v1796
    %v1798 = vpop.f32.mrf.mxu0
    %v1799 = vadd.f32 %v1710, %v1798
    %1800 = vmatmul.bf16.gmra.mxu0 %v153
    %v1801 = vpop.f32.mrf.mxu0
    %v1802 = vadd.f32 %v1713, %v1801
    %v1803 = vpop.f32.mrf.mxu0
    %v1804 = vadd.f32 %v1715, %v1803
    %1805 = vmatmul.bf16.gmra.mxu0 %v155
    %v1806 = vpop.f32.mrf.mxu0
    %v1807 = vadd.f32 %v1718, %v1806
    %v1808 = vpop.f32.mrf.mxu0
    %v1809 = vadd.f32 %v1720, %v1808
    %1810 = vmatmul.bf16.gmra.mxu0 %v157
    %v1811 = vpop.f32.mrf.mxu0
    %v1812 = vadd.f32 %v1723, %v1811
    %v1813 = vpop.f32.mrf.mxu0
    %v1814 = vadd.f32 %v1725, %v1813
    %1815 = vdwg.mxu0
    %1816 = vmatpush.bf16.msra.mxu0 %v731
    %1817 = vmatpush.bf16.msra.mxu0 %v723
    %1818 = vmatpush.bf16.msra.mxu0 %v715
    %1819 = vmatpush.bf16.msra.mxu0 %v707
    %1820 = vmatpush.bf16.msra.mxu0 %v699
    %1821 = vmatpush.bf16.msra.mxu0 %v691
    %1822 = vmatpush.bf16.msra.mxu0 %v683
    %1823 = vmatpush.bf16.msra.mxu0 %v675
    %1824 = vmatmul.bf16.gmra.mxu0 %v126
    %v1825 = vpop.f32.mrf.mxu0
    %v1826 = vadd.f32 0.0, %v1825
    %v1827 = vpop.f32.mrf.mxu0
    %v1828 = vadd.f32 0.0, %v1827
    %1829 = vmatmul.bf16.gmra.mxu0 %v128
    %v1830 = vpop.f32.mrf.mxu0
    %v1831 = vadd.f32 0.0, %v1830
    %v1832 = vpop.f32.mrf.mxu0
    %v1833 = vadd.f32 0.0, %v1832
    %1834 = vmatmul.bf16.gmra.mxu0 %v130
    %v1835 = vpop.f32.mrf.mxu0
    %v1836 = vadd.f32 0.0, %v1835
    %v1837 = vpop.f32.mrf.mxu0
    %v1838 = vadd.f32 0.0, %v1837
    %1839 = vmatmul.bf16.gmra.mxu0 %v132
    %v1840 = vpop.f32.mrf.mxu0
    %v1841 = vadd.f32 0.0, %v1840
    %v1842 = vpop.f32.mrf.mxu0
    %v1843 = vadd.f32 0.0, %v1842
    %1844 = vmatmul.bf16.gmra.mxu0 %v134
    %v1845 = vpop.f32.mrf.mxu0
    %v1846 = vadd.f32 0.0, %v1845
    %v1847 = vpop.f32.mrf.mxu0
    %v1848 = vadd.f32 0.0, %v1847
    %1849 = vmatmul.bf16.gmra.mxu0 %v136
    %v1850 = vpop.f32.mrf.mxu0
    %v1851 = vadd.f32 0.0, %v1850
    %v1852 = vpop.f32.mrf.mxu0
    %v1853 = vadd.f32 0.0, %v1852
    %1854 = vmatmul.bf16.gmra.mxu0 %v138
    %v1855 = vpop.f32.mrf.mxu0
    %v1856 = vadd.f32 0.0, %v1855
    %v1857 = vpop.f32.mrf.mxu0
    %v1858 = vadd.f32 0.0, %v1857
    %1859 = vmatmul.bf16.gmra.mxu0 %v140
    %v1860 = vpop.f32.mrf.mxu0
    %v1861 = vadd.f32 0.0, %v1860
    %v1862 = vpop.f32.mrf.mxu0
    %v1863 = vadd.f32 0.0, %v1862
    %1864 = vmatmul.bf16.gmra.mxu0 %v142
    %v1865 = vpop.f32.mrf.mxu0
    %v1866 = vadd.f32 0.0, %v1865
    %v1867 = vpop.f32.mrf.mxu0
    %v1868 = vadd.f32 0.0, %v1867
    %1869 = vmatmul.bf16.gmra.mxu0 %v144
    %v1870 = vpop.f32.mrf.mxu0
    %v1871 = vadd.f32 0.0, %v1870
    %v1872 = vpop.f32.mrf.mxu0
    %v1873 = vadd.f32 0.0, %v1872
    %1874 = vmatmul.bf16.gmra.mxu0 %v146
    %v1875 = vpop.f32.mrf.mxu0
    %v1876 = vadd.f32 0.0, %v1875
    %v1877 = vpop.f32.mrf.mxu0
    %v1878 = vadd.f32 0.0, %v1877
    %1879 = vmatmul.bf16.gmra.mxu0 %v148
    %v1880 = vpop.f32.mrf.mxu0
    %v1881 = vadd.f32 0.0, %v1880
    %v1882 = vpop.f32.mrf.mxu0
    %v1883 = vadd.f32 0.0, %v1882
    %1884 = vmatmul.bf16.gmra.mxu0 %v150
    %v1885 = vpop.f32.mrf.mxu0
    %v1886 = vadd.f32 0.0, %v1885
    %v1887 = vpop.f32.mrf.mxu0
    %v1888 = vadd.f32 0.0, %v1887
    %1889 = vmatmul.bf16.gmra.mxu0 %v152
    %v1890 = vpop.f32.mrf.mxu0
    %v1891 = vadd.f32 0.0, %v1890
    %v1892 = vpop.f32.mrf.mxu0
    %v1893 = vadd.f32 0.0, %v1892
    %1894 = vmatmul.bf16.gmra.mxu0 %v154
    %v1895 = vpop.f32.mrf.mxu0
    %v1896 = vadd.f32 0.0, %v1895
    %v1897 = vpop.f32.mrf.mxu0
    %v1898 = vadd.f32 0.0, %v1897
    %1899 = vmatmul.bf16.gmra.mxu0 %v156
    %v1900 = vpop.f32.mrf.mxu0
    %v1901 = vadd.f32 0.0, %v1900
    %v1902 = vpop.f32.mrf.mxu0
    %v1903 = vadd.f32 0.0, %v1902
    %1904 = vdwg.mxu0
    %1905 = vmatpush.bf16.msra.mxu0 %v795
    %1906 = vmatpush.bf16.msra.mxu0 %v787
    %1907 = vmatpush.bf16.msra.mxu0 %v779
    %1908 = vmatpush.bf16.msra.mxu0 %v771
    %1909 = vmatpush.bf16.msra.mxu0 %v763
    %1910 = vmatpush.bf16.msra.mxu0 %v755
    %1911 = vmatpush.bf16.msra.mxu0 %v747
    %1912 = vmatpush.bf16.msra.mxu0 %v739
    %1913 = vmatmul.bf16.gmra.mxu0 %v127
    %v1914 = vpop.f32.mrf.mxu0
    %v1915 = vadd.f32 %v1826, %v1914
    %v1916 = vpop.f32.mrf.mxu0
    %v1917 = vadd.f32 %v1828, %v1916
    %1918 = vmatmul.bf16.gmra.mxu0 %v129
    %v1919 = vpop.f32.mrf.mxu0
    %v1920 = vadd.f32 %v1831, %v1919
    %v1921 = vpop.f32.mrf.mxu0
    %v1922 = vadd.f32 %v1833, %v1921
    %1923 = vmatmul.bf16.gmra.mxu0 %v131
    %v1924 = vpop.f32.mrf.mxu0
    %v1925 = vadd.f32 %v1836, %v1924
    %v1926 = vpop.f32.mrf.mxu0
    %v1927 = vadd.f32 %v1838, %v1926
    %1928 = vmatmul.bf16.gmra.mxu0 %v133
    %v1929 = vpop.f32.mrf.mxu0
    %v1930 = vadd.f32 %v1841, %v1929
    %v1931 = vpop.f32.mrf.mxu0
    %v1932 = vadd.f32 %v1843, %v1931
    %1933 = vmatmul.bf16.gmra.mxu0 %v135
    %v1934 = vpop.f32.mrf.mxu0
    %v1935 = vadd.f32 %v1846, %v1934
    %v1936 = vpop.f32.mrf.mxu0
    %v1937 = vadd.f32 %v1848, %v1936
    %1938 = vmatmul.bf16.gmra.mxu0 %v137
    %v1939 = vpop.f32.mrf.mxu0
    %v1940 = vadd.f32 %v1851, %v1939
    %v1941 = vpop.f32.mrf.mxu0
    %v1942 = vadd.f32 %v1853, %v1941
    %1943 = vmatmul.bf16.gmra.mxu0 %v139
    %v1944 = vpop.f32.mrf.mxu0
    %v1945 = vadd.f32 %v1856, %v1944
    %v1946 = vpop.f32.mrf.mxu0
    %v1947 = vadd.f32 %v1858, %v1946
    %1948 = vmatmul.bf16.gmra.mxu0 %v141
    %v1949 = vpop.f32.mrf.mxu0
    %v1950 = vadd.f32 %v1861, %v1949
    %v1951 = vpop.f32.mrf.mxu0
    %v1952 = vadd.f32 %v1863, %v1951
    %1953 = vmatmul.bf16.gmra.mxu0 %v143
    %v1954 = vpop.f32.mrf.mxu0
    %v1955 = vadd.f32 %v1866, %v1954
    %v1956 = vpop.f32.mrf.mxu0
    %v1957 = vadd.f32 %v1868, %v1956
    %1958 = vmatmul.bf16.gmra.mxu0 %v145
    %v1959 = vpop.f32.mrf.mxu0
    %v1960 = vadd.f32 %v1871, %v1959
    %v1961 = vpop.f32.mrf.mxu0
    %v1962 = vadd.f32 %v1873, %v1961
    %1963 = vmatmul.bf16.gmra.mxu0 %v147
    %v1964 = vpop.f32.mrf.mxu0
    %v1965 = vadd.f32 %v1876, %v1964
    %v1966 = vpop.f32.mrf.mxu0
    %v1967 = vadd.f32 %v1878, %v1966
    %1968 = vmatmul.bf16.gmra.mxu0 %v149
    %v1969 = vpop.f32.mrf.mxu0
    %v1970 = vadd.f32 %v1881, %v1969
    %v1971 = vpop.f32.mrf.mxu0
    %v1972 = vadd.f32 %v1883, %v1971
    %1973 = vmatmul.bf16.gmra.mxu0 %v151
    %v1974 = vpop.f32.mrf.mxu0
    %v1975 = vadd.f32 %v1886, %v1974
    %v1976 = vpop.f32.mrf.mxu0
    %v1977 = vadd.f32 %v1888, %v1976
    %1978 = vmatmul.bf16.gmra.mxu0 %v153
    %v1979 = vpop.f32.mrf.mxu0
    %v1980 = vadd.f32 %v1891, %v1979
    %v1981 = vpop.f32.mrf.mxu0
    %v1982 = vadd.f32 %v1893, %v1981
    %1983 = vmatmul.bf16.gmra.mxu0 %v155
    %v1984 = vpop.f32.mrf.mxu0
    %v1985 = vadd.f32 %v1896, %v1984
    %v1986 = vpop.f32.mrf.mxu0
    %v1987 = vadd.f32 %v1898, %v1986
    %1988 = vmatmul.bf16.gmra.mxu0 %v157
    %v1989 = vpop.f32.mrf.mxu0
    %v1990 = vadd.f32 %v1901, %v1989
    %v1991 = vpop.f32.mrf.mxu0
    %v1992 = vadd.f32 %v1903, %v1991
    %1993 = vdwg.mxu0
    %1994 = vmatpush.bf16.msra.mxu0 %v732
    %1995 = vmatpush.bf16.msra.mxu0 %v724
    %1996 = vmatpush.bf16.msra.mxu0 %v716
    %1997 = vmatpush.bf16.msra.mxu0 %v708
    %1998 = vmatpush.bf16.msra.mxu0 %v700
    %1999 = vmatpush.bf16.msra.mxu0 %v692
    %2000 = vmatpush.bf16.msra.mxu0 %v684
    %2001 = vmatpush.bf16.msra.mxu0 %v676
    %2002 = vmatmul.bf16.gmra.mxu0 %v126
    %v2003 = vpop.f32.mrf.mxu0
    %v2004 = vadd.f32 0.0, %v2003
    %v2005 = vpop.f32.mrf.mxu0
    %v2006 = vadd.f32 0.0, %v2005
    %2007 = vmatmul.bf16.gmra.mxu0 %v128
    %v2008 = vpop.f32.mrf.mxu0
    %v2009 = vadd.f32 0.0, %v2008
    %v2010 = vpop.f32.mrf.mxu0
    %v2011 = vadd.f32 0.0, %v2010
    %2012 = vmatmul.bf16.gmra.mxu0 %v130
    %v2013 = vpop.f32.mrf.mxu0
    %v2014 = vadd.f32 0.0, %v2013
    %v2015 = vpop.f32.mrf.mxu0
    %v2016 = vadd.f32 0.0, %v2015
    %2017 = vmatmul.bf16.gmra.mxu0 %v132
    %v2018 = vpop.f32.mrf.mxu0
    %v2019 = vadd.f32 0.0, %v2018
    %v2020 = vpop.f32.mrf.mxu0
    %v2021 = vadd.f32 0.0, %v2020
    %2022 = vmatmul.bf16.gmra.mxu0 %v134
    %v2023 = vpop.f32.mrf.mxu0
    %v2024 = vadd.f32 0.0, %v2023
    %v2025 = vpop.f32.mrf.mxu0
    %v2026 = vadd.f32 0.0, %v2025
    %2027 = vmatmul.bf16.gmra.mxu0 %v136
    %v2028 = vpop.f32.mrf.mxu0
    %v2029 = vadd.f32 0.0, %v2028
    %v2030 = vpop.f32.mrf.mxu0
    %v2031 = vadd.f32 0.0, %v2030
    %2032 = vmatmul.bf16.gmra.mxu0 %v138
    %v2033 = vpop.f32.mrf.mxu0
    %v2034 = vadd.f32 0.0, %v2033
    %v2035 = vpop.f32.mrf.mxu0
    %v2036 = vadd.f32 0.0, %v2035
    %2037 = vmatmul.bf16.gmra.mxu0 %v140
    %v2038 = vpop.f32.mrf.mxu0
    %v2039 = vadd.f32 0.0, %v2038
    %v2040 = vpop.f32.mrf.mxu0
    %v2041 = vadd.f32 0.0, %v2040
    %2042 = vmatmul.bf16.gmra.mxu0 %v142
    %v2043 = vpop.f32.mrf.mxu0
    %v2044 = vadd.f32 0.0, %v2043
    %v2045 = vpop.f32.mrf.mxu0
    %v2046 = vadd.f32 0.0, %v2045
    %2047 = vmatmul.bf16.gmra.mxu0 %v144
    %v2048 = vpop.f32.mrf.mxu0
    %v2049 = vadd.f32 0.0, %v2048
    %v2050 = vpop.f32.mrf.mxu0
    %v2051 = vadd.f32 0.0, %v2050
    %2052 = vmatmul.bf16.gmra.mxu0 %v146
    %v2053 = vpop.f32.mrf.mxu0
    %v2054 = vadd.f32 0.0, %v2053
    %v2055 = vpop.f32.mrf.mxu0
    %v2056 = vadd.f32 0.0, %v2055
    %2057 = vmatmul.bf16.gmra.mxu0 %v148
    %v2058 = vpop.f32.mrf.mxu0
    %v2059 = vadd.f32 0.0, %v2058
    %v2060 = vpop.f32.mrf.mxu0
    %v2061 = vadd.f32 0.0, %v2060
    %2062 = vmatmul.bf16.gmra.mxu0 %v150
    %v2063 = vpop.f32.mrf.mxu0
    %v2064 = vadd.f32 0.0, %v2063
    %v2065 = vpop.f32.mrf.mxu0
    %v2066 = vadd.f32 0.0, %v2065
    %2067 = vmatmul.bf16.gmra.mxu0 %v152
    %v2068 = vpop.f32.mrf.mxu0
    %v2069 = vadd.f32 0.0, %v2068
    %v2070 = vpop.f32.mrf.mxu0
    %v2071 = vadd.f32 0.0, %v2070
    %2072 = vmatmul.bf16.gmra.mxu0 %v154
    %v2073 = vpop.f32.mrf.mxu0
    %v2074 = vadd.f32 0.0, %v2073
    %v2075 = vpop.f32.mrf.mxu0
    %v2076 = vadd.f32 0.0, %v2075
    %2077 = vmatmul.bf16.gmra.mxu0 %v156
    %v2078 = vpop.f32.mrf.mxu0
    %v2079 = vadd.f32 0.0, %v2078
    %v2080 = vpop.f32.mrf.mxu0
    %v2081 = vadd.f32 0.0, %v2080
    %2082 = vdwg.mxu0
    %2083 = vmatpush.bf16.msra.mxu0 %v796
    %2084 = vmatpush.bf16.msra.mxu0 %v788
    %2085 = vmatpush.bf16.msra.mxu0 %v780
    %2086 = vmatpush.bf16.msra.mxu0 %v772
    %2087 = vmatpush.bf16.msra.mxu0 %v764
    %2088 = vmatpush.bf16.msra.mxu0 %v756
    %2089 = vmatpush.bf16.msra.mxu0 %v748
    %2090 = vmatpush.bf16.msra.mxu0 %v740
    %2091 = vmatmul.bf16.gmra.mxu0 %v127
    %v2092 = vpop.f32.mrf.mxu0
    %v2093 = vadd.f32 %v2004, %v2092
    %v2094 = vpop.f32.mrf.mxu0
    %v2095 = vadd.f32 %v2006, %v2094
    %2096 = vmatmul.bf16.gmra.mxu0 %v129
    %v2097 = vpop.f32.mrf.mxu0
    %v2098 = vadd.f32 %v2009, %v2097
    %v2099 = vpop.f32.mrf.mxu0
    %v2100 = vadd.f32 %v2011, %v2099
    %2101 = vmatmul.bf16.gmra.mxu0 %v131
    %v2102 = vpop.f32.mrf.mxu0
    %v2103 = vadd.f32 %v2014, %v2102
    %v2104 = vpop.f32.mrf.mxu0
    %v2105 = vadd.f32 %v2016, %v2104
    %2106 = vmatmul.bf16.gmra.mxu0 %v133
    %v2107 = vpop.f32.mrf.mxu0
    %v2108 = vadd.f32 %v2019, %v2107
    %v2109 = vpop.f32.mrf.mxu0
    %v2110 = vadd.f32 %v2021, %v2109
    %2111 = vmatmul.bf16.gmra.mxu0 %v135
    %v2112 = vpop.f32.mrf.mxu0
    %v2113 = vadd.f32 %v2024, %v2112
    %v2114 = vpop.f32.mrf.mxu0
    %v2115 = vadd.f32 %v2026, %v2114
    %2116 = vmatmul.bf16.gmra.mxu0 %v137
    %v2117 = vpop.f32.mrf.mxu0
    %v2118 = vadd.f32 %v2029, %v2117
    %v2119 = vpop.f32.mrf.mxu0
    %v2120 = vadd.f32 %v2031, %v2119
    %2121 = vmatmul.bf16.gmra.mxu0 %v139
    %v2122 = vpop.f32.mrf.mxu0
    %v2123 = vadd.f32 %v2034, %v2122
    %v2124 = vpop.f32.mrf.mxu0
    %v2125 = vadd.f32 %v2036, %v2124
    %2126 = vmatmul.bf16.gmra.mxu0 %v141
    %v2127 = vpop.f32.mrf.mxu0
    %v2128 = vadd.f32 %v2039, %v2127
    %v2129 = vpop.f32.mrf.mxu0
    %v2130 = vadd.f32 %v2041, %v2129
    %2131 = vmatmul.bf16.gmra.mxu0 %v143
    %v2132 = vpop.f32.mrf.mxu0
    %v2133 = vadd.f32 %v2044, %v2132
    %v2134 = vpop.f32.mrf.mxu0
    %v2135 = vadd.f32 %v2046, %v2134
    %2136 = vmatmul.bf16.gmra.mxu0 %v145
    %v2137 = vpop.f32.mrf.mxu0
    %v2138 = vadd.f32 %v2049, %v2137
    %v2139 = vpop.f32.mrf.mxu0
    %v2140 = vadd.f32 %v2051, %v2139
    %2141 = vmatmul.bf16.gmra.mxu0 %v147
    %v2142 = vpop.f32.mrf.mxu0
    %v2143 = vadd.f32 %v2054, %v2142
    %v2144 = vpop.f32.mrf.mxu0
    %v2145 = vadd.f32 %v2056, %v2144
    %2146 = vmatmul.bf16.gmra.mxu0 %v149
    %v2147 = vpop.f32.mrf.mxu0
    %v2148 = vadd.f32 %v2059, %v2147
    %v2149 = vpop.f32.mrf.mxu0
    %v2150 = vadd.f32 %v2061, %v2149
    %2151 = vmatmul.bf16.gmra.mxu0 %v151
    %v2152 = vpop.f32.mrf.mxu0
    %v2153 = vadd.f32 %v2064, %v2152
    %v2154 = vpop.f32.mrf.mxu0
    %v2155 = vadd.f32 %v2066, %v2154
    %2156 = vmatmul.bf16.gmra.mxu0 %v153
    %v2157 = vpop.f32.mrf.mxu0
    %v2158 = vadd.f32 %v2069, %v2157
    %v2159 = vpop.f32.mrf.mxu0
    %v2160 = vadd.f32 %v2071, %v2159
    %2161 = vmatmul.bf16.gmra.mxu0 %v155
    %v2162 = vpop.f32.mrf.mxu0
    %v2163 = vadd.f32 %v2074, %v2162
    %v2164 = vpop.f32.mrf.mxu0
    %v2165 = vadd.f32 %v2076, %v2164
    %2166 = vmatmul.bf16.gmra.mxu0 %v157
    %v2167 = vpop.f32.mrf.mxu0
    %v2168 = vadd.f32 %v2079, %v2167
    %v2169 = vpop.f32.mrf.mxu0
    %v2170 = vadd.f32 %v2081, %v2169
    %2171 = vdwg.mxu0
    %2172 = vmatpush.bf16.msra.mxu0 %v733
    %2173 = vmatpush.bf16.msra.mxu0 %v725
    %2174 = vmatpush.bf16.msra.mxu0 %v717
    %2175 = vmatpush.bf16.msra.mxu0 %v709
    %2176 = vmatpush.bf16.msra.mxu0 %v701
    %2177 = vmatpush.bf16.msra.mxu0 %v693
    %2178 = vmatpush.bf16.msra.mxu0 %v685
    %2179 = vmatpush.bf16.msra.mxu0 %v677
    %2180 = vmatmul.bf16.gmra.mxu0 %v126
    %v2181 = vpop.f32.mrf.mxu0
    %v2182 = vadd.f32 0.0, %v2181
    %v2183 = vpop.f32.mrf.mxu0
    %v2184 = vadd.f32 0.0, %v2183
    %2185 = vmatmul.bf16.gmra.mxu0 %v128
    %v2186 = vpop.f32.mrf.mxu0
    %v2187 = vadd.f32 0.0, %v2186
    %v2188 = vpop.f32.mrf.mxu0
    %v2189 = vadd.f32 0.0, %v2188
    %2190 = vmatmul.bf16.gmra.mxu0 %v130
    %v2191 = vpop.f32.mrf.mxu0
    %v2192 = vadd.f32 0.0, %v2191
    %v2193 = vpop.f32.mrf.mxu0
    %v2194 = vadd.f32 0.0, %v2193
    %2195 = vmatmul.bf16.gmra.mxu0 %v132
    %v2196 = vpop.f32.mrf.mxu0
    %v2197 = vadd.f32 0.0, %v2196
    %v2198 = vpop.f32.mrf.mxu0
    %v2199 = vadd.f32 0.0, %v2198
    %2200 = vmatmul.bf16.gmra.mxu0 %v134
    %v2201 = vpop.f32.mrf.mxu0
    %v2202 = vadd.f32 0.0, %v2201
    %v2203 = vpop.f32.mrf.mxu0
    %v2204 = vadd.f32 0.0, %v2203
    %2205 = vmatmul.bf16.gmra.mxu0 %v136
    %v2206 = vpop.f32.mrf.mxu0
    %v2207 = vadd.f32 0.0, %v2206
    %v2208 = vpop.f32.mrf.mxu0
    %v2209 = vadd.f32 0.0, %v2208
    %2210 = vmatmul.bf16.gmra.mxu0 %v138
    %v2211 = vpop.f32.mrf.mxu0
    %v2212 = vadd.f32 0.0, %v2211
    %v2213 = vpop.f32.mrf.mxu0
    %v2214 = vadd.f32 0.0, %v2213
    %2215 = vmatmul.bf16.gmra.mxu0 %v140
    %v2216 = vpop.f32.mrf.mxu0
    %v2217 = vadd.f32 0.0, %v2216
    %v2218 = vpop.f32.mrf.mxu0
    %v2219 = vadd.f32 0.0, %v2218
    %2220 = vmatmul.bf16.gmra.mxu0 %v142
    %v2221 = vpop.f32.mrf.mxu0
    %v2222 = vadd.f32 0.0, %v2221
    %v2223 = vpop.f32.mrf.mxu0
    %v2224 = vadd.f32 0.0, %v2223
    %2225 = vmatmul.bf16.gmra.mxu0 %v144
    %v2226 = vpop.f32.mrf.mxu0
    %v2227 = vadd.f32 0.0, %v2226
    %v2228 = vpop.f32.mrf.mxu0
    %v2229 = vadd.f32 0.0, %v2228
    %2230 = vmatmul.bf16.gmra.mxu0 %v146
    %v2231 = vpop.f32.mrf.mxu0
    %v2232 = vadd.f32 0.0, %v2231
    %v2233 = vpop.f32.mrf.mxu0
    %v2234 = vadd.f32 0.0, %v2233
    %2235 = vmatmul.bf16.gmra.mxu0 %v148
    %v2236 = vpop.f32.mrf.mxu0
    %v2237 = vadd.f32 0.0, %v2236
    %v2238 = vpop.f32.mrf.mxu0
    %v2239 = vadd.f32 0.0, %v2238
    %2240 = vmatmul.bf16.gmra.mxu0 %v150
    %v2241 = vpop.f32.mrf.mxu0
    %v2242 = vadd.f32 0.0, %v2241
    %v2243 = vpop.f32.mrf.mxu0
    %v2244 = vadd.f32 0.0, %v2243
    %2245 = vmatmul.bf16.gmra.mxu0 %v152
    %v2246 = vpop.f32.mrf.mxu0
    %v2247 = vadd.f32 0.0, %v2246
    %v2248 = vpop.f32.mrf.mxu0
    %v2249 = vadd.f32 0.0, %v2248
    %2250 = vmatmul.bf16.gmra.mxu0 %v154
    %v2251 = vpop.f32.mrf.mxu0
    %v2252 = vadd.f32 0.0, %v2251
    %v2253 = vpop.f32.mrf.mxu0
    %v2254 = vadd.f32 0.0, %v2253
    %2255 = vmatmul.bf16.gmra.mxu0 %v156
    %v2256 = vpop.f32.mrf.mxu0
    %v2257 = vadd.f32 0.0, %v2256
    %v2258 = vpop.f32.mrf.mxu0
    %v2259 = vadd.f32 0.0, %v2258
    %2260 = vdwg.mxu0
    %2261 = vmatpush.bf16.msra.mxu0 %v797
    %2262 = vmatpush.bf16.msra.mxu0 %v789
    %2263 = vmatpush.bf16.msra.mxu0 %v781
    %2264 = vmatpush.bf16.msra.mxu0 %v773
    %2265 = vmatpush.bf16.msra.mxu0 %v765
    %2266 = vmatpush.bf16.msra.mxu0 %v757
    %2267 = vmatpush.bf16.msra.mxu0 %v749
    %2268 = vmatpush.bf16.msra.mxu0 %v741
    %2269 = vmatmul.bf16.gmra.mxu0 %v127
    %v2270 = vpop.f32.mrf.mxu0
    %v2271 = vadd.f32 %v2182, %v2270
    %v2272 = vpop.f32.mrf.mxu0
    %v2273 = vadd.f32 %v2184, %v2272
    %2274 = vmatmul.bf16.gmra.mxu0 %v129
    %v2275 = vpop.f32.mrf.mxu0
    %v2276 = vadd.f32 %v2187, %v2275
    %v2277 = vpop.f32.mrf.mxu0
    %v2278 = vadd.f32 %v2189, %v2277
    %2279 = vmatmul.bf16.gmra.mxu0 %v131
    %v2280 = vpop.f32.mrf.mxu0
    %v2281 = vadd.f32 %v2192, %v2280
    %v2282 = vpop.f32.mrf.mxu0
    %v2283 = vadd.f32 %v2194, %v2282
    %2284 = vmatmul.bf16.gmra.mxu0 %v133
    %v2285 = vpop.f32.mrf.mxu0
    %v2286 = vadd.f32 %v2197, %v2285
    %v2287 = vpop.f32.mrf.mxu0
    %v2288 = vadd.f32 %v2199, %v2287
    %2289 = vmatmul.bf16.gmra.mxu0 %v135
    %v2290 = vpop.f32.mrf.mxu0
    %v2291 = vadd.f32 %v2202, %v2290
    %v2292 = vpop.f32.mrf.mxu0
    %v2293 = vadd.f32 %v2204, %v2292
    %2294 = vmatmul.bf16.gmra.mxu0 %v137
    %v2295 = vpop.f32.mrf.mxu0
    %v2296 = vadd.f32 %v2207, %v2295
    %v2297 = vpop.f32.mrf.mxu0
    %v2298 = vadd.f32 %v2209, %v2297
    %2299 = vmatmul.bf16.gmra.mxu0 %v139
    %v2300 = vpop.f32.mrf.mxu0
    %v2301 = vadd.f32 %v2212, %v2300
    %v2302 = vpop.f32.mrf.mxu0
    %v2303 = vadd.f32 %v2214, %v2302
    %2304 = vmatmul.bf16.gmra.mxu0 %v141
    %v2305 = vpop.f32.mrf.mxu0
    %v2306 = vadd.f32 %v2217, %v2305
    %v2307 = vpop.f32.mrf.mxu0
    %v2308 = vadd.f32 %v2219, %v2307
    %2309 = vmatmul.bf16.gmra.mxu0 %v143
    %v2310 = vpop.f32.mrf.mxu0
    %v2311 = vadd.f32 %v2222, %v2310
    %v2312 = vpop.f32.mrf.mxu0
    %v2313 = vadd.f32 %v2224, %v2312
    %2314 = vmatmul.bf16.gmra.mxu0 %v145
    %v2315 = vpop.f32.mrf.mxu0
    %v2316 = vadd.f32 %v2227, %v2315
    %v2317 = vpop.f32.mrf.mxu0
    %v2318 = vadd.f32 %v2229, %v2317
    %2319 = vmatmul.bf16.gmra.mxu0 %v147
    %v2320 = vpop.f32.mrf.mxu0
    %v2321 = vadd.f32 %v2232, %v2320
    %v2322 = vpop.f32.mrf.mxu0
    %v2323 = vadd.f32 %v2234, %v2322
    %2324 = vmatmul.bf16.gmra.mxu0 %v149
    %v2325 = vpop.f32.mrf.mxu0
    %v2326 = vadd.f32 %v2237, %v2325
    %v2327 = vpop.f32.mrf.mxu0
    %v2328 = vadd.f32 %v2239, %v2327
    %2329 = vmatmul.bf16.gmra.mxu0 %v151
    %v2330 = vpop.f32.mrf.mxu0
    %v2331 = vadd.f32 %v2242, %v2330
    %v2332 = vpop.f32.mrf.mxu0
    %v2333 = vadd.f32 %v2244, %v2332
    %2334 = vmatmul.bf16.gmra.mxu0 %v153
    %v2335 = vpop.f32.mrf.mxu0
    %v2336 = vadd.f32 %v2247, %v2335
    %v2337 = vpop.f32.mrf.mxu0
    %v2338 = vadd.f32 %v2249, %v2337
    %2339 = vmatmul.bf16.gmra.mxu0 %v155
    %v2340 = vpop.f32.mrf.mxu0
    %v2341 = vadd.f32 %v2252, %v2340
    %v2342 = vpop.f32.mrf.mxu0
    %v2343 = vadd.f32 %v2254, %v2342
    %2344 = vmatmul.bf16.gmra.mxu0 %v157
    %v2345 = vpop.f32.mrf.mxu0
    %v2346 = vadd.f32 %v2257, %v2345
    %v2347 = vpop.f32.mrf.mxu0
    %v2348 = vadd.f32 %v2259, %v2347
    %2349 = vdwg.mxu0
    %v2350 = vxor.u32 %v1025, 2147483648
    %v2351 = vxor.u32 %v1203, 2147483648
    %v2352 = vxor.u32 %v1381, 2147483648
    %v2353 = vxor.u32 %v1559, 2147483648
    %v2354 = vxor.u32 %v1027, 2147483648
    %v2355 = vxor.u32 %v1205, 2147483648
    %v2356 = vxor.u32 %v1383, 2147483648
    %v2357 = vxor.u32 %v1561, 2147483648
    %v2358 = vxor.u32 %v1030, 2147483648
    %v2359 = vxor.u32 %v1208, 2147483648
    %v2360 = vxor.u32 %v1386, 2147483648
    %v2361 = vxor.u32 %v1564, 2147483648
    %v2362 = vxor.u32 %v1032, 2147483648
    %v2363 = vxor.u32 %v1210, 2147483648
    %v2364 = vxor.u32 %v1388, 2147483648
    %v2365 = vxor.u32 %v1566, 2147483648
    %v2366 = vxor.u32 %v1035, 2147483648
    %v2367 = vxor.u32 %v1213, 2147483648
    %v2368 = vxor.u32 %v1391, 2147483648
    %v2369 = vxor.u32 %v1569, 2147483648
    %v2370 = vxor.u32 %v1037, 2147483648
    %v2371 = vxor.u32 %v1215, 2147483648
    %v2372 = vxor.u32 %v1393, 2147483648
    %v2373 = vxor.u32 %v1571, 2147483648
    %v2374 = vxor.u32 %v1040, 2147483648
    %v2375 = vxor.u32 %v1218, 2147483648
    %v2376 = vxor.u32 %v1396, 2147483648
    %v2377 = vxor.u32 %v1574, 2147483648
    %v2378 = vxor.u32 %v1042, 2147483648
    %v2379 = vxor.u32 %v1220, 2147483648
    %v2380 = vxor.u32 %v1398, 2147483648
    %v2381 = vxor.u32 %v1576, 2147483648
    %v2382 = vxor.u32 %v1045, 2147483648
    %v2383 = vxor.u32 %v1223, 2147483648
    %v2384 = vxor.u32 %v1401, 2147483648
    %v2385 = vxor.u32 %v1579, 2147483648
    %v2386 = vxor.u32 %v1047, 2147483648
    %v2387 = vxor.u32 %v1225, 2147483648
    %v2388 = vxor.u32 %v1403, 2147483648
    %v2389 = vxor.u32 %v1581, 2147483648
    %v2390 = vxor.u32 %v1050, 2147483648
    %v2391 = vxor.u32 %v1228, 2147483648
    %v2392 = vxor.u32 %v1406, 2147483648
    %v2393 = vxor.u32 %v1584, 2147483648
    %v2394 = vxor.u32 %v1052, 2147483648
    %v2395 = vxor.u32 %v1230, 2147483648
    %v2396 = vxor.u32 %v1408, 2147483648
    %v2397 = vxor.u32 %v1586, 2147483648
    %v2398 = vxor.u32 %v1055, 2147483648
    %v2399 = vxor.u32 %v1233, 2147483648
    %v2400 = vxor.u32 %v1411, 2147483648
    %v2401 = vxor.u32 %v1589, 2147483648
    %v2402 = vxor.u32 %v1057, 2147483648
    %v2403 = vxor.u32 %v1235, 2147483648
    %v2404 = vxor.u32 %v1413, 2147483648
    %v2405 = vxor.u32 %v1591, 2147483648
    %v2406 = vxor.u32 %v1060, 2147483648
    %v2407 = vxor.u32 %v1238, 2147483648
    %v2408 = vxor.u32 %v1416, 2147483648
    %v2409 = vxor.u32 %v1594, 2147483648
    %v2410 = vxor.u32 %v1062, 2147483648
    %v2411 = vxor.u32 %v1240, 2147483648
    %v2412 = vxor.u32 %v1418, 2147483648
    %v2413 = vxor.u32 %v1596, 2147483648
    %v2414 = vxor.u32 %v1065, 2147483648
    %v2415 = vxor.u32 %v1243, 2147483648
    %v2416 = vxor.u32 %v1421, 2147483648
    %v2417 = vxor.u32 %v1599, 2147483648
    %v2418 = vxor.u32 %v1067, 2147483648
    %v2419 = vxor.u32 %v1245, 2147483648
    %v2420 = vxor.u32 %v1423, 2147483648
    %v2421 = vxor.u32 %v1601, 2147483648
    %v2422 = vxor.u32 %v1070, 2147483648
    %v2423 = vxor.u32 %v1248, 2147483648
    %v2424 = vxor.u32 %v1426, 2147483648
    %v2425 = vxor.u32 %v1604, 2147483648
    %v2426 = vxor.u32 %v1072, 2147483648
    %v2427 = vxor.u32 %v1250, 2147483648
    %v2428 = vxor.u32 %v1428, 2147483648
    %v2429 = vxor.u32 %v1606, 2147483648
    %v2430 = vxor.u32 %v1075, 2147483648
    %v2431 = vxor.u32 %v1253, 2147483648
    %v2432 = vxor.u32 %v1431, 2147483648
    %v2433 = vxor.u32 %v1609, 2147483648
    %v2434 = vxor.u32 %v1077, 2147483648
    %v2435 = vxor.u32 %v1255, 2147483648
    %v2436 = vxor.u32 %v1433, 2147483648
    %v2437 = vxor.u32 %v1611, 2147483648
    %v2438 = vxor.u32 %v1080, 2147483648
    %v2439 = vxor.u32 %v1258, 2147483648
    %v2440 = vxor.u32 %v1436, 2147483648
    %v2441 = vxor.u32 %v1614, 2147483648
    %v2442 = vxor.u32 %v1082, 2147483648
    %v2443 = vxor.u32 %v1260, 2147483648
    %v2444 = vxor.u32 %v1438, 2147483648
    %v2445 = vxor.u32 %v1616, 2147483648
    %v2446 = vxor.u32 %v1085, 2147483648
    %v2447 = vxor.u32 %v1263, 2147483648
    %v2448 = vxor.u32 %v1441, 2147483648
    %v2449 = vxor.u32 %v1619, 2147483648
    %v2450 = vxor.u32 %v1087, 2147483648
    %v2451 = vxor.u32 %v1265, 2147483648
    %v2452 = vxor.u32 %v1443, 2147483648
    %v2453 = vxor.u32 %v1621, 2147483648
    %v2454 = vxor.u32 %v1090, 2147483648
    %v2455 = vxor.u32 %v1268, 2147483648
    %v2456 = vxor.u32 %v1446, 2147483648
    %v2457 = vxor.u32 %v1624, 2147483648
    %v2458 = vxor.u32 %v1092, 2147483648
    %v2459 = vxor.u32 %v1270, 2147483648
    %v2460 = vxor.u32 %v1448, 2147483648
    %v2461 = vxor.u32 %v1626, 2147483648
    %v2462 = vxor.u32 %v1095, 2147483648
    %v2463 = vxor.u32 %v1273, 2147483648
    %v2464 = vxor.u32 %v1451, 2147483648
    %v2465 = vxor.u32 %v1629, 2147483648
    %v2466 = vxor.u32 %v1097, 2147483648
    %v2467 = vxor.u32 %v1275, 2147483648
    %v2468 = vxor.u32 %v1453, 2147483648
    %v2469 = vxor.u32 %v1631, 2147483648
    %v2470 = vxor.u32 %v1100, 2147483648
    %v2471 = vxor.u32 %v1278, 2147483648
    %v2472 = vxor.u32 %v1456, 2147483648
    %v2473 = vxor.u32 %v1634, 2147483648
    %v2474 = vxor.u32 %v1102, 2147483648
    %v2475 = vxor.u32 %v1280, 2147483648
    %v2476 = vxor.u32 %v1458, 2147483648
    %v2477 = vxor.u32 %v1636, 2147483648
    %v2478 = vmul.f32 %v2350, 1.442695
    %v2479 = vpow.pop %v2478
    %v2480 = vmul.f32 %v2351, 1.442695
    %v2481 = vpow.pop %v2480
    %v2482 = vmul.f32 %v2352, 1.442695
    %v2483 = vpow.pop %v2482
    %v2484 = vmul.f32 %v2353, 1.442695
    %v2485 = vpow.pop %v2484
    %v2486 = vmul.f32 %v2354, 1.442695
    %v2487 = vpow.pop %v2486
    %v2488 = vmul.f32 %v2355, 1.442695
    %v2489 = vpow.pop %v2488
    %v2490 = vmul.f32 %v2356, 1.442695
    %v2491 = vpow.pop %v2490
    %v2492 = vmul.f32 %v2357, 1.442695
    %v2493 = vpow.pop %v2492
    %v2494 = vmul.f32 %v2358, 1.442695
    %v2495 = vpow.pop %v2494
    %v2496 = vmul.f32 %v2359, 1.442695
    %v2497 = vpow.pop %v2496
    %v2498 = vmul.f32 %v2360, 1.442695
    %v2499 = vpow.pop %v2498
    %v2500 = vmul.f32 %v2361, 1.442695
    %v2501 = vpow.pop %v2500
    %v2502 = vmul.f32 %v2362, 1.442695
    %v2503 = vpow.pop %v2502
    %v2504 = vmul.f32 %v2363, 1.442695
    %v2505 = vpow.pop %v2504
    %v2506 = vmul.f32 %v2364, 1.442695
    %v2507 = vpow.pop %v2506
    %v2508 = vmul.f32 %v2365, 1.442695
    %v2509 = vpow.pop %v2508
    %v2510 = vmul.f32 %v2366, 1.442695
    %v2511 = vpow.pop %v2510
    %v2512 = vmul.f32 %v2367, 1.442695
    %v2513 = vpow.pop %v2512
    %v2514 = vmul.f32 %v2368, 1.442695
    %v2515 = vpow.pop %v2514
    %v2516 = vmul.f32 %v2369, 1.442695
    %v2517 = vpow.pop %v2516
    %v2518 = vmul.f32 %v2370, 1.442695
    %v2519 = vpow.pop %v2518
    %v2520 = vmul.f32 %v2371, 1.442695
    %v2521 = vpow.pop %v2520
    %v2522 = vmul.f32 %v2372, 1.442695
    %v2523 = vpow.pop %v2522
    %v2524 = vmul.f32 %v2373, 1.442695
    %v2525 = vpow.pop %v2524
    %v2526 = vmul.f32 %v2374, 1.442695
    %v2527 = vpow.pop %v2526
    %v2528 = vmul.f32 %v2375, 1.442695
    %v2529 = vpow.pop %v2528
    %v2530 = vmul.f32 %v2376, 1.442695
    %v2531 = vpow.pop %v2530
    %v2532 = vmul.f32 %v2377, 1.442695
    %v2533 = vpow.pop %v2532
    %v2534 = vmul.f32 %v2378, 1.442695
    %v2535 = vpow.pop %v2534
    %v2536 = vmul.f32 %v2379, 1.442695
    %v2537 = vpow.pop %v2536
    %v2538 = vmul.f32 %v2380, 1.442695
    %v2539 = vpow.pop %v2538
    %v2540 = vmul.f32 %v2381, 1.442695
    %v2541 = vpow.pop %v2540
    %v2542 = vmul.f32 %v2382, 1.442695
    %v2543 = vpow.pop %v2542
    %v2544 = vmul.f32 %v2383, 1.442695
    %v2545 = vpow.pop %v2544
    %v2546 = vmul.f32 %v2384, 1.442695
    %v2547 = vpow.pop %v2546
    %v2548 = vmul.f32 %v2385, 1.442695
    %v2549 = vpow.pop %v2548
    %v2550 = vmul.f32 %v2386, 1.442695
    %v2551 = vpow.pop %v2550
    %v2552 = vmul.f32 %v2387, 1.442695
    %v2553 = vpow.pop %v2552
    %v2554 = vmul.f32 %v2388, 1.442695
    %v2555 = vpow.pop %v2554
    %v2556 = vmul.f32 %v2389, 1.442695
    %v2557 = vpow.pop %v2556
    %v2558 = vmul.f32 %v2390, 1.442695
    %v2559 = vpow.pop %v2558
    %v2560 = vmul.f32 %v2391, 1.442695
    %v2561 = vpow.pop %v2560
    %v2562 = vmul.f32 %v2392, 1.442695
    %v2563 = vpow.pop %v2562
    %v2564 = vmul.f32 %v2393, 1.442695
    %v2565 = vpow.pop %v2564
    %v2566 = vmul.f32 %v2394, 1.442695
    %v2567 = vpow.pop %v2566
    %v2568 = vmul.f32 %v2395, 1.442695
    %v2569 = vpow.pop %v2568
    %v2570 = vmul.f32 %v2396, 1.442695
    %v2571 = vpow.pop %v2570
    %v2572 = vmul.f32 %v2397, 1.442695
    %v2573 = vpow.pop %v2572
    %v2574 = vmul.f32 %v2398, 1.442695
    %v2575 = vpow.pop %v2574
    %v2576 = vmul.f32 %v2399, 1.442695
    %v2577 = vpow.pop %v2576
    %v2578 = vmul.f32 %v2400, 1.442695
    %v2579 = vpow.pop %v2578
    %v2580 = vmul.f32 %v2401, 1.442695
    %v2581 = vpow.pop %v2580
    %v2582 = vmul.f32 %v2402, 1.442695
    %v2583 = vpow.pop %v2582
    %v2584 = vmul.f32 %v2403, 1.442695
    %v2585 = vpow.pop %v2584
    %v2586 = vmul.f32 %v2404, 1.442695
    %v2587 = vpow.pop %v2586
    %v2588 = vmul.f32 %v2405, 1.442695
    %v2589 = vpow.pop %v2588
    %v2590 = vmul.f32 %v2406, 1.442695
    %v2591 = vpow.pop %v2590
    %v2592 = vmul.f32 %v2407, 1.442695
    %v2593 = vpow.pop %v2592
    %v2594 = vmul.f32 %v2408, 1.442695
    %v2595 = vpow.pop %v2594
    %v2596 = vmul.f32 %v2409, 1.442695
    %v2597 = vpow.pop %v2596
    %v2598 = vmul.f32 %v2410, 1.442695
    %v2599 = vpow.pop %v2598
    %v2600 = vmul.f32 %v2411, 1.442695
    %v2601 = vpow.pop %v2600
    %v2602 = vmul.f32 %v2412, 1.442695
    %v2603 = vpow.pop %v2602
    %v2604 = vmul.f32 %v2413, 1.442695
    %v2605 = vpow.pop %v2604
    %v2606 = vmul.f32 %v2414, 1.442695
    %v2607 = vpow.pop %v2606
    %v2608 = vmul.f32 %v2415, 1.442695
    %v2609 = vpow.pop %v2608
    %v2610 = vmul.f32 %v2416, 1.442695
    %v2611 = vpow.pop %v2610
    %v2612 = vmul.f32 %v2417, 1.442695
    %v2613 = vpow.pop %v2612
    %v2614 = vmul.f32 %v2418, 1.442695
    %v2615 = vpow.pop %v2614
    %v2616 = vmul.f32 %v2419, 1.442695
    %v2617 = vpow.pop %v2616
    %v2618 = vmul.f32 %v2420, 1.442695
    %v2619 = vpow.pop %v2618
    %v2620 = vmul.f32 %v2421, 1.442695
    %v2621 = vpow.pop %v2620
    %v2622 = vmul.f32 %v2422, 1.442695
    %v2623 = vpow.pop %v2622
    %v2624 = vmul.f32 %v2423, 1.442695
    %v2625 = vpow.pop %v2624
    %v2626 = vmul.f32 %v2424, 1.442695
    %v2627 = vpow.pop %v2626
    %v2628 = vmul.f32 %v2425, 1.442695
    %v2629 = vpow.pop %v2628
    %v2630 = vmul.f32 %v2426, 1.442695
    %v2631 = vpow.pop %v2630
    %v2632 = vmul.f32 %v2427, 1.442695
    %v2633 = vpow.pop %v2632
    %v2634 = vmul.f32 %v2428, 1.442695
    %v2635 = vpow.pop %v2634
    %v2636 = vmul.f32 %v2429, 1.442695
    %v2637 = vpow.pop %v2636
    %v2638 = vmul.f32 %v2430, 1.442695
    %v2639 = vpow.pop %v2638
    %v2640 = vmul.f32 %v2431, 1.442695
    %v2641 = vpow.pop %v2640
    %v2642 = vmul.f32 %v2432, 1.442695
    %v2643 = vpow.pop %v2642
    %v2644 = vmul.f32 %v2433, 1.442695
    %v2645 = vpow.pop %v2644
    %v2646 = vmul.f32 %v2434, 1.442695
    %v2647 = vpow.pop %v2646
    %v2648 = vmul.f32 %v2435, 1.442695
    %v2649 = vpow.pop %v2648
    %v2650 = vmul.f32 %v2436, 1.442695
    %v2651 = vpow.pop %v2650
    %v2652 = vmul.f32 %v2437, 1.442695
    %v2653 = vpow.pop %v2652
    %v2654 = vmul.f32 %v2438, 1.442695
    %v2655 = vpow.pop %v2654
    %v2656 = vmul.f32 %v2439, 1.442695
    %v2657 = vpow.pop %v2656
    %v2658 = vmul.f32 %v2440, 1.442695
    %v2659 = vpow.pop %v2658
    %v2660 = vmul.f32 %v2441, 1.442695
    %v2661 = vpow.pop %v2660
    %v2662 = vmul.f32 %v2442, 1.442695
    %v2663 = vpow.pop %v2662
    %v2664 = vmul.f32 %v2443, 1.442695
    %v2665 = vpow.pop %v2664
    %v2666 = vmul.f32 %v2444, 1.442695
    %v2667 = vpow.pop %v2666
    %v2668 = vmul.f32 %v2445, 1.442695
    %v2669 = vpow.pop %v2668
    %v2670 = vmul.f32 %v2446, 1.442695
    %v2671 = vpow.pop %v2670
    %v2672 = vmul.f32 %v2447, 1.442695
    %v2673 = vpow.pop %v2672
    %v2674 = vmul.f32 %v2448, 1.442695
    %v2675 = vpow.pop %v2674
    %v2676 = vmul.f32 %v2449, 1.442695
    %v2677 = vpow.pop %v2676
    %v2678 = vmul.f32 %v2450, 1.442695
    %v2679 = vpow.pop %v2678
    %v2680 = vmul.f32 %v2451, 1.442695
    %v2681 = vpow.pop %v2680
    %v2682 = vmul.f32 %v2452, 1.442695
    %v2683 = vpow.pop %v2682
    %v2684 = vmul.f32 %v2453, 1.442695
    %v2685 = vpow.pop %v2684
    %v2686 = vmul.f32 %v2454, 1.442695
    %v2687 = vpow.pop %v2686
    %v2688 = vmul.f32 %v2455, 1.442695
    %v2689 = vpow.pop %v2688
    %v2690 = vmul.f32 %v2456, 1.442695
    %v2691 = vpow.pop %v2690
    %v2692 = vmul.f32 %v2457, 1.442695
    %v2693 = vpow.pop %v2692
    %v2694 = vmul.f32 %v2458, 1.442695
    %v2695 = vpow.pop %v2694
    %v2696 = vmul.f32 %v2459, 1.442695
    %v2697 = vpow.pop %v2696
    %v2698 = vmul.f32 %v2460, 1.442695
    %v2699 = vpow.pop %v2698
    %v2700 = vmul.f32 %v2461, 1.442695
    %v2701 = vpow.pop %v2700
    %v2702 = vmul.f32 %v2462, 1.442695
    %v2703 = vpow.pop %v2702
    %v2704 = vmul.f32 %v2463, 1.442695
    %v2705 = vpow.pop %v2704
    %v2706 = vmul.f32 %v2464, 1.442695
    %v2707 = vpow.pop %v2706
    %v2708 = vmul.f32 %v2465, 1.442695
    %v2709 = vpow.pop %v2708
    %v2710 = vmul.f32 %v2466, 1.442695
    %v2711 = vpow.pop %v2710
    %v2712 = vmul.f32 %v2467, 1.442695
    %v2713 = vpow.pop %v2712
    %v2714 = vmul.f32 %v2468, 1.442695
    %v2715 = vpow.pop %v2714
    %v2716 = vmul.f32 %v2469, 1.442695
    %v2717 = vpow.pop %v2716
    %v2718 = vmul.f32 %v2470, 1.442695
    %v2719 = vpow.pop %v2718
    %v2720 = vmul.f32 %v2471, 1.442695
    %v2721 = vpow.pop %v2720
    %v2722 = vmul.f32 %v2472, 1.442695
    %v2723 = vpow.pop %v2722
    %v2724 = vmul.f32 %v2473, 1.442695
    %v2725 = vpow.pop %v2724
    %v2726 = vmul.f32 %v2474, 1.442695
    %v2727 = vpow.pop %v2726
    %v2728 = vmul.f32 %v2475, 1.442695
    %v2729 = vpow.pop %v2728
    %v2730 = vmul.f32 %v2476, 1.442695
    %v2731 = vpow.pop %v2730
    %v2732 = vmul.f32 %v2477, 1.442695
    %v2733 = vpow.pop %v2732
    %v2734 = vadd.f32 %v2479, 1.0
    %v2735 = vadd.f32 %v2481, 1.0
    %v2736 = vadd.f32 %v2483, 1.0
    %v2737 = vadd.f32 %v2485, 1.0
    %v2738 = vadd.f32 %v2487, 1.0
    %v2739 = vadd.f32 %v2489, 1.0
    %v2740 = vadd.f32 %v2491, 1.0
    %v2741 = vadd.f32 %v2493, 1.0
    %v2742 = vadd.f32 %v2495, 1.0
    %v2743 = vadd.f32 %v2497, 1.0
    %v2744 = vadd.f32 %v2499, 1.0
    %v2745 = vadd.f32 %v2501, 1.0
    %v2746 = vadd.f32 %v2503, 1.0
    %v2747 = vadd.f32 %v2505, 1.0
    %v2748 = vadd.f32 %v2507, 1.0
    %v2749 = vadd.f32 %v2509, 1.0
    %v2750 = vadd.f32 %v2511, 1.0
    %v2751 = vadd.f32 %v2513, 1.0
    %v2752 = vadd.f32 %v2515, 1.0
    %v2753 = vadd.f32 %v2517, 1.0
    %v2754 = vadd.f32 %v2519, 1.0
    %v2755 = vadd.f32 %v2521, 1.0
    %v2756 = vadd.f32 %v2523, 1.0
    %v2757 = vadd.f32 %v2525, 1.0
    %v2758 = vadd.f32 %v2527, 1.0
    %v2759 = vadd.f32 %v2529, 1.0
    %v2760 = vadd.f32 %v2531, 1.0
    %v2761 = vadd.f32 %v2533, 1.0
    %v2762 = vadd.f32 %v2535, 1.0
    %v2763 = vadd.f32 %v2537, 1.0
    %v2764 = vadd.f32 %v2539, 1.0
    %v2765 = vadd.f32 %v2541, 1.0
    %v2766 = vadd.f32 %v2543, 1.0
    %v2767 = vadd.f32 %v2545, 1.0
    %v2768 = vadd.f32 %v2547, 1.0
    %v2769 = vadd.f32 %v2549, 1.0
    %v2770 = vadd.f32 %v2551, 1.0
    %v2771 = vadd.f32 %v2553, 1.0
    %v2772 = vadd.f32 %v2555, 1.0
    %v2773 = vadd.f32 %v2557, 1.0
    %v2774 = vadd.f32 %v2559, 1.0
    %v2775 = vadd.f32 %v2561, 1.0
    %v2776 = vadd.f32 %v2563, 1.0
    %v2777 = vadd.f32 %v2565, 1.0
    %v2778 = vadd.f32 %v2567, 1.0
    %v2779 = vadd.f32 %v2569, 1.0
    %v2780 = vadd.f32 %v2571, 1.0
    %v2781 = vadd.f32 %v2573, 1.0
    %v2782 = vadd.f32 %v2575, 1.0
    %v2783 = vadd.f32 %v2577, 1.0
    %v2784 = vadd.f32 %v2579, 1.0
    %v2785 = vadd.f32 %v2581, 1.0
    %v2786 = vadd.f32 %v2583, 1.0
    %v2787 = vadd.f32 %v2585, 1.0
    %v2788 = vadd.f32 %v2587, 1.0
    %v2789 = vadd.f32 %v2589, 1.0
    %v2790 = vadd.f32 %v2591, 1.0
    %v2791 = vadd.f32 %v2593, 1.0
    %v2792 = vadd.f32 %v2595, 1.0
    %v2793 = vadd.f32 %v2597, 1.0
    %v2794 = vadd.f32 %v2599, 1.0
    %v2795 = vadd.f32 %v2601, 1.0
    %v2796 = vadd.f32 %v2603, 1.0
    %v2797 = vadd.f32 %v2605, 1.0
    %v2798 = vadd.f32 %v2607, 1.0
    %v2799 = vadd.f32 %v2609, 1.0
    %v2800 = vadd.f32 %v2611, 1.0
    %v2801 = vadd.f32 %v2613, 1.0
    %v2802 = vadd.f32 %v2615, 1.0
    %v2803 = vadd.f32 %v2617, 1.0
    %v2804 = vadd.f32 %v2619, 1.0
    %v2805 = vadd.f32 %v2621, 1.0
    %v2806 = vadd.f32 %v2623, 1.0
    %v2807 = vadd.f32 %v2625, 1.0
    %v2808 = vadd.f32 %v2627, 1.0
    %v2809 = vadd.f32 %v2629, 1.0
    %v2810 = vadd.f32 %v2631, 1.0
    %v2811 = vadd.f32 %v2633, 1.0
    %v2812 = vadd.f32 %v2635, 1.0
    %v2813 = vadd.f32 %v2637, 1.0
    %v2814 = vadd.f32 %v2639, 1.0
    %v2815 = vadd.f32 %v2641, 1.0
    %v2816 = vadd.f32 %v2643, 1.0
    %v2817 = vadd.f32 %v2645, 1.0
    %v2818 = vadd.f32 %v2647, 1.0
    %v2819 = vadd.f32 %v2649, 1.0
    %v2820 = vadd.f32 %v2651, 1.0
    %v2821 = vadd.f32 %v2653, 1.0
    %v2822 = vadd.f32 %v2655, 1.0
    %v2823 = vadd.f32 %v2657, 1.0
    %v2824 = vadd.f32 %v2659, 1.0
    %v2825 = vadd.f32 %v2661, 1.0
    %v2826 = vadd.f32 %v2663, 1.0
    %v2827 = vadd.f32 %v2665, 1.0
    %v2828 = vadd.f32 %v2667, 1.0
    %v2829 = vadd.f32 %v2669, 1.0
    %v2830 = vadd.f32 %v2671, 1.0
    %v2831 = vadd.f32 %v2673, 1.0
    %v2832 = vadd.f32 %v2675, 1.0
    %v2833 = vadd.f32 %v2677, 1.0
    %v2834 = vadd.f32 %v2679, 1.0
    %v2835 = vadd.f32 %v2681, 1.0
    %v2836 = vadd.f32 %v2683, 1.0
    %v2837 = vadd.f32 %v2685, 1.0
    %v2838 = vadd.f32 %v2687, 1.0
    %v2839 = vadd.f32 %v2689, 1.0
    %v2840 = vadd.f32 %v2691, 1.0
    %v2841 = vadd.f32 %v2693, 1.0
    %v2842 = vadd.f32 %v2695, 1.0
    %v2843 = vadd.f32 %v2697, 1.0
    %v2844 = vadd.f32 %v2699, 1.0
    %v2845 = vadd.f32 %v2701, 1.0
    %v2846 = vadd.f32 %v2703, 1.0
    %v2847 = vadd.f32 %v2705, 1.0
    %v2848 = vadd.f32 %v2707, 1.0
    %v2849 = vadd.f32 %v2709, 1.0
    %v2850 = vadd.f32 %v2711, 1.0
    %v2851 = vadd.f32 %v2713, 1.0
    %v2852 = vadd.f32 %v2715, 1.0
    %v2853 = vadd.f32 %v2717, 1.0
    %v2854 = vadd.f32 %v2719, 1.0
    %v2855 = vadd.f32 %v2721, 1.0
    %v2856 = vadd.f32 %v2723, 1.0
    %v2857 = vadd.f32 %v2725, 1.0
    %v2858 = vadd.f32 %v2727, 1.0
    %v2859 = vadd.f32 %v2729, 1.0
    %v2860 = vadd.f32 %v2731, 1.0
    %v2861 = vadd.f32 %v2733, 1.0
    %v2862 = vrcp.pop %v2734
    %v2863 = vmul.f32 %v2734, %v2862
    %v2864 = vsub.f32 1.0, %v2863
    %v2865 = vmul.f32 %v2862, %v2864
    %v2866 = vadd.f32 %v2862, %v2865
    %vm2867 = vweird.f32 %v2734
    %vm2868 = vweird.f32 %v2862
    %vm2869 = vmor %vm2867, %vm2868
    %v2870 = vsel %vm2869, %v2862, %v2866
    %v2871 = vand.u32 2147483647, %v2734
    %vm2872 = vcmp.eq.f32.partialorder %v2871, 8.507059e+37
    %v2873 = vand.u32 %v2734, 2147483648
    %v2874 = vor.u32 1.1754944e-38, %v2873
    %v2875 = vsel %vm2872, %v2874, %v2870
    %v2876 = vmul.f32 1.0, %v2875
    %v2877 = vrcp.pop %v2735
    %v2878 = vmul.f32 %v2735, %v2877
    %v2879 = vsub.f32 1.0, %v2878
    %v2880 = vmul.f32 %v2877, %v2879
    %v2881 = vadd.f32 %v2877, %v2880
    %vm2882 = vweird.f32 %v2735
    %vm2883 = vweird.f32 %v2877
    %vm2884 = vmor %vm2882, %vm2883
    %v2885 = vsel %vm2884, %v2877, %v2881
    %v2886 = vand.u32 2147483647, %v2735
    %vm2887 = vcmp.eq.f32.partialorder %v2886, 8.507059e+37
    %v2888 = vand.u32 %v2735, 2147483648
    %v2889 = vor.u32 1.1754944e-38, %v2888
    %v2890 = vsel %vm2887, %v2889, %v2885
    %v2891 = vmul.f32 1.0, %v2890
    %v2892 = vrcp.pop %v2736
    %v2893 = vmul.f32 %v2736, %v2892
    %v2894 = vsub.f32 1.0, %v2893
    %v2895 = vmul.f32 %v2892, %v2894
    %v2896 = vadd.f32 %v2892, %v2895
    %vm2897 = vweird.f32 %v2736
    %vm2898 = vweird.f32 %v2892
    %vm2899 = vmor %vm2897, %vm2898
    %v2900 = vsel %vm2899, %v2892, %v2896
    %v2901 = vand.u32 2147483647, %v2736
    %vm2902 = vcmp.eq.f32.partialorder %v2901, 8.507059e+37
    %v2903 = vand.u32 %v2736, 2147483648
    %v2904 = vor.u32 1.1754944e-38, %v2903
    %v2905 = vsel %vm2902, %v2904, %v2900
    %v2906 = vmul.f32 1.0, %v2905
    %v2907 = vrcp.pop %v2737
    %v2908 = vmul.f32 %v2737, %v2907
    %v2909 = vsub.f32 1.0, %v2908
    %v2910 = vmul.f32 %v2907, %v2909
    %v2911 = vadd.f32 %v2907, %v2910
    %vm2912 = vweird.f32 %v2737
    %vm2913 = vweird.f32 %v2907
    %vm2914 = vmor %vm2912, %vm2913
    %v2915 = vsel %vm2914, %v2907, %v2911
    %v2916 = vand.u32 2147483647, %v2737
    %vm2917 = vcmp.eq.f32.partialorder %v2916, 8.507059e+37
    %v2918 = vand.u32 %v2737, 2147483648
    %v2919 = vor.u32 1.1754944e-38, %v2918
    %v2920 = vsel %vm2917, %v2919, %v2915
    %v2921 = vmul.f32 1.0, %v2920
    %v2922 = vrcp.pop %v2738
    %v2923 = vmul.f32 %v2738, %v2922
    %v2924 = vsub.f32 1.0, %v2923
    %v2925 = vmul.f32 %v2922, %v2924
    %v2926 = vadd.f32 %v2922, %v2925
    %vm2927 = vweird.f32 %v2738
    %vm2928 = vweird.f32 %v2922
    %vm2929 = vmor %vm2927, %vm2928
    %v2930 = vsel %vm2929, %v2922, %v2926
    %v2931 = vand.u32 2147483647, %v2738
    %vm2932 = vcmp.eq.f32.partialorder %v2931, 8.507059e+37
    %v2933 = vand.u32 %v2738, 2147483648
    %v2934 = vor.u32 1.1754944e-38, %v2933
    %v2935 = vsel %vm2932, %v2934, %v2930
    %v2936 = vmul.f32 1.0, %v2935
    %v2937 = vrcp.pop %v2739
    %v2938 = vmul.f32 %v2739, %v2937
    %v2939 = vsub.f32 1.0, %v2938
    %v2940 = vmul.f32 %v2937, %v2939
    %v2941 = vadd.f32 %v2937, %v2940
    %vm2942 = vweird.f32 %v2739
    %vm2943 = vweird.f32 %v2937
    %vm2944 = vmor %vm2942, %vm2943
    %v2945 = vsel %vm2944, %v2937, %v2941
    %v2946 = vand.u32 2147483647, %v2739
    %vm2947 = vcmp.eq.f32.partialorder %v2946, 8.507059e+37
    %v2948 = vand.u32 %v2739, 2147483648
    %v2949 = vor.u32 1.1754944e-38, %v2948
    %v2950 = vsel %vm2947, %v2949, %v2945
    %v2951 = vmul.f32 1.0, %v2950
    %v2952 = vrcp.pop %v2740
    %v2953 = vmul.f32 %v2740, %v2952
    %v2954 = vsub.f32 1.0, %v2953
    %v2955 = vmul.f32 %v2952, %v2954
    %v2956 = vadd.f32 %v2952, %v2955
    %vm2957 = vweird.f32 %v2740
    %vm2958 = vweird.f32 %v2952
    %vm2959 = vmor %vm2957, %vm2958
    %v2960 = vsel %vm2959, %v2952, %v2956
    %v2961 = vand.u32 2147483647, %v2740
    %vm2962 = vcmp.eq.f32.partialorder %v2961, 8.507059e+37
    %v2963 = vand.u32 %v2740, 2147483648
    %v2964 = vor.u32 1.1754944e-38, %v2963
    %v2965 = vsel %vm2962, %v2964, %v2960
    %v2966 = vmul.f32 1.0, %v2965
    %v2967 = vrcp.pop %v2741
    %v2968 = vmul.f32 %v2741, %v2967
    %v2969 = vsub.f32 1.0, %v2968
    %v2970 = vmul.f32 %v2967, %v2969
    %v2971 = vadd.f32 %v2967, %v2970
    %vm2972 = vweird.f32 %v2741
    %vm2973 = vweird.f32 %v2967
    %vm2974 = vmor %vm2972, %vm2973
    %v2975 = vsel %vm2974, %v2967, %v2971
    %v2976 = vand.u32 2147483647, %v2741
    %vm2977 = vcmp.eq.f32.partialorder %v2976, 8.507059e+37
    %v2978 = vand.u32 %v2741, 2147483648
    %v2979 = vor.u32 1.1754944e-38, %v2978
    %v2980 = vsel %vm2977, %v2979, %v2975
    %v2981 = vmul.f32 1.0, %v2980
    %v2982 = vrcp.pop %v2742
    %v2983 = vmul.f32 %v2742, %v2982
    %v2984 = vsub.f32 1.0, %v2983
    %v2985 = vmul.f32 %v2982, %v2984
    %v2986 = vadd.f32 %v2982, %v2985
    %vm2987 = vweird.f32 %v2742
    %vm2988 = vweird.f32 %v2982
    %vm2989 = vmor %vm2987, %vm2988
    %v2990 = vsel %vm2989, %v2982, %v2986
    %v2991 = vand.u32 2147483647, %v2742
    %vm2992 = vcmp.eq.f32.partialorder %v2991, 8.507059e+37
    %v2993 = vand.u32 %v2742, 2147483648
    %v2994 = vor.u32 1.1754944e-38, %v2993
    %v2995 = vsel %vm2992, %v2994, %v2990
    %v2996 = vmul.f32 1.0, %v2995
    %v2997 = vrcp.pop %v2743
    %v2998 = vmul.f32 %v2743, %v2997
    %v2999 = vsub.f32 1.0, %v2998
    %v3000 = vmul.f32 %v2997, %v2999
    %v3001 = vadd.f32 %v2997, %v3000
    %vm3002 = vweird.f32 %v2743
    %vm3003 = vweird.f32 %v2997
    %vm3004 = vmor %vm3002, %vm3003
    %v3005 = vsel %vm3004, %v2997, %v3001
    %v3006 = vand.u32 2147483647, %v2743
    %vm3007 = vcmp.eq.f32.partialorder %v3006, 8.507059e+37
    %v3008 = vand.u32 %v2743, 2147483648
    %v3009 = vor.u32 1.1754944e-38, %v3008
    %v3010 = vsel %vm3007, %v3009, %v3005
    %v3011 = vmul.f32 1.0, %v3010
    %v3012 = vrcp.pop %v2744
    %v3013 = vmul.f32 %v2744, %v3012
    %v3014 = vsub.f32 1.0, %v3013
    %v3015 = vmul.f32 %v3012, %v3014
    %v3016 = vadd.f32 %v3012, %v3015
    %vm3017 = vweird.f32 %v2744
    %vm3018 = vweird.f32 %v3012
    %vm3019 = vmor %vm3017, %vm3018
    %v3020 = vsel %vm3019, %v3012, %v3016
    %v3021 = vand.u32 2147483647, %v2744
    %vm3022 = vcmp.eq.f32.partialorder %v3021, 8.507059e+37
    %v3023 = vand.u32 %v2744, 2147483648
    %v3024 = vor.u32 1.1754944e-38, %v3023
    %v3025 = vsel %vm3022, %v3024, %v3020
    %v3026 = vmul.f32 1.0, %v3025
    %v3027 = vrcp.pop %v2745
    %v3028 = vmul.f32 %v2745, %v3027
    %v3029 = vsub.f32 1.0, %v3028
    %v3030 = vmul.f32 %v3027, %v3029
    %v3031 = vadd.f32 %v3027, %v3030
    %vm3032 = vweird.f32 %v2745
    %vm3033 = vweird.f32 %v3027
    %vm3034 = vmor %vm3032, %vm3033
    %v3035 = vsel %vm3034, %v3027, %v3031
    %v3036 = vand.u32 2147483647, %v2745
    %vm3037 = vcmp.eq.f32.partialorder %v3036, 8.507059e+37
    %v3038 = vand.u32 %v2745, 2147483648
    %v3039 = vor.u32 1.1754944e-38, %v3038
    %v3040 = vsel %vm3037, %v3039, %v3035
    %v3041 = vmul.f32 1.0, %v3040
    %v3042 = vrcp.pop %v2746
    %v3043 = vmul.f32 %v2746, %v3042
    %v3044 = vsub.f32 1.0, %v3043
    %v3045 = vmul.f32 %v3042, %v3044
    %v3046 = vadd.f32 %v3042, %v3045
    %vm3047 = vweird.f32 %v2746
    %vm3048 = vweird.f32 %v3042
    %vm3049 = vmor %vm3047, %vm3048
    %v3050 = vsel %vm3049, %v3042, %v3046
    %v3051 = vand.u32 2147483647, %v2746
    %vm3052 = vcmp.eq.f32.partialorder %v3051, 8.507059e+37
    %v3053 = vand.u32 %v2746, 2147483648
    %v3054 = vor.u32 1.1754944e-38, %v3053
    %v3055 = vsel %vm3052, %v3054, %v3050
    %v3056 = vmul.f32 1.0, %v3055
    %v3057 = vrcp.pop %v2747
    %v3058 = vmul.f32 %v2747, %v3057
    %v3059 = vsub.f32 1.0, %v3058
    %v3060 = vmul.f32 %v3057, %v3059
    %v3061 = vadd.f32 %v3057, %v3060
    %vm3062 = vweird.f32 %v2747
    %vm3063 = vweird.f32 %v3057
    %vm3064 = vmor %vm3062, %vm3063
    %v3065 = vsel %vm3064, %v3057, %v3061
    %v3066 = vand.u32 2147483647, %v2747
    %vm3067 = vcmp.eq.f32.partialorder %v3066, 8.507059e+37
    %v3068 = vand.u32 %v2747, 2147483648
    %v3069 = vor.u32 1.1754944e-38, %v3068
    %v3070 = vsel %vm3067, %v3069, %v3065
    %v3071 = vmul.f32 1.0, %v3070
    %v3072 = vrcp.pop %v2748
    %v3073 = vmul.f32 %v2748, %v3072
    %v3074 = vsub.f32 1.0, %v3073
    %v3075 = vmul.f32 %v3072, %v3074
    %v3076 = vadd.f32 %v3072, %v3075
    %vm3077 = vweird.f32 %v2748
    %vm3078 = vweird.f32 %v3072
    %vm3079 = vmor %vm3077, %vm3078
    %v3080 = vsel %vm3079, %v3072, %v3076
    %v3081 = vand.u32 2147483647, %v2748
    %vm3082 = vcmp.eq.f32.partialorder %v3081, 8.507059e+37
    %v3083 = vand.u32 %v2748, 2147483648
    %v3084 = vor.u32 1.1754944e-38, %v3083
    %v3085 = vsel %vm3082, %v3084, %v3080
    %v3086 = vmul.f32 1.0, %v3085
    %v3087 = vrcp.pop %v2749
    %v3088 = vmul.f32 %v2749, %v3087
    %v3089 = vsub.f32 1.0, %v3088
    %v3090 = vmul.f32 %v3087, %v3089
    %v3091 = vadd.f32 %v3087, %v3090
    %vm3092 = vweird.f32 %v2749
    %vm3093 = vweird.f32 %v3087
    %vm3094 = vmor %vm3092, %vm3093
    %v3095 = vsel %vm3094, %v3087, %v3091
    %v3096 = vand.u32 2147483647, %v2749
    %vm3097 = vcmp.eq.f32.partialorder %v3096, 8.507059e+37
    %v3098 = vand.u32 %v2749, 2147483648
    %v3099 = vor.u32 1.1754944e-38, %v3098
    %v3100 = vsel %vm3097, %v3099, %v3095
    %v3101 = vmul.f32 1.0, %v3100
    %v3102 = vrcp.pop %v2750
    %v3103 = vmul.f32 %v2750, %v3102
    %v3104 = vsub.f32 1.0, %v3103
    %v3105 = vmul.f32 %v3102, %v3104
    %v3106 = vadd.f32 %v3102, %v3105
    %vm3107 = vweird.f32 %v2750
    %vm3108 = vweird.f32 %v3102
    %vm3109 = vmor %vm3107, %vm3108
    %v3110 = vsel %vm3109, %v3102, %v3106
    %v3111 = vand.u32 2147483647, %v2750
    %vm3112 = vcmp.eq.f32.partialorder %v3111, 8.507059e+37
    %v3113 = vand.u32 %v2750, 2147483648
    %v3114 = vor.u32 1.1754944e-38, %v3113
    %v3115 = vsel %vm3112, %v3114, %v3110
    %v3116 = vmul.f32 1.0, %v3115
    %v3117 = vrcp.pop %v2751
    %v3118 = vmul.f32 %v2751, %v3117
    %v3119 = vsub.f32 1.0, %v3118
    %v3120 = vmul.f32 %v3117, %v3119
    %v3121 = vadd.f32 %v3117, %v3120
    %vm3122 = vweird.f32 %v2751
    %vm3123 = vweird.f32 %v3117
    %vm3124 = vmor %vm3122, %vm3123
    %v3125 = vsel %vm3124, %v3117, %v3121
    %v3126 = vand.u32 2147483647, %v2751
    %vm3127 = vcmp.eq.f32.partialorder %v3126, 8.507059e+37
    %v3128 = vand.u32 %v2751, 2147483648
    %v3129 = vor.u32 1.1754944e-38, %v3128
    %v3130 = vsel %vm3127, %v3129, %v3125
    %v3131 = vmul.f32 1.0, %v3130
    %v3132 = vrcp.pop %v2752
    %v3133 = vmul.f32 %v2752, %v3132
    %v3134 = vsub.f32 1.0, %v3133
    %v3135 = vmul.f32 %v3132, %v3134
    %v3136 = vadd.f32 %v3132, %v3135
    %vm3137 = vweird.f32 %v2752
    %vm3138 = vweird.f32 %v3132
    %vm3139 = vmor %vm3137, %vm3138
    %v3140 = vsel %vm3139, %v3132, %v3136
    %v3141 = vand.u32 2147483647, %v2752
    %vm3142 = vcmp.eq.f32.partialorder %v3141, 8.507059e+37
    %v3143 = vand.u32 %v2752, 2147483648
    %v3144 = vor.u32 1.1754944e-38, %v3143
    %v3145 = vsel %vm3142, %v3144, %v3140
    %v3146 = vmul.f32 1.0, %v3145
    %v3147 = vrcp.pop %v2753
    %v3148 = vmul.f32 %v2753, %v3147
    %v3149 = vsub.f32 1.0, %v3148
    %v3150 = vmul.f32 %v3147, %v3149
    %v3151 = vadd.f32 %v3147, %v3150
    %vm3152 = vweird.f32 %v2753
    %vm3153 = vweird.f32 %v3147
    %vm3154 = vmor %vm3152, %vm3153
    %v3155 = vsel %vm3154, %v3147, %v3151
    %v3156 = vand.u32 2147483647, %v2753
    %vm3157 = vcmp.eq.f32.partialorder %v3156, 8.507059e+37
    %v3158 = vand.u32 %v2753, 2147483648
    %v3159 = vor.u32 1.1754944e-38, %v3158
    %v3160 = vsel %vm3157, %v3159, %v3155
    %v3161 = vmul.f32 1.0, %v3160
    %v3162 = vrcp.pop %v2754
    %v3163 = vmul.f32 %v2754, %v3162
    %v3164 = vsub.f32 1.0, %v3163
    %v3165 = vmul.f32 %v3162, %v3164
    %v3166 = vadd.f32 %v3162, %v3165
    %vm3167 = vweird.f32 %v2754
    %vm3168 = vweird.f32 %v3162
    %vm3169 = vmor %vm3167, %vm3168
    %v3170 = vsel %vm3169, %v3162, %v3166
    %v3171 = vand.u32 2147483647, %v2754
    %vm3172 = vcmp.eq.f32.partialorder %v3171, 8.507059e+37
    %v3173 = vand.u32 %v2754, 2147483648
    %v3174 = vor.u32 1.1754944e-38, %v3173
    %v3175 = vsel %vm3172, %v3174, %v3170
    %v3176 = vmul.f32 1.0, %v3175
    %v3177 = vrcp.pop %v2755
    %v3178 = vmul.f32 %v2755, %v3177
    %v3179 = vsub.f32 1.0, %v3178
    %v3180 = vmul.f32 %v3177, %v3179
    %v3181 = vadd.f32 %v3177, %v3180
    %vm3182 = vweird.f32 %v2755
    %vm3183 = vweird.f32 %v3177
    %vm3184 = vmor %vm3182, %vm3183
    %v3185 = vsel %vm3184, %v3177, %v3181
    %v3186 = vand.u32 2147483647, %v2755
    %vm3187 = vcmp.eq.f32.partialorder %v3186, 8.507059e+37
    %v3188 = vand.u32 %v2755, 2147483648
    %v3189 = vor.u32 1.1754944e-38, %v3188
    %v3190 = vsel %vm3187, %v3189, %v3185
    %v3191 = vmul.f32 1.0, %v3190
    %v3192 = vrcp.pop %v2756
    %v3193 = vmul.f32 %v2756, %v3192
    %v3194 = vsub.f32 1.0, %v3193
    %v3195 = vmul.f32 %v3192, %v3194
    %v3196 = vadd.f32 %v3192, %v3195
    %vm3197 = vweird.f32 %v2756
    %vm3198 = vweird.f32 %v3192
    %vm3199 = vmor %vm3197, %vm3198
    %v3200 = vsel %vm3199, %v3192, %v3196
    %v3201 = vand.u32 2147483647, %v2756
    %vm3202 = vcmp.eq.f32.partialorder %v3201, 8.507059e+37
    %v3203 = vand.u32 %v2756, 2147483648
    %v3204 = vor.u32 1.1754944e-38, %v3203
    %v3205 = vsel %vm3202, %v3204, %v3200
    %v3206 = vmul.f32 1.0, %v3205
    %v3207 = vrcp.pop %v2757
    %v3208 = vmul.f32 %v2757, %v3207
    %v3209 = vsub.f32 1.0, %v3208
    %v3210 = vmul.f32 %v3207, %v3209
    %v3211 = vadd.f32 %v3207, %v3210
    %vm3212 = vweird.f32 %v2757
    %vm3213 = vweird.f32 %v3207
    %vm3214 = vmor %vm3212, %vm3213
    %v3215 = vsel %vm3214, %v3207, %v3211
    %v3216 = vand.u32 2147483647, %v2757
    %vm3217 = vcmp.eq.f32.partialorder %v3216, 8.507059e+37
    %v3218 = vand.u32 %v2757, 2147483648
    %v3219 = vor.u32 1.1754944e-38, %v3218
    %v3220 = vsel %vm3217, %v3219, %v3215
    %v3221 = vmul.f32 1.0, %v3220
    %v3222 = vrcp.pop %v2758
    %v3223 = vmul.f32 %v2758, %v3222
    %v3224 = vsub.f32 1.0, %v3223
    %v3225 = vmul.f32 %v3222, %v3224
    %v3226 = vadd.f32 %v3222, %v3225
    %vm3227 = vweird.f32 %v2758
    %vm3228 = vweird.f32 %v3222
    %vm3229 = vmor %vm3227, %vm3228
    %v3230 = vsel %vm3229, %v3222, %v3226
    %v3231 = vand.u32 2147483647, %v2758
    %vm3232 = vcmp.eq.f32.partialorder %v3231, 8.507059e+37
    %v3233 = vand.u32 %v2758, 2147483648
    %v3234 = vor.u32 1.1754944e-38, %v3233
    %v3235 = vsel %vm3232, %v3234, %v3230
    %v3236 = vmul.f32 1.0, %v3235
    %v3237 = vrcp.pop %v2759
    %v3238 = vmul.f32 %v2759, %v3237
    %v3239 = vsub.f32 1.0, %v3238
    %v3240 = vmul.f32 %v3237, %v3239
    %v3241 = vadd.f32 %v3237, %v3240
    %vm3242 = vweird.f32 %v2759
    %vm3243 = vweird.f32 %v3237
    %vm3244 = vmor %vm3242, %vm3243
    %v3245 = vsel %vm3244, %v3237, %v3241
    %v3246 = vand.u32 2147483647, %v2759
    %vm3247 = vcmp.eq.f32.partialorder %v3246, 8.507059e+37
    %v3248 = vand.u32 %v2759, 2147483648
    %v3249 = vor.u32 1.1754944e-38, %v3248
    %v3250 = vsel %vm3247, %v3249, %v3245
    %v3251 = vmul.f32 1.0, %v3250
    %v3252 = vrcp.pop %v2760
    %v3253 = vmul.f32 %v2760, %v3252
    %v3254 = vsub.f32 1.0, %v3253
    %v3255 = vmul.f32 %v3252, %v3254
    %v3256 = vadd.f32 %v3252, %v3255
    %vm3257 = vweird.f32 %v2760
    %vm3258 = vweird.f32 %v3252
    %vm3259 = vmor %vm3257, %vm3258
    %v3260 = vsel %vm3259, %v3252, %v3256
    %v3261 = vand.u32 2147483647, %v2760
    %vm3262 = vcmp.eq.f32.partialorder %v3261, 8.507059e+37
    %v3263 = vand.u32 %v2760, 2147483648
    %v3264 = vor.u32 1.1754944e-38, %v3263
    %v3265 = vsel %vm3262, %v3264, %v3260
    %v3266 = vmul.f32 1.0, %v3265
    %v3267 = vrcp.pop %v2761
    %v3268 = vmul.f32 %v2761, %v3267
    %v3269 = vsub.f32 1.0, %v3268
    %v3270 = vmul.f32 %v3267, %v3269
    %v3271 = vadd.f32 %v3267, %v3270
    %vm3272 = vweird.f32 %v2761
    %vm3273 = vweird.f32 %v3267
    %vm3274 = vmor %vm3272, %vm3273
    %v3275 = vsel %vm3274, %v3267, %v3271
    %v3276 = vand.u32 2147483647, %v2761
    %vm3277 = vcmp.eq.f32.partialorder %v3276, 8.507059e+37
    %v3278 = vand.u32 %v2761, 2147483648
    %v3279 = vor.u32 1.1754944e-38, %v3278
    %v3280 = vsel %vm3277, %v3279, %v3275
    %v3281 = vmul.f32 1.0, %v3280
    %v3282 = vrcp.pop %v2762
    %v3283 = vmul.f32 %v2762, %v3282
    %v3284 = vsub.f32 1.0, %v3283
    %v3285 = vmul.f32 %v3282, %v3284
    %v3286 = vadd.f32 %v3282, %v3285
    %vm3287 = vweird.f32 %v2762
    %vm3288 = vweird.f32 %v3282
    %vm3289 = vmor %vm3287, %vm3288
    %v3290 = vsel %vm3289, %v3282, %v3286
    %v3291 = vand.u32 2147483647, %v2762
    %vm3292 = vcmp.eq.f32.partialorder %v3291, 8.507059e+37
    %v3293 = vand.u32 %v2762, 2147483648
    %v3294 = vor.u32 1.1754944e-38, %v3293
    %v3295 = vsel %vm3292, %v3294, %v3290
    %v3296 = vmul.f32 1.0, %v3295
    %v3297 = vrcp.pop %v2763
    %v3298 = vmul.f32 %v2763, %v3297
    %v3299 = vsub.f32 1.0, %v3298
    %v3300 = vmul.f32 %v3297, %v3299
    %v3301 = vadd.f32 %v3297, %v3300
    %vm3302 = vweird.f32 %v2763
    %vm3303 = vweird.f32 %v3297
    %vm3304 = vmor %vm3302, %vm3303
    %v3305 = vsel %vm3304, %v3297, %v3301
    %v3306 = vand.u32 2147483647, %v2763
    %vm3307 = vcmp.eq.f32.partialorder %v3306, 8.507059e+37
    %v3308 = vand.u32 %v2763, 2147483648
    %v3309 = vor.u32 1.1754944e-38, %v3308
    %v3310 = vsel %vm3307, %v3309, %v3305
    %v3311 = vmul.f32 1.0, %v3310
    %v3312 = vrcp.pop %v2764
    %v3313 = vmul.f32 %v2764, %v3312
    %v3314 = vsub.f32 1.0, %v3313
    %v3315 = vmul.f32 %v3312, %v3314
    %v3316 = vadd.f32 %v3312, %v3315
    %vm3317 = vweird.f32 %v2764
    %vm3318 = vweird.f32 %v3312
    %vm3319 = vmor %vm3317, %vm3318
    %v3320 = vsel %vm3319, %v3312, %v3316
    %v3321 = vand.u32 2147483647, %v2764
    %vm3322 = vcmp.eq.f32.partialorder %v3321, 8.507059e+37
    %v3323 = vand.u32 %v2764, 2147483648
    %v3324 = vor.u32 1.1754944e-38, %v3323
    %v3325 = vsel %vm3322, %v3324, %v3320
    %v3326 = vmul.f32 1.0, %v3325
    %v3327 = vrcp.pop %v2765
    %v3328 = vmul.f32 %v2765, %v3327
    %v3329 = vsub.f32 1.0, %v3328
    %v3330 = vmul.f32 %v3327, %v3329
    %v3331 = vadd.f32 %v3327, %v3330
    %vm3332 = vweird.f32 %v2765
    %vm3333 = vweird.f32 %v3327
    %vm3334 = vmor %vm3332, %vm3333
    %v3335 = vsel %vm3334, %v3327, %v3331
    %v3336 = vand.u32 2147483647, %v2765
    %vm3337 = vcmp.eq.f32.partialorder %v3336, 8.507059e+37
    %v3338 = vand.u32 %v2765, 2147483648
    %v3339 = vor.u32 1.1754944e-38, %v3338
    %v3340 = vsel %vm3337, %v3339, %v3335
    %v3341 = vmul.f32 1.0, %v3340
    %v3342 = vrcp.pop %v2766
    %v3343 = vmul.f32 %v2766, %v3342
    %v3344 = vsub.f32 1.0, %v3343
    %v3345 = vmul.f32 %v3342, %v3344
    %v3346 = vadd.f32 %v3342, %v3345
    %vm3347 = vweird.f32 %v2766
    %vm3348 = vweird.f32 %v3342
    %vm3349 = vmor %vm3347, %vm3348
    %v3350 = vsel %vm3349, %v3342, %v3346
    %v3351 = vand.u32 2147483647, %v2766
    %vm3352 = vcmp.eq.f32.partialorder %v3351, 8.507059e+37
    %v3353 = vand.u32 %v2766, 2147483648
    %v3354 = vor.u32 1.1754944e-38, %v3353
    %v3355 = vsel %vm3352, %v3354, %v3350
    %v3356 = vmul.f32 1.0, %v3355
    %v3357 = vrcp.pop %v2767
    %v3358 = vmul.f32 %v2767, %v3357
    %v3359 = vsub.f32 1.0, %v3358
    %v3360 = vmul.f32 %v3357, %v3359
    %v3361 = vadd.f32 %v3357, %v3360
    %vm3362 = vweird.f32 %v2767
    %vm3363 = vweird.f32 %v3357
    %vm3364 = vmor %vm3362, %vm3363
    %v3365 = vsel %vm3364, %v3357, %v3361
    %v3366 = vand.u32 2147483647, %v2767
    %vm3367 = vcmp.eq.f32.partialorder %v3366, 8.507059e+37
    %v3368 = vand.u32 %v2767, 2147483648
    %v3369 = vor.u32 1.1754944e-38, %v3368
    %v3370 = vsel %vm3367, %v3369, %v3365
    %v3371 = vmul.f32 1.0, %v3370
    %v3372 = vrcp.pop %v2768
    %v3373 = vmul.f32 %v2768, %v3372
    %v3374 = vsub.f32 1.0, %v3373
    %v3375 = vmul.f32 %v3372, %v3374
    %v3376 = vadd.f32 %v3372, %v3375
    %vm3377 = vweird.f32 %v2768
    %vm3378 = vweird.f32 %v3372
    %vm3379 = vmor %vm3377, %vm3378
    %v3380 = vsel %vm3379, %v3372, %v3376
    %v3381 = vand.u32 2147483647, %v2768
    %vm3382 = vcmp.eq.f32.partialorder %v3381, 8.507059e+37
    %v3383 = vand.u32 %v2768, 2147483648
    %v3384 = vor.u32 1.1754944e-38, %v3383
    %v3385 = vsel %vm3382, %v3384, %v3380
    %v3386 = vmul.f32 1.0, %v3385
    %v3387 = vrcp.pop %v2769
    %v3388 = vmul.f32 %v2769, %v3387
    %v3389 = vsub.f32 1.0, %v3388
    %v3390 = vmul.f32 %v3387, %v3389
    %v3391 = vadd.f32 %v3387, %v3390
    %vm3392 = vweird.f32 %v2769
    %vm3393 = vweird.f32 %v3387
    %vm3394 = vmor %vm3392, %vm3393
    %v3395 = vsel %vm3394, %v3387, %v3391
    %v3396 = vand.u32 2147483647, %v2769
    %vm3397 = vcmp.eq.f32.partialorder %v3396, 8.507059e+37
    %v3398 = vand.u32 %v2769, 2147483648
    %v3399 = vor.u32 1.1754944e-38, %v3398
    %v3400 = vsel %vm3397, %v3399, %v3395
    %v3401 = vmul.f32 1.0, %v3400
    %v3402 = vrcp.pop %v2770
    %v3403 = vmul.f32 %v2770, %v3402
    %v3404 = vsub.f32 1.0, %v3403
    %v3405 = vmul.f32 %v3402, %v3404
    %v3406 = vadd.f32 %v3402, %v3405
    %vm3407 = vweird.f32 %v2770
    %vm3408 = vweird.f32 %v3402
    %vm3409 = vmor %vm3407, %vm3408
    %v3410 = vsel %vm3409, %v3402, %v3406
    %v3411 = vand.u32 2147483647, %v2770
    %vm3412 = vcmp.eq.f32.partialorder %v3411, 8.507059e+37
    %v3413 = vand.u32 %v2770, 2147483648
    %v3414 = vor.u32 1.1754944e-38, %v3413
    %v3415 = vsel %vm3412, %v3414, %v3410
    %v3416 = vmul.f32 1.0, %v3415
    %v3417 = vrcp.pop %v2771
    %v3418 = vmul.f32 %v2771, %v3417
    %v3419 = vsub.f32 1.0, %v3418
    %v3420 = vmul.f32 %v3417, %v3419
    %v3421 = vadd.f32 %v3417, %v3420
    %vm3422 = vweird.f32 %v2771
    %vm3423 = vweird.f32 %v3417
    %vm3424 = vmor %vm3422, %vm3423
    %v3425 = vsel %vm3424, %v3417, %v3421
    %v3426 = vand.u32 2147483647, %v2771
    %vm3427 = vcmp.eq.f32.partialorder %v3426, 8.507059e+37
    %v3428 = vand.u32 %v2771, 2147483648
    %v3429 = vor.u32 1.1754944e-38, %v3428
    %v3430 = vsel %vm3427, %v3429, %v3425
    %v3431 = vmul.f32 1.0, %v3430
    %v3432 = vrcp.pop %v2772
    %v3433 = vmul.f32 %v2772, %v3432
    %v3434 = vsub.f32 1.0, %v3433
    %v3435 = vmul.f32 %v3432, %v3434
    %v3436 = vadd.f32 %v3432, %v3435
    %vm3437 = vweird.f32 %v2772
    %vm3438 = vweird.f32 %v3432
    %vm3439 = vmor %vm3437, %vm3438
    %v3440 = vsel %vm3439, %v3432, %v3436
    %v3441 = vand.u32 2147483647, %v2772
    %vm3442 = vcmp.eq.f32.partialorder %v3441, 8.507059e+37
    %v3443 = vand.u32 %v2772, 2147483648
    %v3444 = vor.u32 1.1754944e-38, %v3443
    %v3445 = vsel %vm3442, %v3444, %v3440
    %v3446 = vmul.f32 1.0, %v3445
    %v3447 = vrcp.pop %v2773
    %v3448 = vmul.f32 %v2773, %v3447
    %v3449 = vsub.f32 1.0, %v3448
    %v3450 = vmul.f32 %v3447, %v3449
    %v3451 = vadd.f32 %v3447, %v3450
    %vm3452 = vweird.f32 %v2773
    %vm3453 = vweird.f32 %v3447
    %vm3454 = vmor %vm3452, %vm3453
    %v3455 = vsel %vm3454, %v3447, %v3451
    %v3456 = vand.u32 2147483647, %v2773
    %vm3457 = vcmp.eq.f32.partialorder %v3456, 8.507059e+37
    %v3458 = vand.u32 %v2773, 2147483648
    %v3459 = vor.u32 1.1754944e-38, %v3458
    %v3460 = vsel %vm3457, %v3459, %v3455
    %v3461 = vmul.f32 1.0, %v3460
    %v3462 = vrcp.pop %v2774
    %v3463 = vmul.f32 %v2774, %v3462
    %v3464 = vsub.f32 1.0, %v3463
    %v3465 = vmul.f32 %v3462, %v3464
    %v3466 = vadd.f32 %v3462, %v3465
    %vm3467 = vweird.f32 %v2774
    %vm3468 = vweird.f32 %v3462
    %vm3469 = vmor %vm3467, %vm3468
    %v3470 = vsel %vm3469, %v3462, %v3466
    %v3471 = vand.u32 2147483647, %v2774
    %vm3472 = vcmp.eq.f32.partialorder %v3471, 8.507059e+37
    %v3473 = vand.u32 %v2774, 2147483648
    %v3474 = vor.u32 1.1754944e-38, %v3473
    %v3475 = vsel %vm3472, %v3474, %v3470
    %v3476 = vmul.f32 1.0, %v3475
    %v3477 = vrcp.pop %v2775
    %v3478 = vmul.f32 %v2775, %v3477
    %v3479 = vsub.f32 1.0, %v3478
    %v3480 = vmul.f32 %v3477, %v3479
    %v3481 = vadd.f32 %v3477, %v3480
    %vm3482 = vweird.f32 %v2775
    %vm3483 = vweird.f32 %v3477
    %vm3484 = vmor %vm3482, %vm3483
    %v3485 = vsel %vm3484, %v3477, %v3481
    %v3486 = vand.u32 2147483647, %v2775
    %vm3487 = vcmp.eq.f32.partialorder %v3486, 8.507059e+37
    %v3488 = vand.u32 %v2775, 2147483648
    %v3489 = vor.u32 1.1754944e-38, %v3488
    %v3490 = vsel %vm3487, %v3489, %v3485
    %v3491 = vmul.f32 1.0, %v3490
    %v3492 = vrcp.pop %v2776
    %v3493 = vmul.f32 %v2776, %v3492
    %v3494 = vsub.f32 1.0, %v3493
    %v3495 = vmul.f32 %v3492, %v3494
    %v3496 = vadd.f32 %v3492, %v3495
    %vm3497 = vweird.f32 %v2776
    %vm3498 = vweird.f32 %v3492
    %vm3499 = vmor %vm3497, %vm3498
    %v3500 = vsel %vm3499, %v3492, %v3496
    %v3501 = vand.u32 2147483647, %v2776
    %vm3502 = vcmp.eq.f32.partialorder %v3501, 8.507059e+37
    %v3503 = vand.u32 %v2776, 2147483648
    %v3504 = vor.u32 1.1754944e-38, %v3503
    %v3505 = vsel %vm3502, %v3504, %v3500
    %v3506 = vmul.f32 1.0, %v3505
    %v3507 = vrcp.pop %v2777
    %v3508 = vmul.f32 %v2777, %v3507
    %v3509 = vsub.f32 1.0, %v3508
    %v3510 = vmul.f32 %v3507, %v3509
    %v3511 = vadd.f32 %v3507, %v3510
    %vm3512 = vweird.f32 %v2777
    %vm3513 = vweird.f32 %v3507
    %vm3514 = vmor %vm3512, %vm3513
    %v3515 = vsel %vm3514, %v3507, %v3511
    %v3516 = vand.u32 2147483647, %v2777
    %vm3517 = vcmp.eq.f32.partialorder %v3516, 8.507059e+37
    %v3518 = vand.u32 %v2777, 2147483648
    %v3519 = vor.u32 1.1754944e-38, %v3518
    %v3520 = vsel %vm3517, %v3519, %v3515
    %v3521 = vmul.f32 1.0, %v3520
    %v3522 = vrcp.pop %v2778
    %v3523 = vmul.f32 %v2778, %v3522
    %v3524 = vsub.f32 1.0, %v3523
    %v3525 = vmul.f32 %v3522, %v3524
    %v3526 = vadd.f32 %v3522, %v3525
    %vm3527 = vweird.f32 %v2778
    %vm3528 = vweird.f32 %v3522
    %vm3529 = vmor %vm3527, %vm3528
    %v3530 = vsel %vm3529, %v3522, %v3526
    %v3531 = vand.u32 2147483647, %v2778
    %vm3532 = vcmp.eq.f32.partialorder %v3531, 8.507059e+37
    %v3533 = vand.u32 %v2778, 2147483648
    %v3534 = vor.u32 1.1754944e-38, %v3533
    %v3535 = vsel %vm3532, %v3534, %v3530
    %v3536 = vmul.f32 1.0, %v3535
    %v3537 = vrcp.pop %v2779
    %v3538 = vmul.f32 %v2779, %v3537
    %v3539 = vsub.f32 1.0, %v3538
    %v3540 = vmul.f32 %v3537, %v3539
    %v3541 = vadd.f32 %v3537, %v3540
    %vm3542 = vweird.f32 %v2779
    %vm3543 = vweird.f32 %v3537
    %vm3544 = vmor %vm3542, %vm3543
    %v3545 = vsel %vm3544, %v3537, %v3541
    %v3546 = vand.u32 2147483647, %v2779
    %vm3547 = vcmp.eq.f32.partialorder %v3546, 8.507059e+37
    %v3548 = vand.u32 %v2779, 2147483648
    %v3549 = vor.u32 1.1754944e-38, %v3548
    %v3550 = vsel %vm3547, %v3549, %v3545
    %v3551 = vmul.f32 1.0, %v3550
    %v3552 = vrcp.pop %v2780
    %v3553 = vmul.f32 %v2780, %v3552
    %v3554 = vsub.f32 1.0, %v3553
    %v3555 = vmul.f32 %v3552, %v3554
    %v3556 = vadd.f32 %v3552, %v3555
    %vm3557 = vweird.f32 %v2780
    %vm3558 = vweird.f32 %v3552
    %vm3559 = vmor %vm3557, %vm3558
    %v3560 = vsel %vm3559, %v3552, %v3556
    %v3561 = vand.u32 2147483647, %v2780
    %vm3562 = vcmp.eq.f32.partialorder %v3561, 8.507059e+37
    %v3563 = vand.u32 %v2780, 2147483648
    %v3564 = vor.u32 1.1754944e-38, %v3563
    %v3565 = vsel %vm3562, %v3564, %v3560
    %v3566 = vmul.f32 1.0, %v3565
    %v3567 = vrcp.pop %v2781
    %v3568 = vmul.f32 %v2781, %v3567
    %v3569 = vsub.f32 1.0, %v3568
    %v3570 = vmul.f32 %v3567, %v3569
    %v3571 = vadd.f32 %v3567, %v3570
    %vm3572 = vweird.f32 %v2781
    %vm3573 = vweird.f32 %v3567
    %vm3574 = vmor %vm3572, %vm3573
    %v3575 = vsel %vm3574, %v3567, %v3571
    %v3576 = vand.u32 2147483647, %v2781
    %vm3577 = vcmp.eq.f32.partialorder %v3576, 8.507059e+37
    %v3578 = vand.u32 %v2781, 2147483648
    %v3579 = vor.u32 1.1754944e-38, %v3578
    %v3580 = vsel %vm3577, %v3579, %v3575
    %v3581 = vmul.f32 1.0, %v3580
    %v3582 = vrcp.pop %v2782
    %v3583 = vmul.f32 %v2782, %v3582
    %v3584 = vsub.f32 1.0, %v3583
    %v3585 = vmul.f32 %v3582, %v3584
    %v3586 = vadd.f32 %v3582, %v3585
    %vm3587 = vweird.f32 %v2782
    %vm3588 = vweird.f32 %v3582
    %vm3589 = vmor %vm3587, %vm3588
    %v3590 = vsel %vm3589, %v3582, %v3586
    %v3591 = vand.u32 2147483647, %v2782
    %vm3592 = vcmp.eq.f32.partialorder %v3591, 8.507059e+37
    %v3593 = vand.u32 %v2782, 2147483648
    %v3594 = vor.u32 1.1754944e-38, %v3593
    %v3595 = vsel %vm3592, %v3594, %v3590
    %v3596 = vmul.f32 1.0, %v3595
    %v3597 = vrcp.pop %v2783
    %v3598 = vmul.f32 %v2783, %v3597
    %v3599 = vsub.f32 1.0, %v3598
    %v3600 = vmul.f32 %v3597, %v3599
    %v3601 = vadd.f32 %v3597, %v3600
    %vm3602 = vweird.f32 %v2783
    %vm3603 = vweird.f32 %v3597
    %vm3604 = vmor %vm3602, %vm3603
    %v3605 = vsel %vm3604, %v3597, %v3601
    %v3606 = vand.u32 2147483647, %v2783
    %vm3607 = vcmp.eq.f32.partialorder %v3606, 8.507059e+37
    %v3608 = vand.u32 %v2783, 2147483648
    %v3609 = vor.u32 1.1754944e-38, %v3608
    %v3610 = vsel %vm3607, %v3609, %v3605
    %v3611 = vmul.f32 1.0, %v3610
    %v3612 = vrcp.pop %v2784
    %v3613 = vmul.f32 %v2784, %v3612
    %v3614 = vsub.f32 1.0, %v3613
    %v3615 = vmul.f32 %v3612, %v3614
    %v3616 = vadd.f32 %v3612, %v3615
    %vm3617 = vweird.f32 %v2784
    %vm3618 = vweird.f32 %v3612
    %vm3619 = vmor %vm3617, %vm3618
    %v3620 = vsel %vm3619, %v3612, %v3616
    %v3621 = vand.u32 2147483647, %v2784
    %vm3622 = vcmp.eq.f32.partialorder %v3621, 8.507059e+37
    %v3623 = vand.u32 %v2784, 2147483648
    %v3624 = vor.u32 1.1754944e-38, %v3623
    %v3625 = vsel %vm3622, %v3624, %v3620
    %v3626 = vmul.f32 1.0, %v3625
    %v3627 = vrcp.pop %v2785
    %v3628 = vmul.f32 %v2785, %v3627
    %v3629 = vsub.f32 1.0, %v3628
    %v3630 = vmul.f32 %v3627, %v3629
    %v3631 = vadd.f32 %v3627, %v3630
    %vm3632 = vweird.f32 %v2785
    %vm3633 = vweird.f32 %v3627
    %vm3634 = vmor %vm3632, %vm3633
    %v3635 = vsel %vm3634, %v3627, %v3631
    %v3636 = vand.u32 2147483647, %v2785
    %vm3637 = vcmp.eq.f32.partialorder %v3636, 8.507059e+37
    %v3638 = vand.u32 %v2785, 2147483648
    %v3639 = vor.u32 1.1754944e-38, %v3638
    %v3640 = vsel %vm3637, %v3639, %v3635
    %v3641 = vmul.f32 1.0, %v3640
    %v3642 = vrcp.pop %v2786
    %v3643 = vmul.f32 %v2786, %v3642
    %v3644 = vsub.f32 1.0, %v3643
    %v3645 = vmul.f32 %v3642, %v3644
    %v3646 = vadd.f32 %v3642, %v3645
    %vm3647 = vweird.f32 %v2786
    %vm3648 = vweird.f32 %v3642
    %vm3649 = vmor %vm3647, %vm3648
    %v3650 = vsel %vm3649, %v3642, %v3646
    %v3651 = vand.u32 2147483647, %v2786
    %vm3652 = vcmp.eq.f32.partialorder %v3651, 8.507059e+37
    %v3653 = vand.u32 %v2786, 2147483648
    %v3654 = vor.u32 1.1754944e-38, %v3653
    %v3655 = vsel %vm3652, %v3654, %v3650
    %v3656 = vmul.f32 1.0, %v3655
    %v3657 = vrcp.pop %v2787
    %v3658 = vmul.f32 %v2787, %v3657
    %v3659 = vsub.f32 1.0, %v3658
    %v3660 = vmul.f32 %v3657, %v3659
    %v3661 = vadd.f32 %v3657, %v3660
    %vm3662 = vweird.f32 %v2787
    %vm3663 = vweird.f32 %v3657
    %vm3664 = vmor %vm3662, %vm3663
    %v3665 = vsel %vm3664, %v3657, %v3661
    %v3666 = vand.u32 2147483647, %v2787
    %vm3667 = vcmp.eq.f32.partialorder %v3666, 8.507059e+37
    %v3668 = vand.u32 %v2787, 2147483648
    %v3669 = vor.u32 1.1754944e-38, %v3668
    %v3670 = vsel %vm3667, %v3669, %v3665
    %v3671 = vmul.f32 1.0, %v3670
    %v3672 = vrcp.pop %v2788
    %v3673 = vmul.f32 %v2788, %v3672
    %v3674 = vsub.f32 1.0, %v3673
    %v3675 = vmul.f32 %v3672, %v3674
    %v3676 = vadd.f32 %v3672, %v3675
    %vm3677 = vweird.f32 %v2788
    %vm3678 = vweird.f32 %v3672
    %vm3679 = vmor %vm3677, %vm3678
    %v3680 = vsel %vm3679, %v3672, %v3676
    %v3681 = vand.u32 2147483647, %v2788
    %vm3682 = vcmp.eq.f32.partialorder %v3681, 8.507059e+37
    %v3683 = vand.u32 %v2788, 2147483648
    %v3684 = vor.u32 1.1754944e-38, %v3683
    %v3685 = vsel %vm3682, %v3684, %v3680
    %v3686 = vmul.f32 1.0, %v3685
    %v3687 = vrcp.pop %v2789
    %v3688 = vmul.f32 %v2789, %v3687
    %v3689 = vsub.f32 1.0, %v3688
    %v3690 = vmul.f32 %v3687, %v3689
    %v3691 = vadd.f32 %v3687, %v3690
    %vm3692 = vweird.f32 %v2789
    %vm3693 = vweird.f32 %v3687
    %vm3694 = vmor %vm3692, %vm3693
    %v3695 = vsel %vm3694, %v3687, %v3691
    %v3696 = vand.u32 2147483647, %v2789
    %vm3697 = vcmp.eq.f32.partialorder %v3696, 8.507059e+37
    %v3698 = vand.u32 %v2789, 2147483648
    %v3699 = vor.u32 1.1754944e-38, %v3698
    %v3700 = vsel %vm3697, %v3699, %v3695
    %v3701 = vmul.f32 1.0, %v3700
    %v3702 = vrcp.pop %v2790
    %v3703 = vmul.f32 %v2790, %v3702
    %v3704 = vsub.f32 1.0, %v3703
    %v3705 = vmul.f32 %v3702, %v3704
    %v3706 = vadd.f32 %v3702, %v3705
    %vm3707 = vweird.f32 %v2790
    %vm3708 = vweird.f32 %v3702
    %vm3709 = vmor %vm3707, %vm3708
    %v3710 = vsel %vm3709, %v3702, %v3706
    %v3711 = vand.u32 2147483647, %v2790
    %vm3712 = vcmp.eq.f32.partialorder %v3711, 8.507059e+37
    %v3713 = vand.u32 %v2790, 2147483648
    %v3714 = vor.u32 1.1754944e-38, %v3713
    %v3715 = vsel %vm3712, %v3714, %v3710
    %v3716 = vmul.f32 1.0, %v3715
    %v3717 = vrcp.pop %v2791
    %v3718 = vmul.f32 %v2791, %v3717
    %v3719 = vsub.f32 1.0, %v3718
    %v3720 = vmul.f32 %v3717, %v3719
    %v3721 = vadd.f32 %v3717, %v3720
    %vm3722 = vweird.f32 %v2791
    %vm3723 = vweird.f32 %v3717
    %vm3724 = vmor %vm3722, %vm3723
    %v3725 = vsel %vm3724, %v3717, %v3721
    %v3726 = vand.u32 2147483647, %v2791
    %vm3727 = vcmp.eq.f32.partialorder %v3726, 8.507059e+37
    %v3728 = vand.u32 %v2791, 2147483648
    %v3729 = vor.u32 1.1754944e-38, %v3728
    %v3730 = vsel %vm3727, %v3729, %v3725
    %v3731 = vmul.f32 1.0, %v3730
    %v3732 = vrcp.pop %v2792
    %v3733 = vmul.f32 %v2792, %v3732
    %v3734 = vsub.f32 1.0, %v3733
    %v3735 = vmul.f32 %v3732, %v3734
    %v3736 = vadd.f32 %v3732, %v3735
    %vm3737 = vweird.f32 %v2792
    %vm3738 = vweird.f32 %v3732
    %vm3739 = vmor %vm3737, %vm3738
    %v3740 = vsel %vm3739, %v3732, %v3736
    %v3741 = vand.u32 2147483647, %v2792
    %vm3742 = vcmp.eq.f32.partialorder %v3741, 8.507059e+37
    %v3743 = vand.u32 %v2792, 2147483648
    %v3744 = vor.u32 1.1754944e-38, %v3743
    %v3745 = vsel %vm3742, %v3744, %v3740
    %v3746 = vmul.f32 1.0, %v3745
    %v3747 = vrcp.pop %v2793
    %v3748 = vmul.f32 %v2793, %v3747
    %v3749 = vsub.f32 1.0, %v3748
    %v3750 = vmul.f32 %v3747, %v3749
    %v3751 = vadd.f32 %v3747, %v3750
    %vm3752 = vweird.f32 %v2793
    %vm3753 = vweird.f32 %v3747
    %vm3754 = vmor %vm3752, %vm3753
    %v3755 = vsel %vm3754, %v3747, %v3751
    %v3756 = vand.u32 2147483647, %v2793
    %vm3757 = vcmp.eq.f32.partialorder %v3756, 8.507059e+37
    %v3758 = vand.u32 %v2793, 2147483648
    %v3759 = vor.u32 1.1754944e-38, %v3758
    %v3760 = vsel %vm3757, %v3759, %v3755
    %v3761 = vmul.f32 1.0, %v3760
    %v3762 = vrcp.pop %v2794
    %v3763 = vmul.f32 %v2794, %v3762
    %v3764 = vsub.f32 1.0, %v3763
    %v3765 = vmul.f32 %v3762, %v3764
    %v3766 = vadd.f32 %v3762, %v3765
    %vm3767 = vweird.f32 %v2794
    %vm3768 = vweird.f32 %v3762
    %vm3769 = vmor %vm3767, %vm3768
    %v3770 = vsel %vm3769, %v3762, %v3766
    %v3771 = vand.u32 2147483647, %v2794
    %vm3772 = vcmp.eq.f32.partialorder %v3771, 8.507059e+37
    %v3773 = vand.u32 %v2794, 2147483648
    %v3774 = vor.u32 1.1754944e-38, %v3773
    %v3775 = vsel %vm3772, %v3774, %v3770
    %v3776 = vmul.f32 1.0, %v3775
    %v3777 = vrcp.pop %v2795
    %v3778 = vmul.f32 %v2795, %v3777
    %v3779 = vsub.f32 1.0, %v3778
    %v3780 = vmul.f32 %v3777, %v3779
    %v3781 = vadd.f32 %v3777, %v3780
    %vm3782 = vweird.f32 %v2795
    %vm3783 = vweird.f32 %v3777
    %vm3784 = vmor %vm3782, %vm3783
    %v3785 = vsel %vm3784, %v3777, %v3781
    %v3786 = vand.u32 2147483647, %v2795
    %vm3787 = vcmp.eq.f32.partialorder %v3786, 8.507059e+37
    %v3788 = vand.u32 %v2795, 2147483648
    %v3789 = vor.u32 1.1754944e-38, %v3788
    %v3790 = vsel %vm3787, %v3789, %v3785
    %v3791 = vmul.f32 1.0, %v3790
    %v3792 = vrcp.pop %v2796
    %v3793 = vmul.f32 %v2796, %v3792
    %v3794 = vsub.f32 1.0, %v3793
    %v3795 = vmul.f32 %v3792, %v3794
    %v3796 = vadd.f32 %v3792, %v3795
    %vm3797 = vweird.f32 %v2796
    %vm3798 = vweird.f32 %v3792
    %vm3799 = vmor %vm3797, %vm3798
    %v3800 = vsel %vm3799, %v3792, %v3796
    %v3801 = vand.u32 2147483647, %v2796
    %vm3802 = vcmp.eq.f32.partialorder %v3801, 8.507059e+37
    %v3803 = vand.u32 %v2796, 2147483648
    %v3804 = vor.u32 1.1754944e-38, %v3803
    %v3805 = vsel %vm3802, %v3804, %v3800
    %v3806 = vmul.f32 1.0, %v3805
    %v3807 = vrcp.pop %v2797
    %v3808 = vmul.f32 %v2797, %v3807
    %v3809 = vsub.f32 1.0, %v3808
    %v3810 = vmul.f32 %v3807, %v3809
    %v3811 = vadd.f32 %v3807, %v3810
    %vm3812 = vweird.f32 %v2797
    %vm3813 = vweird.f32 %v3807
    %vm3814 = vmor %vm3812, %vm3813
    %v3815 = vsel %vm3814, %v3807, %v3811
    %v3816 = vand.u32 2147483647, %v2797
    %vm3817 = vcmp.eq.f32.partialorder %v3816, 8.507059e+37
    %v3818 = vand.u32 %v2797, 2147483648
    %v3819 = vor.u32 1.1754944e-38, %v3818
    %v3820 = vsel %vm3817, %v3819, %v3815
    %v3821 = vmul.f32 1.0, %v3820
    %v3822 = vrcp.pop %v2798
    %v3823 = vmul.f32 %v2798, %v3822
    %v3824 = vsub.f32 1.0, %v3823
    %v3825 = vmul.f32 %v3822, %v3824
    %v3826 = vadd.f32 %v3822, %v3825
    %vm3827 = vweird.f32 %v2798
    %vm3828 = vweird.f32 %v3822
    %vm3829 = vmor %vm3827, %vm3828
    %v3830 = vsel %vm3829, %v3822, %v3826
    %v3831 = vand.u32 2147483647, %v2798
    %vm3832 = vcmp.eq.f32.partialorder %v3831, 8.507059e+37
    %v3833 = vand.u32 %v2798, 2147483648
    %v3834 = vor.u32 1.1754944e-38, %v3833
    %v3835 = vsel %vm3832, %v3834, %v3830
    %v3836 = vmul.f32 1.0, %v3835
    %v3837 = vrcp.pop %v2799
    %v3838 = vmul.f32 %v2799, %v3837
    %v3839 = vsub.f32 1.0, %v3838
    %v3840 = vmul.f32 %v3837, %v3839
    %v3841 = vadd.f32 %v3837, %v3840
    %vm3842 = vweird.f32 %v2799
    %vm3843 = vweird.f32 %v3837
    %vm3844 = vmor %vm3842, %vm3843
    %v3845 = vsel %vm3844, %v3837, %v3841
    %v3846 = vand.u32 2147483647, %v2799
    %vm3847 = vcmp.eq.f32.partialorder %v3846, 8.507059e+37
    %v3848 = vand.u32 %v2799, 2147483648
    %v3849 = vor.u32 1.1754944e-38, %v3848
    %v3850 = vsel %vm3847, %v3849, %v3845
    %v3851 = vmul.f32 1.0, %v3850
    %v3852 = vrcp.pop %v2800
    %v3853 = vmul.f32 %v2800, %v3852
    %v3854 = vsub.f32 1.0, %v3853
    %v3855 = vmul.f32 %v3852, %v3854
    %v3856 = vadd.f32 %v3852, %v3855
    %vm3857 = vweird.f32 %v2800
    %vm3858 = vweird.f32 %v3852
    %vm3859 = vmor %vm3857, %vm3858
    %v3860 = vsel %vm3859, %v3852, %v3856
    %v3861 = vand.u32 2147483647, %v2800
    %vm3862 = vcmp.eq.f32.partialorder %v3861, 8.507059e+37
    %v3863 = vand.u32 %v2800, 2147483648
    %v3864 = vor.u32 1.1754944e-38, %v3863
    %v3865 = vsel %vm3862, %v3864, %v3860
    %v3866 = vmul.f32 1.0, %v3865
    %v3867 = vrcp.pop %v2801
    %v3868 = vmul.f32 %v2801, %v3867
    %v3869 = vsub.f32 1.0, %v3868
    %v3870 = vmul.f32 %v3867, %v3869
    %v3871 = vadd.f32 %v3867, %v3870
    %vm3872 = vweird.f32 %v2801
    %vm3873 = vweird.f32 %v3867
    %vm3874 = vmor %vm3872, %vm3873
    %v3875 = vsel %vm3874, %v3867, %v3871
    %v3876 = vand.u32 2147483647, %v2801
    %vm3877 = vcmp.eq.f32.partialorder %v3876, 8.507059e+37
    %v3878 = vand.u32 %v2801, 2147483648
    %v3879 = vor.u32 1.1754944e-38, %v3878
    %v3880 = vsel %vm3877, %v3879, %v3875
    %v3881 = vmul.f32 1.0, %v3880
    %v3882 = vrcp.pop %v2802
    %v3883 = vmul.f32 %v2802, %v3882
    %v3884 = vsub.f32 1.0, %v3883
    %v3885 = vmul.f32 %v3882, %v3884
    %v3886 = vadd.f32 %v3882, %v3885
    %vm3887 = vweird.f32 %v2802
    %vm3888 = vweird.f32 %v3882
    %vm3889 = vmor %vm3887, %vm3888
    %v3890 = vsel %vm3889, %v3882, %v3886
    %v3891 = vand.u32 2147483647, %v2802
    %vm3892 = vcmp.eq.f32.partialorder %v3891, 8.507059e+37
    %v3893 = vand.u32 %v2802, 2147483648
    %v3894 = vor.u32 1.1754944e-38, %v3893
    %v3895 = vsel %vm3892, %v3894, %v3890
    %v3896 = vmul.f32 1.0, %v3895
    %v3897 = vrcp.pop %v2803
    %v3898 = vmul.f32 %v2803, %v3897
    %v3899 = vsub.f32 1.0, %v3898
    %v3900 = vmul.f32 %v3897, %v3899
    %v3901 = vadd.f32 %v3897, %v3900
    %vm3902 = vweird.f32 %v2803
    %vm3903 = vweird.f32 %v3897
    %vm3904 = vmor %vm3902, %vm3903
    %v3905 = vsel %vm3904, %v3897, %v3901
    %v3906 = vand.u32 2147483647, %v2803
    %vm3907 = vcmp.eq.f32.partialorder %v3906, 8.507059e+37
    %v3908 = vand.u32 %v2803, 2147483648
    %v3909 = vor.u32 1.1754944e-38, %v3908
    %v3910 = vsel %vm3907, %v3909, %v3905
    %v3911 = vmul.f32 1.0, %v3910
    %v3912 = vrcp.pop %v2804
    %v3913 = vmul.f32 %v2804, %v3912
    %v3914 = vsub.f32 1.0, %v3913
    %v3915 = vmul.f32 %v3912, %v3914
    %v3916 = vadd.f32 %v3912, %v3915
    %vm3917 = vweird.f32 %v2804
    %vm3918 = vweird.f32 %v3912
    %vm3919 = vmor %vm3917, %vm3918
    %v3920 = vsel %vm3919, %v3912, %v3916
    %v3921 = vand.u32 2147483647, %v2804
    %vm3922 = vcmp.eq.f32.partialorder %v3921, 8.507059e+37
    %v3923 = vand.u32 %v2804, 2147483648
    %v3924 = vor.u32 1.1754944e-38, %v3923
    %v3925 = vsel %vm3922, %v3924, %v3920
    %v3926 = vmul.f32 1.0, %v3925
    %v3927 = vrcp.pop %v2805
    %v3928 = vmul.f32 %v2805, %v3927
    %v3929 = vsub.f32 1.0, %v3928
    %v3930 = vmul.f32 %v3927, %v3929
    %v3931 = vadd.f32 %v3927, %v3930
    %vm3932 = vweird.f32 %v2805
    %vm3933 = vweird.f32 %v3927
    %vm3934 = vmor %vm3932, %vm3933
    %v3935 = vsel %vm3934, %v3927, %v3931
    %v3936 = vand.u32 2147483647, %v2805
    %vm3937 = vcmp.eq.f32.partialorder %v3936, 8.507059e+37
    %v3938 = vand.u32 %v2805, 2147483648
    %v3939 = vor.u32 1.1754944e-38, %v3938
    %v3940 = vsel %vm3937, %v3939, %v3935
    %v3941 = vmul.f32 1.0, %v3940
    %v3942 = vrcp.pop %v2806
    %v3943 = vmul.f32 %v2806, %v3942
    %v3944 = vsub.f32 1.0, %v3943
    %v3945 = vmul.f32 %v3942, %v3944
    %v3946 = vadd.f32 %v3942, %v3945
    %vm3947 = vweird.f32 %v2806
    %vm3948 = vweird.f32 %v3942
    %vm3949 = vmor %vm3947, %vm3948
    %v3950 = vsel %vm3949, %v3942, %v3946
    %v3951 = vand.u32 2147483647, %v2806
    %vm3952 = vcmp.eq.f32.partialorder %v3951, 8.507059e+37
    %v3953 = vand.u32 %v2806, 2147483648
    %v3954 = vor.u32 1.1754944e-38, %v3953
    %v3955 = vsel %vm3952, %v3954, %v3950
    %v3956 = vmul.f32 1.0, %v3955
    %v3957 = vrcp.pop %v2807
    %v3958 = vmul.f32 %v2807, %v3957
    %v3959 = vsub.f32 1.0, %v3958
    %v3960 = vmul.f32 %v3957, %v3959
    %v3961 = vadd.f32 %v3957, %v3960
    %vm3962 = vweird.f32 %v2807
    %vm3963 = vweird.f32 %v3957
    %vm3964 = vmor %vm3962, %vm3963
    %v3965 = vsel %vm3964, %v3957, %v3961
    %v3966 = vand.u32 2147483647, %v2807
    %vm3967 = vcmp.eq.f32.partialorder %v3966, 8.507059e+37
    %v3968 = vand.u32 %v2807, 2147483648
    %v3969 = vor.u32 1.1754944e-38, %v3968
    %v3970 = vsel %vm3967, %v3969, %v3965
    %v3971 = vmul.f32 1.0, %v3970
    %v3972 = vrcp.pop %v2808
    %v3973 = vmul.f32 %v2808, %v3972
    %v3974 = vsub.f32 1.0, %v3973
    %v3975 = vmul.f32 %v3972, %v3974
    %v3976 = vadd.f32 %v3972, %v3975
    %vm3977 = vweird.f32 %v2808
    %vm3978 = vweird.f32 %v3972
    %vm3979 = vmor %vm3977, %vm3978
    %v3980 = vsel %vm3979, %v3972, %v3976
    %v3981 = vand.u32 2147483647, %v2808
    %vm3982 = vcmp.eq.f32.partialorder %v3981, 8.507059e+37
    %v3983 = vand.u32 %v2808, 2147483648
    %v3984 = vor.u32 1.1754944e-38, %v3983
    %v3985 = vsel %vm3982, %v3984, %v3980
    %v3986 = vmul.f32 1.0, %v3985
    %v3987 = vrcp.pop %v2809
    %v3988 = vmul.f32 %v2809, %v3987
    %v3989 = vsub.f32 1.0, %v3988
    %v3990 = vmul.f32 %v3987, %v3989
    %v3991 = vadd.f32 %v3987, %v3990
    %vm3992 = vweird.f32 %v2809
    %vm3993 = vweird.f32 %v3987
    %vm3994 = vmor %vm3992, %vm3993
    %v3995 = vsel %vm3994, %v3987, %v3991
    %v3996 = vand.u32 2147483647, %v2809
    %vm3997 = vcmp.eq.f32.partialorder %v3996, 8.507059e+37
    %v3998 = vand.u32 %v2809, 2147483648
    %v3999 = vor.u32 1.1754944e-38, %v3998
    %v4000 = vsel %vm3997, %v3999, %v3995
    %v4001 = vmul.f32 1.0, %v4000
    %v4002 = vrcp.pop %v2810
    %v4003 = vmul.f32 %v2810, %v4002
    %v4004 = vsub.f32 1.0, %v4003
    %v4005 = vmul.f32 %v4002, %v4004
    %v4006 = vadd.f32 %v4002, %v4005
    %vm4007 = vweird.f32 %v2810
    %vm4008 = vweird.f32 %v4002
    %vm4009 = vmor %vm4007, %vm4008
    %v4010 = vsel %vm4009, %v4002, %v4006
    %v4011 = vand.u32 2147483647, %v2810
    %vm4012 = vcmp.eq.f32.partialorder %v4011, 8.507059e+37
    %v4013 = vand.u32 %v2810, 2147483648
    %v4014 = vor.u32 1.1754944e-38, %v4013
    %v4015 = vsel %vm4012, %v4014, %v4010
    %v4016 = vmul.f32 1.0, %v4015
    %v4017 = vrcp.pop %v2811
    %v4018 = vmul.f32 %v2811, %v4017
    %v4019 = vsub.f32 1.0, %v4018
    %v4020 = vmul.f32 %v4017, %v4019
    %v4021 = vadd.f32 %v4017, %v4020
    %vm4022 = vweird.f32 %v2811
    %vm4023 = vweird.f32 %v4017
    %vm4024 = vmor %vm4022, %vm4023
    %v4025 = vsel %vm4024, %v4017, %v4021
    %v4026 = vand.u32 2147483647, %v2811
    %vm4027 = vcmp.eq.f32.partialorder %v4026, 8.507059e+37
    %v4028 = vand.u32 %v2811, 2147483648
    %v4029 = vor.u32 1.1754944e-38, %v4028
    %v4030 = vsel %vm4027, %v4029, %v4025
    %v4031 = vmul.f32 1.0, %v4030
    %v4032 = vrcp.pop %v2812
    %v4033 = vmul.f32 %v2812, %v4032
    %v4034 = vsub.f32 1.0, %v4033
    %v4035 = vmul.f32 %v4032, %v4034
    %v4036 = vadd.f32 %v4032, %v4035
    %vm4037 = vweird.f32 %v2812
    %vm4038 = vweird.f32 %v4032
    %vm4039 = vmor %vm4037, %vm4038
    %v4040 = vsel %vm4039, %v4032, %v4036
    %v4041 = vand.u32 2147483647, %v2812
    %vm4042 = vcmp.eq.f32.partialorder %v4041, 8.507059e+37
    %v4043 = vand.u32 %v2812, 2147483648
    %v4044 = vor.u32 1.1754944e-38, %v4043
    %v4045 = vsel %vm4042, %v4044, %v4040
    %v4046 = vmul.f32 1.0, %v4045
    %v4047 = vrcp.pop %v2813
    %v4048 = vmul.f32 %v2813, %v4047
    %v4049 = vsub.f32 1.0, %v4048
    %v4050 = vmul.f32 %v4047, %v4049
    %v4051 = vadd.f32 %v4047, %v4050
    %vm4052 = vweird.f32 %v2813
    %vm4053 = vweird.f32 %v4047
    %vm4054 = vmor %vm4052, %vm4053
    %v4055 = vsel %vm4054, %v4047, %v4051
    %v4056 = vand.u32 2147483647, %v2813
    %vm4057 = vcmp.eq.f32.partialorder %v4056, 8.507059e+37
    %v4058 = vand.u32 %v2813, 2147483648
    %v4059 = vor.u32 1.1754944e-38, %v4058
    %v4060 = vsel %vm4057, %v4059, %v4055
    %v4061 = vmul.f32 1.0, %v4060
    %v4062 = vrcp.pop %v2814
    %v4063 = vmul.f32 %v2814, %v4062
    %v4064 = vsub.f32 1.0, %v4063
    %v4065 = vmul.f32 %v4062, %v4064
    %v4066 = vadd.f32 %v4062, %v4065
    %vm4067 = vweird.f32 %v2814
    %vm4068 = vweird.f32 %v4062
    %vm4069 = vmor %vm4067, %vm4068
    %v4070 = vsel %vm4069, %v4062, %v4066
    %v4071 = vand.u32 2147483647, %v2814
    %vm4072 = vcmp.eq.f32.partialorder %v4071, 8.507059e+37
    %v4073 = vand.u32 %v2814, 2147483648
    %v4074 = vor.u32 1.1754944e-38, %v4073
    %v4075 = vsel %vm4072, %v4074, %v4070
    %v4076 = vmul.f32 1.0, %v4075
    %v4077 = vrcp.pop %v2815
    %v4078 = vmul.f32 %v2815, %v4077
    %v4079 = vsub.f32 1.0, %v4078
    %v4080 = vmul.f32 %v4077, %v4079
    %v4081 = vadd.f32 %v4077, %v4080
    %vm4082 = vweird.f32 %v2815
    %vm4083 = vweird.f32 %v4077
    %vm4084 = vmor %vm4082, %vm4083
    %v4085 = vsel %vm4084, %v4077, %v4081
    %v4086 = vand.u32 2147483647, %v2815
    %vm4087 = vcmp.eq.f32.partialorder %v4086, 8.507059e+37
    %v4088 = vand.u32 %v2815, 2147483648
    %v4089 = vor.u32 1.1754944e-38, %v4088
    %v4090 = vsel %vm4087, %v4089, %v4085
    %v4091 = vmul.f32 1.0, %v4090
    %v4092 = vrcp.pop %v2816
    %v4093 = vmul.f32 %v2816, %v4092
    %v4094 = vsub.f32 1.0, %v4093
    %v4095 = vmul.f32 %v4092, %v4094
    %v4096 = vadd.f32 %v4092, %v4095
    %vm4097 = vweird.f32 %v2816
    %vm4098 = vweird.f32 %v4092
    %vm4099 = vmor %vm4097, %vm4098
    %v4100 = vsel %vm4099, %v4092, %v4096
    %v4101 = vand.u32 2147483647, %v2816
    %vm4102 = vcmp.eq.f32.partialorder %v4101, 8.507059e+37
    %v4103 = vand.u32 %v2816, 2147483648
    %v4104 = vor.u32 1.1754944e-38, %v4103
    %v4105 = vsel %vm4102, %v4104, %v4100
    %v4106 = vmul.f32 1.0, %v4105
    %v4107 = vrcp.pop %v2817
    %v4108 = vmul.f32 %v2817, %v4107
    %v4109 = vsub.f32 1.0, %v4108
    %v4110 = vmul.f32 %v4107, %v4109
    %v4111 = vadd.f32 %v4107, %v4110
    %vm4112 = vweird.f32 %v2817
    %vm4113 = vweird.f32 %v4107
    %vm4114 = vmor %vm4112, %vm4113
    %v4115 = vsel %vm4114, %v4107, %v4111
    %v4116 = vand.u32 2147483647, %v2817
    %vm4117 = vcmp.eq.f32.partialorder %v4116, 8.507059e+37
    %v4118 = vand.u32 %v2817, 2147483648
    %v4119 = vor.u32 1.1754944e-38, %v4118
    %v4120 = vsel %vm4117, %v4119, %v4115
    %v4121 = vmul.f32 1.0, %v4120
    %v4122 = vrcp.pop %v2818
    %v4123 = vmul.f32 %v2818, %v4122
    %v4124 = vsub.f32 1.0, %v4123
    %v4125 = vmul.f32 %v4122, %v4124
    %v4126 = vadd.f32 %v4122, %v4125
    %vm4127 = vweird.f32 %v2818
    %vm4128 = vweird.f32 %v4122
    %vm4129 = vmor %vm4127, %vm4128
    %v4130 = vsel %vm4129, %v4122, %v4126
    %v4131 = vand.u32 2147483647, %v2818
    %vm4132 = vcmp.eq.f32.partialorder %v4131, 8.507059e+37
    %v4133 = vand.u32 %v2818, 2147483648
    %v4134 = vor.u32 1.1754944e-38, %v4133
    %v4135 = vsel %vm4132, %v4134, %v4130
    %v4136 = vmul.f32 1.0, %v4135
    %v4137 = vrcp.pop %v2819
    %v4138 = vmul.f32 %v2819, %v4137
    %v4139 = vsub.f32 1.0, %v4138
    %v4140 = vmul.f32 %v4137, %v4139
    %v4141 = vadd.f32 %v4137, %v4140
    %vm4142 = vweird.f32 %v2819
    %vm4143 = vweird.f32 %v4137
    %vm4144 = vmor %vm4142, %vm4143
    %v4145 = vsel %vm4144, %v4137, %v4141
    %v4146 = vand.u32 2147483647, %v2819
    %vm4147 = vcmp.eq.f32.partialorder %v4146, 8.507059e+37
    %v4148 = vand.u32 %v2819, 2147483648
    %v4149 = vor.u32 1.1754944e-38, %v4148
    %v4150 = vsel %vm4147, %v4149, %v4145
    %v4151 = vmul.f32 1.0, %v4150
    %v4152 = vrcp.pop %v2820
    %v4153 = vmul.f32 %v2820, %v4152
    %v4154 = vsub.f32 1.0, %v4153
    %v4155 = vmul.f32 %v4152, %v4154
    %v4156 = vadd.f32 %v4152, %v4155
    %vm4157 = vweird.f32 %v2820
    %vm4158 = vweird.f32 %v4152
    %vm4159 = vmor %vm4157, %vm4158
    %v4160 = vsel %vm4159, %v4152, %v4156
    %v4161 = vand.u32 2147483647, %v2820
    %vm4162 = vcmp.eq.f32.partialorder %v4161, 8.507059e+37
    %v4163 = vand.u32 %v2820, 2147483648
    %v4164 = vor.u32 1.1754944e-38, %v4163
    %v4165 = vsel %vm4162, %v4164, %v4160
    %v4166 = vmul.f32 1.0, %v4165
    %v4167 = vrcp.pop %v2821
    %v4168 = vmul.f32 %v2821, %v4167
    %v4169 = vsub.f32 1.0, %v4168
    %v4170 = vmul.f32 %v4167, %v4169
    %v4171 = vadd.f32 %v4167, %v4170
    %vm4172 = vweird.f32 %v2821
    %vm4173 = vweird.f32 %v4167
    %vm4174 = vmor %vm4172, %vm4173
    %v4175 = vsel %vm4174, %v4167, %v4171
    %v4176 = vand.u32 2147483647, %v2821
    %vm4177 = vcmp.eq.f32.partialorder %v4176, 8.507059e+37
    %v4178 = vand.u32 %v2821, 2147483648
    %v4179 = vor.u32 1.1754944e-38, %v4178
    %v4180 = vsel %vm4177, %v4179, %v4175
    %v4181 = vmul.f32 1.0, %v4180
    %v4182 = vrcp.pop %v2822
    %v4183 = vmul.f32 %v2822, %v4182
    %v4184 = vsub.f32 1.0, %v4183
    %v4185 = vmul.f32 %v4182, %v4184
    %v4186 = vadd.f32 %v4182, %v4185
    %vm4187 = vweird.f32 %v2822
    %vm4188 = vweird.f32 %v4182
    %vm4189 = vmor %vm4187, %vm4188
    %v4190 = vsel %vm4189, %v4182, %v4186
    %v4191 = vand.u32 2147483647, %v2822
    %vm4192 = vcmp.eq.f32.partialorder %v4191, 8.507059e+37
    %v4193 = vand.u32 %v2822, 2147483648
    %v4194 = vor.u32 1.1754944e-38, %v4193
    %v4195 = vsel %vm4192, %v4194, %v4190
    %v4196 = vmul.f32 1.0, %v4195
    %v4197 = vrcp.pop %v2823
    %v4198 = vmul.f32 %v2823, %v4197
    %v4199 = vsub.f32 1.0, %v4198
    %v4200 = vmul.f32 %v4197, %v4199
    %v4201 = vadd.f32 %v4197, %v4200
    %vm4202 = vweird.f32 %v2823
    %vm4203 = vweird.f32 %v4197
    %vm4204 = vmor %vm4202, %vm4203
    %v4205 = vsel %vm4204, %v4197, %v4201
    %v4206 = vand.u32 2147483647, %v2823
    %vm4207 = vcmp.eq.f32.partialorder %v4206, 8.507059e+37
    %v4208 = vand.u32 %v2823, 2147483648
    %v4209 = vor.u32 1.1754944e-38, %v4208
    %v4210 = vsel %vm4207, %v4209, %v4205
    %v4211 = vmul.f32 1.0, %v4210
    %v4212 = vrcp.pop %v2824
    %v4213 = vmul.f32 %v2824, %v4212
    %v4214 = vsub.f32 1.0, %v4213
    %v4215 = vmul.f32 %v4212, %v4214
    %v4216 = vadd.f32 %v4212, %v4215
    %vm4217 = vweird.f32 %v2824
    %vm4218 = vweird.f32 %v4212
    %vm4219 = vmor %vm4217, %vm4218
    %v4220 = vsel %vm4219, %v4212, %v4216
    %v4221 = vand.u32 2147483647, %v2824
    %vm4222 = vcmp.eq.f32.partialorder %v4221, 8.507059e+37
    %v4223 = vand.u32 %v2824, 2147483648
    %v4224 = vor.u32 1.1754944e-38, %v4223
    %v4225 = vsel %vm4222, %v4224, %v4220
    %v4226 = vmul.f32 1.0, %v4225
    %v4227 = vrcp.pop %v2825
    %v4228 = vmul.f32 %v2825, %v4227
    %v4229 = vsub.f32 1.0, %v4228
    %v4230 = vmul.f32 %v4227, %v4229
    %v4231 = vadd.f32 %v4227, %v4230
    %vm4232 = vweird.f32 %v2825
    %vm4233 = vweird.f32 %v4227
    %vm4234 = vmor %vm4232, %vm4233
    %v4235 = vsel %vm4234, %v4227, %v4231
    %v4236 = vand.u32 2147483647, %v2825
    %vm4237 = vcmp.eq.f32.partialorder %v4236, 8.507059e+37
    %v4238 = vand.u32 %v2825, 2147483648
    %v4239 = vor.u32 1.1754944e-38, %v4238
    %v4240 = vsel %vm4237, %v4239, %v4235
    %v4241 = vmul.f32 1.0, %v4240
    %v4242 = vrcp.pop %v2826
    %v4243 = vmul.f32 %v2826, %v4242
    %v4244 = vsub.f32 1.0, %v4243
    %v4245 = vmul.f32 %v4242, %v4244
    %v4246 = vadd.f32 %v4242, %v4245
    %vm4247 = vweird.f32 %v2826
    %vm4248 = vweird.f32 %v4242
    %vm4249 = vmor %vm4247, %vm4248
    %v4250 = vsel %vm4249, %v4242, %v4246
    %v4251 = vand.u32 2147483647, %v2826
    %vm4252 = vcmp.eq.f32.partialorder %v4251, 8.507059e+37
    %v4253 = vand.u32 %v2826, 2147483648
    %v4254 = vor.u32 1.1754944e-38, %v4253
    %v4255 = vsel %vm4252, %v4254, %v4250
    %v4256 = vmul.f32 1.0, %v4255
    %v4257 = vrcp.pop %v2827
    %v4258 = vmul.f32 %v2827, %v4257
    %v4259 = vsub.f32 1.0, %v4258
    %v4260 = vmul.f32 %v4257, %v4259
    %v4261 = vadd.f32 %v4257, %v4260
    %vm4262 = vweird.f32 %v2827
    %vm4263 = vweird.f32 %v4257
    %vm4264 = vmor %vm4262, %vm4263
    %v4265 = vsel %vm4264, %v4257, %v4261
    %v4266 = vand.u32 2147483647, %v2827
    %vm4267 = vcmp.eq.f32.partialorder %v4266, 8.507059e+37
    %v4268 = vand.u32 %v2827, 2147483648
    %v4269 = vor.u32 1.1754944e-38, %v4268
    %v4270 = vsel %vm4267, %v4269, %v4265
    %v4271 = vmul.f32 1.0, %v4270
    %v4272 = vrcp.pop %v2828
    %v4273 = vmul.f32 %v2828, %v4272
    %v4274 = vsub.f32 1.0, %v4273
    %v4275 = vmul.f32 %v4272, %v4274
    %v4276 = vadd.f32 %v4272, %v4275
    %vm4277 = vweird.f32 %v2828
    %vm4278 = vweird.f32 %v4272
    %vm4279 = vmor %vm4277, %vm4278
    %v4280 = vsel %vm4279, %v4272, %v4276
    %v4281 = vand.u32 2147483647, %v2828
    %vm4282 = vcmp.eq.f32.partialorder %v4281, 8.507059e+37
    %v4283 = vand.u32 %v2828, 2147483648
    %v4284 = vor.u32 1.1754944e-38, %v4283
    %v4285 = vsel %vm4282, %v4284, %v4280
    %v4286 = vmul.f32 1.0, %v4285
    %v4287 = vrcp.pop %v2829
    %v4288 = vmul.f32 %v2829, %v4287
    %v4289 = vsub.f32 1.0, %v4288
    %v4290 = vmul.f32 %v4287, %v4289
    %v4291 = vadd.f32 %v4287, %v4290
    %vm4292 = vweird.f32 %v2829
    %vm4293 = vweird.f32 %v4287
    %vm4294 = vmor %vm4292, %vm4293
    %v4295 = vsel %vm4294, %v4287, %v4291
    %v4296 = vand.u32 2147483647, %v2829
    %vm4297 = vcmp.eq.f32.partialorder %v4296, 8.507059e+37
    %v4298 = vand.u32 %v2829, 2147483648
    %v4299 = vor.u32 1.1754944e-38, %v4298
    %v4300 = vsel %vm4297, %v4299, %v4295
    %v4301 = vmul.f32 1.0, %v4300
    %v4302 = vrcp.pop %v2830
    %v4303 = vmul.f32 %v2830, %v4302
    %v4304 = vsub.f32 1.0, %v4303
    %v4305 = vmul.f32 %v4302, %v4304
    %v4306 = vadd.f32 %v4302, %v4305
    %vm4307 = vweird.f32 %v2830
    %vm4308 = vweird.f32 %v4302
    %vm4309 = vmor %vm4307, %vm4308
    %v4310 = vsel %vm4309, %v4302, %v4306
    %v4311 = vand.u32 2147483647, %v2830
    %vm4312 = vcmp.eq.f32.partialorder %v4311, 8.507059e+37
    %v4313 = vand.u32 %v2830, 2147483648
    %v4314 = vor.u32 1.1754944e-38, %v4313
    %v4315 = vsel %vm4312, %v4314, %v4310
    %v4316 = vmul.f32 1.0, %v4315
    %v4317 = vrcp.pop %v2831
    %v4318 = vmul.f32 %v2831, %v4317
    %v4319 = vsub.f32 1.0, %v4318
    %v4320 = vmul.f32 %v4317, %v4319
    %v4321 = vadd.f32 %v4317, %v4320
    %vm4322 = vweird.f32 %v2831
    %vm4323 = vweird.f32 %v4317
    %vm4324 = vmor %vm4322, %vm4323
    %v4325 = vsel %vm4324, %v4317, %v4321
    %v4326 = vand.u32 2147483647, %v2831
    %vm4327 = vcmp.eq.f32.partialorder %v4326, 8.507059e+37
    %v4328 = vand.u32 %v2831, 2147483648
    %v4329 = vor.u32 1.1754944e-38, %v4328
    %v4330 = vsel %vm4327, %v4329, %v4325
    %v4331 = vmul.f32 1.0, %v4330
    %v4332 = vrcp.pop %v2832
    %v4333 = vmul.f32 %v2832, %v4332
    %v4334 = vsub.f32 1.0, %v4333
    %v4335 = vmul.f32 %v4332, %v4334
    %v4336 = vadd.f32 %v4332, %v4335
    %vm4337 = vweird.f32 %v2832
    %vm4338 = vweird.f32 %v4332
    %vm4339 = vmor %vm4337, %vm4338
    %v4340 = vsel %vm4339, %v4332, %v4336
    %v4341 = vand.u32 2147483647, %v2832
    %vm4342 = vcmp.eq.f32.partialorder %v4341, 8.507059e+37
    %v4343 = vand.u32 %v2832, 2147483648
    %v4344 = vor.u32 1.1754944e-38, %v4343
    %v4345 = vsel %vm4342, %v4344, %v4340
    %v4346 = vmul.f32 1.0, %v4345
    %v4347 = vrcp.pop %v2833
    %v4348 = vmul.f32 %v2833, %v4347
    %v4349 = vsub.f32 1.0, %v4348
    %v4350 = vmul.f32 %v4347, %v4349
    %v4351 = vadd.f32 %v4347, %v4350
    %vm4352 = vweird.f32 %v2833
    %vm4353 = vweird.f32 %v4347
    %vm4354 = vmor %vm4352, %vm4353
    %v4355 = vsel %vm4354, %v4347, %v4351
    %v4356 = vand.u32 2147483647, %v2833
    %vm4357 = vcmp.eq.f32.partialorder %v4356, 8.507059e+37
    %v4358 = vand.u32 %v2833, 2147483648
    %v4359 = vor.u32 1.1754944e-38, %v4358
    %v4360 = vsel %vm4357, %v4359, %v4355
    %v4361 = vmul.f32 1.0, %v4360
    %v4362 = vrcp.pop %v2834
    %v4363 = vmul.f32 %v2834, %v4362
    %v4364 = vsub.f32 1.0, %v4363
    %v4365 = vmul.f32 %v4362, %v4364
    %v4366 = vadd.f32 %v4362, %v4365
    %vm4367 = vweird.f32 %v2834
    %vm4368 = vweird.f32 %v4362
    %vm4369 = vmor %vm4367, %vm4368
    %v4370 = vsel %vm4369, %v4362, %v4366
    %v4371 = vand.u32 2147483647, %v2834
    %vm4372 = vcmp.eq.f32.partialorder %v4371, 8.507059e+37
    %v4373 = vand.u32 %v2834, 2147483648
    %v4374 = vor.u32 1.1754944e-38, %v4373
    %v4375 = vsel %vm4372, %v4374, %v4370
    %v4376 = vmul.f32 1.0, %v4375
    %v4377 = vrcp.pop %v2835
    %v4378 = vmul.f32 %v2835, %v4377
    %v4379 = vsub.f32 1.0, %v4378
    %v4380 = vmul.f32 %v4377, %v4379
    %v4381 = vadd.f32 %v4377, %v4380
    %vm4382 = vweird.f32 %v2835
    %vm4383 = vweird.f32 %v4377
    %vm4384 = vmor %vm4382, %vm4383
    %v4385 = vsel %vm4384, %v4377, %v4381
    %v4386 = vand.u32 2147483647, %v2835
    %vm4387 = vcmp.eq.f32.partialorder %v4386, 8.507059e+37
    %v4388 = vand.u32 %v2835, 2147483648
    %v4389 = vor.u32 1.1754944e-38, %v4388
    %v4390 = vsel %vm4387, %v4389, %v4385
    %v4391 = vmul.f32 1.0, %v4390
    %v4392 = vrcp.pop %v2836
    %v4393 = vmul.f32 %v2836, %v4392
    %v4394 = vsub.f32 1.0, %v4393
    %v4395 = vmul.f32 %v4392, %v4394
    %v4396 = vadd.f32 %v4392, %v4395
    %vm4397 = vweird.f32 %v2836
    %vm4398 = vweird.f32 %v4392
    %vm4399 = vmor %vm4397, %vm4398
    %v4400 = vsel %vm4399, %v4392, %v4396
    %v4401 = vand.u32 2147483647, %v2836
    %vm4402 = vcmp.eq.f32.partialorder %v4401, 8.507059e+37
    %v4403 = vand.u32 %v2836, 2147483648
    %v4404 = vor.u32 1.1754944e-38, %v4403
    %v4405 = vsel %vm4402, %v4404, %v4400
    %v4406 = vmul.f32 1.0, %v4405
    %v4407 = vrcp.pop %v2837
    %v4408 = vmul.f32 %v2837, %v4407
    %v4409 = vsub.f32 1.0, %v4408
    %v4410 = vmul.f32 %v4407, %v4409
    %v4411 = vadd.f32 %v4407, %v4410
    %vm4412 = vweird.f32 %v2837
    %vm4413 = vweird.f32 %v4407
    %vm4414 = vmor %vm4412, %vm4413
    %v4415 = vsel %vm4414, %v4407, %v4411
    %v4416 = vand.u32 2147483647, %v2837
    %vm4417 = vcmp.eq.f32.partialorder %v4416, 8.507059e+37
    %v4418 = vand.u32 %v2837, 2147483648
    %v4419 = vor.u32 1.1754944e-38, %v4418
    %v4420 = vsel %vm4417, %v4419, %v4415
    %v4421 = vmul.f32 1.0, %v4420
    %v4422 = vrcp.pop %v2838
    %v4423 = vmul.f32 %v2838, %v4422
    %v4424 = vsub.f32 1.0, %v4423
    %v4425 = vmul.f32 %v4422, %v4424
    %v4426 = vadd.f32 %v4422, %v4425
    %vm4427 = vweird.f32 %v2838
    %vm4428 = vweird.f32 %v4422
    %vm4429 = vmor %vm4427, %vm4428
    %v4430 = vsel %vm4429, %v4422, %v4426
    %v4431 = vand.u32 2147483647, %v2838
    %vm4432 = vcmp.eq.f32.partialorder %v4431, 8.507059e+37
    %v4433 = vand.u32 %v2838, 2147483648
    %v4434 = vor.u32 1.1754944e-38, %v4433
    %v4435 = vsel %vm4432, %v4434, %v4430
    %v4436 = vmul.f32 1.0, %v4435
    %v4437 = vrcp.pop %v2839
    %v4438 = vmul.f32 %v2839, %v4437
    %v4439 = vsub.f32 1.0, %v4438
    %v4440 = vmul.f32 %v4437, %v4439
    %v4441 = vadd.f32 %v4437, %v4440
    %vm4442 = vweird.f32 %v2839
    %vm4443 = vweird.f32 %v4437
    %vm4444 = vmor %vm4442, %vm4443
    %v4445 = vsel %vm4444, %v4437, %v4441
    %v4446 = vand.u32 2147483647, %v2839
    %vm4447 = vcmp.eq.f32.partialorder %v4446, 8.507059e+37
    %v4448 = vand.u32 %v2839, 2147483648
    %v4449 = vor.u32 1.1754944e-38, %v4448
    %v4450 = vsel %vm4447, %v4449, %v4445
    %v4451 = vmul.f32 1.0, %v4450
    %v4452 = vrcp.pop %v2840
    %v4453 = vmul.f32 %v2840, %v4452
    %v4454 = vsub.f32 1.0, %v4453
    %v4455 = vmul.f32 %v4452, %v4454
    %v4456 = vadd.f32 %v4452, %v4455
    %vm4457 = vweird.f32 %v2840
    %vm4458 = vweird.f32 %v4452
    %vm4459 = vmor %vm4457, %vm4458
    %v4460 = vsel %vm4459, %v4452, %v4456
    %v4461 = vand.u32 2147483647, %v2840
    %vm4462 = vcmp.eq.f32.partialorder %v4461, 8.507059e+37
    %v4463 = vand.u32 %v2840, 2147483648
    %v4464 = vor.u32 1.1754944e-38, %v4463
    %v4465 = vsel %vm4462, %v4464, %v4460
    %v4466 = vmul.f32 1.0, %v4465
    %v4467 = vrcp.pop %v2841
    %v4468 = vmul.f32 %v2841, %v4467
    %v4469 = vsub.f32 1.0, %v4468
    %v4470 = vmul.f32 %v4467, %v4469
    %v4471 = vadd.f32 %v4467, %v4470
    %vm4472 = vweird.f32 %v2841
    %vm4473 = vweird.f32 %v4467
    %vm4474 = vmor %vm4472, %vm4473
    %v4475 = vsel %vm4474, %v4467, %v4471
    %v4476 = vand.u32 2147483647, %v2841
    %vm4477 = vcmp.eq.f32.partialorder %v4476, 8.507059e+37
    %v4478 = vand.u32 %v2841, 2147483648
    %v4479 = vor.u32 1.1754944e-38, %v4478
    %v4480 = vsel %vm4477, %v4479, %v4475
    %v4481 = vmul.f32 1.0, %v4480
    %v4482 = vrcp.pop %v2842
    %v4483 = vmul.f32 %v2842, %v4482
    %v4484 = vsub.f32 1.0, %v4483
    %v4485 = vmul.f32 %v4482, %v4484
    %v4486 = vadd.f32 %v4482, %v4485
    %vm4487 = vweird.f32 %v2842
    %vm4488 = vweird.f32 %v4482
    %vm4489 = vmor %vm4487, %vm4488
    %v4490 = vsel %vm4489, %v4482, %v4486
    %v4491 = vand.u32 2147483647, %v2842
    %vm4492 = vcmp.eq.f32.partialorder %v4491, 8.507059e+37
    %v4493 = vand.u32 %v2842, 2147483648
    %v4494 = vor.u32 1.1754944e-38, %v4493
    %v4495 = vsel %vm4492, %v4494, %v4490
    %v4496 = vmul.f32 1.0, %v4495
    %v4497 = vrcp.pop %v2843
    %v4498 = vmul.f32 %v2843, %v4497
    %v4499 = vsub.f32 1.0, %v4498
    %v4500 = vmul.f32 %v4497, %v4499
    %v4501 = vadd.f32 %v4497, %v4500
    %vm4502 = vweird.f32 %v2843
    %vm4503 = vweird.f32 %v4497
    %vm4504 = vmor %vm4502, %vm4503
    %v4505 = vsel %vm4504, %v4497, %v4501
    %v4506 = vand.u32 2147483647, %v2843
    %vm4507 = vcmp.eq.f32.partialorder %v4506, 8.507059e+37
    %v4508 = vand.u32 %v2843, 2147483648
    %v4509 = vor.u32 1.1754944e-38, %v4508
    %v4510 = vsel %vm4507, %v4509, %v4505
    %v4511 = vmul.f32 1.0, %v4510
    %v4512 = vrcp.pop %v2844
    %v4513 = vmul.f32 %v2844, %v4512
    %v4514 = vsub.f32 1.0, %v4513
    %v4515 = vmul.f32 %v4512, %v4514
    %v4516 = vadd.f32 %v4512, %v4515
    %vm4517 = vweird.f32 %v2844
    %vm4518 = vweird.f32 %v4512
    %vm4519 = vmor %vm4517, %vm4518
    %v4520 = vsel %vm4519, %v4512, %v4516
    %v4521 = vand.u32 2147483647, %v2844
    %vm4522 = vcmp.eq.f32.partialorder %v4521, 8.507059e+37
    %v4523 = vand.u32 %v2844, 2147483648
    %v4524 = vor.u32 1.1754944e-38, %v4523
    %v4525 = vsel %vm4522, %v4524, %v4520
    %v4526 = vmul.f32 1.0, %v4525
    %v4527 = vrcp.pop %v2845
    %v4528 = vmul.f32 %v2845, %v4527
    %v4529 = vsub.f32 1.0, %v4528
    %v4530 = vmul.f32 %v4527, %v4529
    %v4531 = vadd.f32 %v4527, %v4530
    %vm4532 = vweird.f32 %v2845
    %vm4533 = vweird.f32 %v4527
    %vm4534 = vmor %vm4532, %vm4533
    %v4535 = vsel %vm4534, %v4527, %v4531
    %v4536 = vand.u32 2147483647, %v2845
    %vm4537 = vcmp.eq.f32.partialorder %v4536, 8.507059e+37
    %v4538 = vand.u32 %v2845, 2147483648
    %v4539 = vor.u32 1.1754944e-38, %v4538
    %v4540 = vsel %vm4537, %v4539, %v4535
    %v4541 = vmul.f32 1.0, %v4540
    %v4542 = vrcp.pop %v2846
    %v4543 = vmul.f32 %v2846, %v4542
    %v4544 = vsub.f32 1.0, %v4543
    %v4545 = vmul.f32 %v4542, %v4544
    %v4546 = vadd.f32 %v4542, %v4545
    %vm4547 = vweird.f32 %v2846
    %vm4548 = vweird.f32 %v4542
    %vm4549 = vmor %vm4547, %vm4548
    %v4550 = vsel %vm4549, %v4542, %v4546
    %v4551 = vand.u32 2147483647, %v2846
    %vm4552 = vcmp.eq.f32.partialorder %v4551, 8.507059e+37
    %v4553 = vand.u32 %v2846, 2147483648
    %v4554 = vor.u32 1.1754944e-38, %v4553
    %v4555 = vsel %vm4552, %v4554, %v4550
    %v4556 = vmul.f32 1.0, %v4555
    %v4557 = vrcp.pop %v2847
    %v4558 = vmul.f32 %v2847, %v4557
    %v4559 = vsub.f32 1.0, %v4558
    %v4560 = vmul.f32 %v4557, %v4559
    %v4561 = vadd.f32 %v4557, %v4560
    %vm4562 = vweird.f32 %v2847
    %vm4563 = vweird.f32 %v4557
    %vm4564 = vmor %vm4562, %vm4563
    %v4565 = vsel %vm4564, %v4557, %v4561
    %v4566 = vand.u32 2147483647, %v2847
    %vm4567 = vcmp.eq.f32.partialorder %v4566, 8.507059e+37
    %v4568 = vand.u32 %v2847, 2147483648
    %v4569 = vor.u32 1.1754944e-38, %v4568
    %v4570 = vsel %vm4567, %v4569, %v4565
    %v4571 = vmul.f32 1.0, %v4570
    %v4572 = vrcp.pop %v2848
    %v4573 = vmul.f32 %v2848, %v4572
    %v4574 = vsub.f32 1.0, %v4573
    %v4575 = vmul.f32 %v4572, %v4574
    %v4576 = vadd.f32 %v4572, %v4575
    %vm4577 = vweird.f32 %v2848
    %vm4578 = vweird.f32 %v4572
    %vm4579 = vmor %vm4577, %vm4578
    %v4580 = vsel %vm4579, %v4572, %v4576
    %v4581 = vand.u32 2147483647, %v2848
    %vm4582 = vcmp.eq.f32.partialorder %v4581, 8.507059e+37
    %v4583 = vand.u32 %v2848, 2147483648
    %v4584 = vor.u32 1.1754944e-38, %v4583
    %v4585 = vsel %vm4582, %v4584, %v4580
    %v4586 = vmul.f32 1.0, %v4585
    %v4587 = vrcp.pop %v2849
    %v4588 = vmul.f32 %v2849, %v4587
    %v4589 = vsub.f32 1.0, %v4588
    %v4590 = vmul.f32 %v4587, %v4589
    %v4591 = vadd.f32 %v4587, %v4590
    %vm4592 = vweird.f32 %v2849
    %vm4593 = vweird.f32 %v4587
    %vm4594 = vmor %vm4592, %vm4593
    %v4595 = vsel %vm4594, %v4587, %v4591
    %v4596 = vand.u32 2147483647, %v2849
    %vm4597 = vcmp.eq.f32.partialorder %v4596, 8.507059e+37
    %v4598 = vand.u32 %v2849, 2147483648
    %v4599 = vor.u32 1.1754944e-38, %v4598
    %v4600 = vsel %vm4597, %v4599, %v4595
    %v4601 = vmul.f32 1.0, %v4600
    %v4602 = vrcp.pop %v2850
    %v4603 = vmul.f32 %v2850, %v4602
    %v4604 = vsub.f32 1.0, %v4603
    %v4605 = vmul.f32 %v4602, %v4604
    %v4606 = vadd.f32 %v4602, %v4605
    %vm4607 = vweird.f32 %v2850
    %vm4608 = vweird.f32 %v4602
    %vm4609 = vmor %vm4607, %vm4608
    %v4610 = vsel %vm4609, %v4602, %v4606
    %v4611 = vand.u32 2147483647, %v2850
    %vm4612 = vcmp.eq.f32.partialorder %v4611, 8.507059e+37
    %v4613 = vand.u32 %v2850, 2147483648
    %v4614 = vor.u32 1.1754944e-38, %v4613
    %v4615 = vsel %vm4612, %v4614, %v4610
    %v4616 = vmul.f32 1.0, %v4615
    %v4617 = vrcp.pop %v2851
    %v4618 = vmul.f32 %v2851, %v4617
    %v4619 = vsub.f32 1.0, %v4618
    %v4620 = vmul.f32 %v4617, %v4619
    %v4621 = vadd.f32 %v4617, %v4620
    %vm4622 = vweird.f32 %v2851
    %vm4623 = vweird.f32 %v4617
    %vm4624 = vmor %vm4622, %vm4623
    %v4625 = vsel %vm4624, %v4617, %v4621
    %v4626 = vand.u32 2147483647, %v2851
    %vm4627 = vcmp.eq.f32.partialorder %v4626, 8.507059e+37
    %v4628 = vand.u32 %v2851, 2147483648
    %v4629 = vor.u32 1.1754944e-38, %v4628
    %v4630 = vsel %vm4627, %v4629, %v4625
    %v4631 = vmul.f32 1.0, %v4630
    %v4632 = vrcp.pop %v2852
    %v4633 = vmul.f32 %v2852, %v4632
    %v4634 = vsub.f32 1.0, %v4633
    %v4635 = vmul.f32 %v4632, %v4634
    %v4636 = vadd.f32 %v4632, %v4635
    %vm4637 = vweird.f32 %v2852
    %vm4638 = vweird.f32 %v4632
    %vm4639 = vmor %vm4637, %vm4638
    %v4640 = vsel %vm4639, %v4632, %v4636
    %v4641 = vand.u32 2147483647, %v2852
    %vm4642 = vcmp.eq.f32.partialorder %v4641, 8.507059e+37
    %v4643 = vand.u32 %v2852, 2147483648
    %v4644 = vor.u32 1.1754944e-38, %v4643
    %v4645 = vsel %vm4642, %v4644, %v4640
    %v4646 = vmul.f32 1.0, %v4645
    %v4647 = vrcp.pop %v2853
    %v4648 = vmul.f32 %v2853, %v4647
    %v4649 = vsub.f32 1.0, %v4648
    %v4650 = vmul.f32 %v4647, %v4649
    %v4651 = vadd.f32 %v4647, %v4650
    %vm4652 = vweird.f32 %v2853
    %vm4653 = vweird.f32 %v4647
    %vm4654 = vmor %vm4652, %vm4653
    %v4655 = vsel %vm4654, %v4647, %v4651
    %v4656 = vand.u32 2147483647, %v2853
    %vm4657 = vcmp.eq.f32.partialorder %v4656, 8.507059e+37
    %v4658 = vand.u32 %v2853, 2147483648
    %v4659 = vor.u32 1.1754944e-38, %v4658
    %v4660 = vsel %vm4657, %v4659, %v4655
    %v4661 = vmul.f32 1.0, %v4660
    %v4662 = vrcp.pop %v2854
    %v4663 = vmul.f32 %v2854, %v4662
    %v4664 = vsub.f32 1.0, %v4663
    %v4665 = vmul.f32 %v4662, %v4664
    %v4666 = vadd.f32 %v4662, %v4665
    %vm4667 = vweird.f32 %v2854
    %vm4668 = vweird.f32 %v4662
    %vm4669 = vmor %vm4667, %vm4668
    %v4670 = vsel %vm4669, %v4662, %v4666
    %v4671 = vand.u32 2147483647, %v2854
    %vm4672 = vcmp.eq.f32.partialorder %v4671, 8.507059e+37
    %v4673 = vand.u32 %v2854, 2147483648
    %v4674 = vor.u32 1.1754944e-38, %v4673
    %v4675 = vsel %vm4672, %v4674, %v4670
    %v4676 = vmul.f32 1.0, %v4675
    %v4677 = vrcp.pop %v2855
    %v4678 = vmul.f32 %v2855, %v4677
    %v4679 = vsub.f32 1.0, %v4678
    %v4680 = vmul.f32 %v4677, %v4679
    %v4681 = vadd.f32 %v4677, %v4680
    %vm4682 = vweird.f32 %v2855
    %vm4683 = vweird.f32 %v4677
    %vm4684 = vmor %vm4682, %vm4683
    %v4685 = vsel %vm4684, %v4677, %v4681
    %v4686 = vand.u32 2147483647, %v2855
    %vm4687 = vcmp.eq.f32.partialorder %v4686, 8.507059e+37
    %v4688 = vand.u32 %v2855, 2147483648
    %v4689 = vor.u32 1.1754944e-38, %v4688
    %v4690 = vsel %vm4687, %v4689, %v4685
    %v4691 = vmul.f32 1.0, %v4690
    %v4692 = vrcp.pop %v2856
    %v4693 = vmul.f32 %v2856, %v4692
    %v4694 = vsub.f32 1.0, %v4693
    %v4695 = vmul.f32 %v4692, %v4694
    %v4696 = vadd.f32 %v4692, %v4695
    %vm4697 = vweird.f32 %v2856
    %vm4698 = vweird.f32 %v4692
    %vm4699 = vmor %vm4697, %vm4698
    %v4700 = vsel %vm4699, %v4692, %v4696
    %v4701 = vand.u32 2147483647, %v2856
    %vm4702 = vcmp.eq.f32.partialorder %v4701, 8.507059e+37
    %v4703 = vand.u32 %v2856, 2147483648
    %v4704 = vor.u32 1.1754944e-38, %v4703
    %v4705 = vsel %vm4702, %v4704, %v4700
    %v4706 = vmul.f32 1.0, %v4705
    %v4707 = vrcp.pop %v2857
    %v4708 = vmul.f32 %v2857, %v4707
    %v4709 = vsub.f32 1.0, %v4708
    %v4710 = vmul.f32 %v4707, %v4709
    %v4711 = vadd.f32 %v4707, %v4710
    %vm4712 = vweird.f32 %v2857
    %vm4713 = vweird.f32 %v4707
    %vm4714 = vmor %vm4712, %vm4713
    %v4715 = vsel %vm4714, %v4707, %v4711
    %v4716 = vand.u32 2147483647, %v2857
    %vm4717 = vcmp.eq.f32.partialorder %v4716, 8.507059e+37
    %v4718 = vand.u32 %v2857, 2147483648
    %v4719 = vor.u32 1.1754944e-38, %v4718
    %v4720 = vsel %vm4717, %v4719, %v4715
    %v4721 = vmul.f32 1.0, %v4720
    %v4722 = vrcp.pop %v2858
    %v4723 = vmul.f32 %v2858, %v4722
    %v4724 = vsub.f32 1.0, %v4723
    %v4725 = vmul.f32 %v4722, %v4724
    %v4726 = vadd.f32 %v4722, %v4725
    %vm4727 = vweird.f32 %v2858
    %vm4728 = vweird.f32 %v4722
    %vm4729 = vmor %vm4727, %vm4728
    %v4730 = vsel %vm4729, %v4722, %v4726
    %v4731 = vand.u32 2147483647, %v2858
    %vm4732 = vcmp.eq.f32.partialorder %v4731, 8.507059e+37
    %v4733 = vand.u32 %v2858, 2147483648
    %v4734 = vor.u32 1.1754944e-38, %v4733
    %v4735 = vsel %vm4732, %v4734, %v4730
    %v4736 = vmul.f32 1.0, %v4735
    %v4737 = vrcp.pop %v2859
    %v4738 = vmul.f32 %v2859, %v4737
    %v4739 = vsub.f32 1.0, %v4738
    %v4740 = vmul.f32 %v4737, %v4739
    %v4741 = vadd.f32 %v4737, %v4740
    %vm4742 = vweird.f32 %v2859
    %vm4743 = vweird.f32 %v4737
    %vm4744 = vmor %vm4742, %vm4743
    %v4745 = vsel %vm4744, %v4737, %v4741
    %v4746 = vand.u32 2147483647, %v2859
    %vm4747 = vcmp.eq.f32.partialorder %v4746, 8.507059e+37
    %v4748 = vand.u32 %v2859, 2147483648
    %v4749 = vor.u32 1.1754944e-38, %v4748
    %v4750 = vsel %vm4747, %v4749, %v4745
    %v4751 = vmul.f32 1.0, %v4750
    %v4752 = vrcp.pop %v2860
    %v4753 = vmul.f32 %v2860, %v4752
    %v4754 = vsub.f32 1.0, %v4753
    %v4755 = vmul.f32 %v4752, %v4754
    %v4756 = vadd.f32 %v4752, %v4755
    %vm4757 = vweird.f32 %v2860
    %vm4758 = vweird.f32 %v4752
    %vm4759 = vmor %vm4757, %vm4758
    %v4760 = vsel %vm4759, %v4752, %v4756
    %v4761 = vand.u32 2147483647, %v2860
    %vm4762 = vcmp.eq.f32.partialorder %v4761, 8.507059e+37
    %v4763 = vand.u32 %v2860, 2147483648
    %v4764 = vor.u32 1.1754944e-38, %v4763
    %v4765 = vsel %vm4762, %v4764, %v4760
    %v4766 = vmul.f32 1.0, %v4765
    %v4767 = vrcp.pop %v2861
    %v4768 = vmul.f32 %v2861, %v4767
    %v4769 = vsub.f32 1.0, %v4768
    %v4770 = vmul.f32 %v4767, %v4769
    %v4771 = vadd.f32 %v4767, %v4770
    %vm4772 = vweird.f32 %v2861
    %vm4773 = vweird.f32 %v4767
    %vm4774 = vmor %vm4772, %vm4773
    %v4775 = vsel %vm4774, %v4767, %v4771
    %v4776 = vand.u32 2147483647, %v2861
    %vm4777 = vcmp.eq.f32.partialorder %v4776, 8.507059e+37
    %v4778 = vand.u32 %v2861, 2147483648
    %v4779 = vor.u32 1.1754944e-38, %v4778
    %v4780 = vsel %vm4777, %v4779, %v4775
    %v4781 = vmul.f32 1.0, %v4780
    %v4782 = vmul.f32 %v1025, %v2876
    %v4783 = vmul.f32 %v1203, %v2891
    %v4784 = vmul.f32 %v1381, %v2906
    %v4785 = vmul.f32 %v1559, %v2921
    %v4786 = vmul.f32 %v1027, %v2936
    %v4787 = vmul.f32 %v1205, %v2951
    %v4788 = vmul.f32 %v1383, %v2966
    %v4789 = vmul.f32 %v1561, %v2981
    %v4790 = vmul.f32 %v1030, %v2996
    %v4791 = vmul.f32 %v1208, %v3011
    %v4792 = vmul.f32 %v1386, %v3026
    %v4793 = vmul.f32 %v1564, %v3041
    %v4794 = vmul.f32 %v1032, %v3056
    %v4795 = vmul.f32 %v1210, %v3071
    %v4796 = vmul.f32 %v1388, %v3086
    %v4797 = vmul.f32 %v1566, %v3101
    %v4798 = vmul.f32 %v1035, %v3116
    %v4799 = vmul.f32 %v1213, %v3131
    %v4800 = vmul.f32 %v1391, %v3146
    %v4801 = vmul.f32 %v1569, %v3161
    %v4802 = vmul.f32 %v1037, %v3176
    %v4803 = vmul.f32 %v1215, %v3191
    %v4804 = vmul.f32 %v1393, %v3206
    %v4805 = vmul.f32 %v1571, %v3221
    %v4806 = vmul.f32 %v1040, %v3236
    %v4807 = vmul.f32 %v1218, %v3251
    %v4808 = vmul.f32 %v1396, %v3266
    %v4809 = vmul.f32 %v1574, %v3281
    %v4810 = vmul.f32 %v1042, %v3296
    %v4811 = vmul.f32 %v1220, %v3311
    %v4812 = vmul.f32 %v1398, %v3326
    %v4813 = vmul.f32 %v1576, %v3341
    %v4814 = vmul.f32 %v1045, %v3356
    %v4815 = vmul.f32 %v1223, %v3371
    %v4816 = vmul.f32 %v1401, %v3386
    %v4817 = vmul.f32 %v1579, %v3401
    %v4818 = vmul.f32 %v1047, %v3416
    %v4819 = vmul.f32 %v1225, %v3431
    %v4820 = vmul.f32 %v1403, %v3446
    %v4821 = vmul.f32 %v1581, %v3461
    %v4822 = vmul.f32 %v1050, %v3476
    %v4823 = vmul.f32 %v1228, %v3491
    %v4824 = vmul.f32 %v1406, %v3506
    %v4825 = vmul.f32 %v1584, %v3521
    %v4826 = vmul.f32 %v1052, %v3536
    %v4827 = vmul.f32 %v1230, %v3551
    %v4828 = vmul.f32 %v1408, %v3566
    %v4829 = vmul.f32 %v1586, %v3581
    %v4830 = vmul.f32 %v1055, %v3596
    %v4831 = vmul.f32 %v1233, %v3611
    %v4832 = vmul.f32 %v1411, %v3626
    %v4833 = vmul.f32 %v1589, %v3641
    %v4834 = vmul.f32 %v1057, %v3656
    %v4835 = vmul.f32 %v1235, %v3671
    %v4836 = vmul.f32 %v1413, %v3686
    %v4837 = vmul.f32 %v1591, %v3701
    %v4838 = vmul.f32 %v1060, %v3716
    %v4839 = vmul.f32 %v1238, %v3731
    %v4840 = vmul.f32 %v1416, %v3746
    %v4841 = vmul.f32 %v1594, %v3761
    %v4842 = vmul.f32 %v1062, %v3776
    %v4843 = vmul.f32 %v1240, %v3791
    %v4844 = vmul.f32 %v1418, %v3806
    %v4845 = vmul.f32 %v1596, %v3821
    %v4846 = vmul.f32 %v1065, %v3836
    %v4847 = vmul.f32 %v1243, %v3851
    %v4848 = vmul.f32 %v1421, %v3866
    %v4849 = vmul.f32 %v1599, %v3881
    %v4850 = vmul.f32 %v1067, %v3896
    %v4851 = vmul.f32 %v1245, %v3911
    %v4852 = vmul.f32 %v1423, %v3926
    %v4853 = vmul.f32 %v1601, %v3941
    %v4854 = vmul.f32 %v1070, %v3956
    %v4855 = vmul.f32 %v1248, %v3971
    %v4856 = vmul.f32 %v1426, %v3986
    %v4857 = vmul.f32 %v1604, %v4001
    %v4858 = vmul.f32 %v1072, %v4016
    %v4859 = vmul.f32 %v1250, %v4031
    %v4860 = vmul.f32 %v1428, %v4046
    %v4861 = vmul.f32 %v1606, %v4061
    %v4862 = vmul.f32 %v1075, %v4076
    %v4863 = vmul.f32 %v1253, %v4091
    %v4864 = vmul.f32 %v1431, %v4106
    %v4865 = vmul.f32 %v1609, %v4121
    %v4866 = vmul.f32 %v1077, %v4136
    %v4867 = vmul.f32 %v1255, %v4151
    %v4868 = vmul.f32 %v1433, %v4166
    %v4869 = vmul.f32 %v1611, %v4181
    %v4870 = vmul.f32 %v1080, %v4196
    %v4871 = vmul.f32 %v1258, %v4211
    %v4872 = vmul.f32 %v1436, %v4226
    %v4873 = vmul.f32 %v1614, %v4241
    %v4874 = vmul.f32 %v1082, %v4256
    %v4875 = vmul.f32 %v1260, %v4271
    %v4876 = vmul.f32 %v1438, %v4286
    %v4877 = vmul.f32 %v1616, %v4301
    %v4878 = vmul.f32 %v1085, %v4316
    %v4879 = vmul.f32 %v1263, %v4331
    %v4880 = vmul.f32 %v1441, %v4346
    %v4881 = vmul.f32 %v1619, %v4361
    %v4882 = vmul.f32 %v1087, %v4376
    %v4883 = vmul.f32 %v1265, %v4391
    %v4884 = vmul.f32 %v1443, %v4406
    %v4885 = vmul.f32 %v1621, %v4421
    %v4886 = vmul.f32 %v1090, %v4436
    %v4887 = vmul.f32 %v1268, %v4451
    %v4888 = vmul.f32 %v1446, %v4466
    %v4889 = vmul.f32 %v1624, %v4481
    %v4890 = vmul.f32 %v1092, %v4496
    %v4891 = vmul.f32 %v1270, %v4511
    %v4892 = vmul.f32 %v1448, %v4526
    %v4893 = vmul.f32 %v1626, %v4541
    %v4894 = vmul.f32 %v1095, %v4556
    %v4895 = vmul.f32 %v1273, %v4571
    %v4896 = vmul.f32 %v1451, %v4586
    %v4897 = vmul.f32 %v1629, %v4601
    %v4898 = vmul.f32 %v1097, %v4616
    %v4899 = vmul.f32 %v1275, %v4631
    %v4900 = vmul.f32 %v1453, %v4646
    %v4901 = vmul.f32 %v1631, %v4661
    %v4902 = vmul.f32 %v1100, %v4676
    %v4903 = vmul.f32 %v1278, %v4691
    %v4904 = vmul.f32 %v1456, %v4706
    %v4905 = vmul.f32 %v1634, %v4721
    %v4906 = vmul.f32 %v1102, %v4736
    %v4907 = vmul.f32 %v1280, %v4751
    %v4908 = vmul.f32 %v1458, %v4766
    %v4909 = vmul.f32 %v1636, %v4781
    %v4910 = vmul.f32 %v4782, %v1737
    %v4911 = vmul.f32 %v4783, %v1915
    %v4912 = vmul.f32 %v4784, %v2093
    %v4913 = vmul.f32 %v4785, %v2271
    %v4914 = vmul.f32 %v4786, %v1739
    %v4915 = vmul.f32 %v4787, %v1917
    %v4916 = vmul.f32 %v4788, %v2095
    %v4917 = vmul.f32 %v4789, %v2273
    %v4918 = vmul.f32 %v4790, %v1742
    %v4919 = vmul.f32 %v4791, %v1920
    %v4920 = vmul.f32 %v4792, %v2098
    %v4921 = vmul.f32 %v4793, %v2276
    %v4922 = vmul.f32 %v4794, %v1744
    %v4923 = vmul.f32 %v4795, %v1922
    %v4924 = vmul.f32 %v4796, %v2100
    %v4925 = vmul.f32 %v4797, %v2278
    %v4926 = vmul.f32 %v4798, %v1747
    %v4927 = vmul.f32 %v4799, %v1925
    %v4928 = vmul.f32 %v4800, %v2103
    %v4929 = vmul.f32 %v4801, %v2281
    %v4930 = vmul.f32 %v4802, %v1749
    %v4931 = vmul.f32 %v4803, %v1927
    %v4932 = vmul.f32 %v4804, %v2105
    %v4933 = vmul.f32 %v4805, %v2283
    %v4934 = vmul.f32 %v4806, %v1752
    %v4935 = vmul.f32 %v4807, %v1930
    %v4936 = vmul.f32 %v4808, %v2108
    %v4937 = vmul.f32 %v4809, %v2286
    %v4938 = vmul.f32 %v4810, %v1754
    %v4939 = vmul.f32 %v4811, %v1932
    %v4940 = vmul.f32 %v4812, %v2110
    %v4941 = vmul.f32 %v4813, %v2288
    %v4942 = vmul.f32 %v4814, %v1757
    %v4943 = vmul.f32 %v4815, %v1935
    %v4944 = vmul.f32 %v4816, %v2113
    %v4945 = vmul.f32 %v4817, %v2291
    %v4946 = vmul.f32 %v4818, %v1759
    %v4947 = vmul.f32 %v4819, %v1937
    %v4948 = vmul.f32 %v4820, %v2115
    %v4949 = vmul.f32 %v4821, %v2293
    %v4950 = vmul.f32 %v4822, %v1762
    %v4951 = vmul.f32 %v4823, %v1940
    %v4952 = vmul.f32 %v4824, %v2118
    %v4953 = vmul.f32 %v4825, %v2296
    %v4954 = vmul.f32 %v4826, %v1764
    %v4955 = vmul.f32 %v4827, %v1942
    %v4956 = vmul.f32 %v4828, %v2120
    %v4957 = vmul.f32 %v4829, %v2298
    %v4958 = vmul.f32 %v4830, %v1767
    %v4959 = vmul.f32 %v4831, %v1945
    %v4960 = vmul.f32 %v4832, %v2123
    %v4961 = vmul.f32 %v4833, %v2301
    %v4962 = vmul.f32 %v4834, %v1769
    %v4963 = vmul.f32 %v4835, %v1947
    %v4964 = vmul.f32 %v4836, %v2125
    %v4965 = vmul.f32 %v4837, %v2303
    %v4966 = vmul.f32 %v4838, %v1772
    %v4967 = vmul.f32 %v4839, %v1950
    %v4968 = vmul.f32 %v4840, %v2128
    %v4969 = vmul.f32 %v4841, %v2306
    %v4970 = vmul.f32 %v4842, %v1774
    %v4971 = vmul.f32 %v4843, %v1952
    %v4972 = vmul.f32 %v4844, %v2130
    %v4973 = vmul.f32 %v4845, %v2308
    %v4974 = vmul.f32 %v4846, %v1777
    %v4975 = vmul.f32 %v4847, %v1955
    %v4976 = vmul.f32 %v4848, %v2133
    %v4977 = vmul.f32 %v4849, %v2311
    %v4978 = vmul.f32 %v4850, %v1779
    %v4979 = vmul.f32 %v4851, %v1957
    %v4980 = vmul.f32 %v4852, %v2135
    %v4981 = vmul.f32 %v4853, %v2313
    %v4982 = vmul.f32 %v4854, %v1782
    %v4983 = vmul.f32 %v4855, %v1960
    %v4984 = vmul.f32 %v4856, %v2138
    %v4985 = vmul.f32 %v4857, %v2316
    %v4986 = vmul.f32 %v4858, %v1784
    %v4987 = vmul.f32 %v4859, %v1962
    %v4988 = vmul.f32 %v4860, %v2140
    %v4989 = vmul.f32 %v4861, %v2318
    %v4990 = vmul.f32 %v4862, %v1787
    %v4991 = vmul.f32 %v4863, %v1965
    %v4992 = vmul.f32 %v4864, %v2143
    %v4993 = vmul.f32 %v4865, %v2321
    %v4994 = vmul.f32 %v4866, %v1789
    %v4995 = vmul.f32 %v4867, %v1967
    %v4996 = vmul.f32 %v4868, %v2145
    %v4997 = vmul.f32 %v4869, %v2323
    %v4998 = vmul.f32 %v4870, %v1792
    %v4999 = vmul.f32 %v4871, %v1970
    %v5000 = vmul.f32 %v4872, %v2148
    %v5001 = vmul.f32 %v4873, %v2326
    %v5002 = vmul.f32 %v4874, %v1794
    %v5003 = vmul.f32 %v4875, %v1972
    %v5004 = vmul.f32 %v4876, %v2150
    %v5005 = vmul.f32 %v4877, %v2328
    %v5006 = vmul.f32 %v4878, %v1797
    %v5007 = vmul.f32 %v4879, %v1975
    %v5008 = vmul.f32 %v4880, %v2153
    %v5009 = vmul.f32 %v4881, %v2331
    %v5010 = vmul.f32 %v4882, %v1799
    %v5011 = vmul.f32 %v4883, %v1977
    %v5012 = vmul.f32 %v4884, %v2155
    %v5013 = vmul.f32 %v4885, %v2333
    %v5014 = vmul.f32 %v4886, %v1802
    %v5015 = vmul.f32 %v4887, %v1980
    %v5016 = vmul.f32 %v4888, %v2158
    %v5017 = vmul.f32 %v4889, %v2336
    %v5018 = vmul.f32 %v4890, %v1804
    %v5019 = vmul.f32 %v4891, %v1982
    %v5020 = vmul.f32 %v4892, %v2160
    %v5021 = vmul.f32 %v4893, %v2338
    %v5022 = vmul.f32 %v4894, %v1807
    %v5023 = vmul.f32 %v4895, %v1985
    %v5024 = vmul.f32 %v4896, %v2163
    %v5025 = vmul.f32 %v4897, %v2341
    %v5026 = vmul.f32 %v4898, %v1809
    %v5027 = vmul.f32 %v4899, %v1987
    %v5028 = vmul.f32 %v4900, %v2165
    %v5029 = vmul.f32 %v4901, %v2343
    %v5030 = vmul.f32 %v4902, %v1812
    %v5031 = vmul.f32 %v4903, %v1990
    %v5032 = vmul.f32 %v4904, %v2168
    %v5033 = vmul.f32 %v4905, %v2346
    %v5034 = vmul.f32 %v4906, %v1814
    %v5035 = vmul.f32 %v4907, %v1992
    %v5036 = vmul.f32 %v4908, %v2170
    %v5037 = vmul.f32 %v4909, %v2348
    %v5038 = vpack.c.bf16 %v4914, %v4910
    %v5039 = vpack.c.bf16 %v4915, %v4911
    %v5040 = vpack.c.bf16 %v4916, %v4912
    %v5041 = vpack.c.bf16 %v4917, %v4913
    %v5042 = vpack.c.bf16 %v4922, %v4918
    %v5043 = vpack.c.bf16 %v4923, %v4919
    %v5044 = vpack.c.bf16 %v4924, %v4920
    %v5045 = vpack.c.bf16 %v4925, %v4921
    %v5046 = vpack.c.bf16 %v4930, %v4926
    %v5047 = vpack.c.bf16 %v4931, %v4927
    %v5048 = vpack.c.bf16 %v4932, %v4928
    %v5049 = vpack.c.bf16 %v4933, %v4929
    %v5050 = vpack.c.bf16 %v4938, %v4934
    %v5051 = vpack.c.bf16 %v4939, %v4935
    %v5052 = vpack.c.bf16 %v4940, %v4936
    %v5053 = vpack.c.bf16 %v4941, %v4937
    %v5054 = vpack.c.bf16 %v4946, %v4942
    %v5055 = vpack.c.bf16 %v4947, %v4943
    %v5056 = vpack.c.bf16 %v4948, %v4944
    %v5057 = vpack.c.bf16 %v4949, %v4945
    %v5058 = vpack.c.bf16 %v4954, %v4950
    %v5059 = vpack.c.bf16 %v4955, %v4951
    %v5060 = vpack.c.bf16 %v4956, %v4952
    %v5061 = vpack.c.bf16 %v4957, %v4953
    %v5062 = vpack.c.bf16 %v4962, %v4958
    %v5063 = vpack.c.bf16 %v4963, %v4959
    %v5064 = vpack.c.bf16 %v4964, %v4960
    %v5065 = vpack.c.bf16 %v4965, %v4961
    %v5066 = vpack.c.bf16 %v4970, %v4966
    %v5067 = vpack.c.bf16 %v4971, %v4967
    %v5068 = vpack.c.bf16 %v4972, %v4968
    %v5069 = vpack.c.bf16 %v4973, %v4969
    %v5070 = vpack.c.bf16 %v4978, %v4974
    %v5071 = vpack.c.bf16 %v4979, %v4975
    %v5072 = vpack.c.bf16 %v4980, %v4976
    %v5073 = vpack.c.bf16 %v4981, %v4977
    %v5074 = vpack.c.bf16 %v4986, %v4982
    %v5075 = vpack.c.bf16 %v4987, %v4983
    %v5076 = vpack.c.bf16 %v4988, %v4984
    %v5077 = vpack.c.bf16 %v4989, %v4985
    %v5078 = vpack.c.bf16 %v4994, %v4990
    %v5079 = vpack.c.bf16 %v4995, %v4991
    %v5080 = vpack.c.bf16 %v4996, %v4992
    %v5081 = vpack.c.bf16 %v4997, %v4993
    %v5082 = vpack.c.bf16 %v5002, %v4998
    %v5083 = vpack.c.bf16 %v5003, %v4999
    %v5084 = vpack.c.bf16 %v5004, %v5000
    %v5085 = vpack.c.bf16 %v5005, %v5001
    %v5086 = vpack.c.bf16 %v5010, %v5006
    %v5087 = vpack.c.bf16 %v5011, %v5007
    %v5088 = vpack.c.bf16 %v5012, %v5008
    %v5089 = vpack.c.bf16 %v5013, %v5009
    %v5090 = vpack.c.bf16 %v5018, %v5014
    %v5091 = vpack.c.bf16 %v5019, %v5015
    %v5092 = vpack.c.bf16 %v5020, %v5016
    %v5093 = vpack.c.bf16 %v5021, %v5017
    %v5094 = vpack.c.bf16 %v5026, %v5022
    %v5095 = vpack.c.bf16 %v5027, %v5023
    %v5096 = vpack.c.bf16 %v5028, %v5024
    %v5097 = vpack.c.bf16 %v5029, %v5025
    %v5098 = vpack.c.bf16 %v5034, %v5030
    %v5099 = vpack.c.bf16 %v5035, %v5031
    %v5100 = vpack.c.bf16 %v5036, %v5032
    %v5101 = vpack.c.bf16 %v5037, %v5033
    %v5102 = vld [vmem:[#allocation7] sm:$0xff]
    %v5103 = vld [vmem:[#allocation7 + $0x8] sm:$0xff]
    %v5104 = vld [vmem:[#allocation7 + $0x10] sm:$0xff]
    %v5105 = vld [vmem:[#allocation7 + $0x18] sm:$0xff]
    %v5106 = vld [vmem:[#allocation7 + $0x20] sm:$0xff]
    %v5107 = vld [vmem:[#allocation7 + $0x28] sm:$0xff]
    %v5108 = vld [vmem:[#allocation7 + $0x30] sm:$0xff]
    %v5109 = vld [vmem:[#allocation7 + $0x38] sm:$0xff]
    %v5110 = vld [vmem:[#allocation7 + $0x40] sm:$0xff]
    %v5111 = vld [vmem:[#allocation7 + $0x48] sm:$0xff]
    %v5112 = vld [vmem:[#allocation7 + $0x50] sm:$0xff]
    %v5113 = vld [vmem:[#allocation7 + $0x58] sm:$0xff]
    %v5114 = vld [vmem:[#allocation7 + $0x60] sm:$0xff]
    %v5115 = vld [vmem:[#allocation7 + $0x68] sm:$0xff]
    %v5116 = vld [vmem:[#allocation7 + $0x70] sm:$0xff]
    %v5117 = vld [vmem:[#allocation7 + $0x78] sm:$0xff]
    %v5118 = vld [vmem:[#allocation7 + $0x80] sm:$0xff]
    %v5119 = vld [vmem:[#allocation7 + $0x88] sm:$0xff]
    %v5120 = vld [vmem:[#allocation7 + $0x90] sm:$0xff]
    %v5121 = vld [vmem:[#allocation7 + $0x98] sm:$0xff]
    %v5122 = vld [vmem:[#allocation7 + $0xa0] sm:$0xff]
    %v5123 = vld [vmem:[#allocation7 + $0xa8] sm:$0xff]
    %v5124 = vld [vmem:[#allocation7 + $0xb0] sm:$0xff]
    %v5125 = vld [vmem:[#allocation7 + $0xb8] sm:$0xff]
    %v5126 = vld [vmem:[#allocation7 + $0xc0] sm:$0xff]
    %v5127 = vld [vmem:[#allocation7 + $0xc8] sm:$0xff]
    %v5128 = vld [vmem:[#allocation7 + $0xd0] sm:$0xff]
    %v5129 = vld [vmem:[#allocation7 + $0xd8] sm:$0xff]
    %v5130 = vld [vmem:[#allocation7 + $0xe0] sm:$0xff]
    %v5131 = vld [vmem:[#allocation7 + $0xe8] sm:$0xff]
    %v5132 = vld [vmem:[#allocation7 + $0xf0] sm:$0xff]
    %v5133 = vld [vmem:[#allocation7 + $0xf8] sm:$0xff]
    %v5134 = vld [vmem:[#allocation7 + $0x100] sm:$0xff]
    %v5135 = vld [vmem:[#allocation7 + $0x108] sm:$0xff]
    %v5136 = vld [vmem:[#allocation7 + $0x110] sm:$0xff]
    %v5137 = vld [vmem:[#allocation7 + $0x118] sm:$0xff]
    %v5138 = vld [vmem:[#allocation7 + $0x120] sm:$0xff]
    %v5139 = vld [vmem:[#allocation7 + $0x128] sm:$0xff]
    %v5140 = vld [vmem:[#allocation7 + $0x130] sm:$0xff]
    %v5141 = vld [vmem:[#allocation7 + $0x138] sm:$0xff]
    %v5142 = vld [vmem:[#allocation7 + $0x140] sm:$0xff]
    %v5143 = vld [vmem:[#allocation7 + $0x148] sm:$0xff]
    %v5144 = vld [vmem:[#allocation7 + $0x150] sm:$0xff]
    %v5145 = vld [vmem:[#allocation7 + $0x158] sm:$0xff]
    %v5146 = vld [vmem:[#allocation7 + $0x160] sm:$0xff]
    %v5147 = vld [vmem:[#allocation7 + $0x168] sm:$0xff]
    %v5148 = vld [vmem:[#allocation7 + $0x170] sm:$0xff]
    %v5149 = vld [vmem:[#allocation7 + $0x178] sm:$0xff]
    %v5150 = vld [vmem:[#allocation7 + $0x180] sm:$0xff]
    %v5151 = vld [vmem:[#allocation7 + $0x188] sm:$0xff]
    %v5152 = vld [vmem:[#allocation7 + $0x190] sm:$0xff]
    %v5153 = vld [vmem:[#allocation7 + $0x198] sm:$0xff]
    %v5154 = vld [vmem:[#allocation7 + $0x1a0] sm:$0xff]
    %v5155 = vld [vmem:[#allocation7 + $0x1a8] sm:$0xff]
    %v5156 = vld [vmem:[#allocation7 + $0x1b0] sm:$0xff]
    %v5157 = vld [vmem:[#allocation7 + $0x1b8] sm:$0xff]
    %v5158 = vld [vmem:[#allocation7 + $0x1c0] sm:$0xff]
    %v5159 = vld [vmem:[#allocation7 + $0x1c8] sm:$0xff]
    %v5160 = vld [vmem:[#allocation7 + $0x1d0] sm:$0xff]
    %v5161 = vld [vmem:[#allocation7 + $0x1d8] sm:$0xff]
    %v5162 = vld [vmem:[#allocation7 + $0x1e0] sm:$0xff]
    %v5163 = vld [vmem:[#allocation7 + $0x1e8] sm:$0xff]
    %v5164 = vld [vmem:[#allocation7 + $0x1f0] sm:$0xff]
    %v5165 = vld [vmem:[#allocation7 + $0x1f8] sm:$0xff]
    %v5230 = vunpack.c.l.b16 %v5102
    %v5231 = vunpack.c.h.b16 %v5102
    %v5232 = vunpack.c.l.b16 %v5103
    %v5233 = vunpack.c.h.b16 %v5103
    %v5234 = vunpack.c.l.b16 %v5104
    %v5235 = vunpack.c.h.b16 %v5104
    %v5236 = vunpack.c.l.b16 %v5105
    %v5237 = vunpack.c.h.b16 %v5105
    %v5238 = vunpack.c.l.b16 %v5106
    %v5239 = vunpack.c.h.b16 %v5106
    %v5240 = vunpack.c.l.b16 %v5107
    %v5241 = vunpack.c.h.b16 %v5107
    %v5242 = vunpack.c.l.b16 %v5108
    %v5243 = vunpack.c.h.b16 %v5108
    %v5244 = vunpack.c.l.b16 %v5109
    %v5245 = vunpack.c.h.b16 %v5109
    %v5246 = vunpack.c.l.b16 %v5110
    %v5247 = vunpack.c.h.b16 %v5110
    %v5248 = vunpack.c.l.b16 %v5111
    %v5249 = vunpack.c.h.b16 %v5111
    %v5250 = vunpack.c.l.b16 %v5112
    %v5251 = vunpack.c.h.b16 %v5112
    %v5252 = vunpack.c.l.b16 %v5113
    %v5253 = vunpack.c.h.b16 %v5113
    %v5254 = vunpack.c.l.b16 %v5114
    %v5255 = vunpack.c.h.b16 %v5114
    %v5256 = vunpack.c.l.b16 %v5115
    %v5257 = vunpack.c.h.b16 %v5115
    %v5258 = vunpack.c.l.b16 %v5116
    %v5259 = vunpack.c.h.b16 %v5116
    %v5260 = vunpack.c.l.b16 %v5117
    %v5261 = vunpack.c.h.b16 %v5117
    %v5262 = vunpack.c.l.b16 %v5118
    %v5263 = vunpack.c.h.b16 %v5118
    %v5264 = vunpack.c.l.b16 %v5119
    %v5265 = vunpack.c.h.b16 %v5119
    %v5266 = vunpack.c.l.b16 %v5120
    %v5267 = vunpack.c.h.b16 %v5120
    %v5268 = vunpack.c.l.b16 %v5121
    %v5269 = vunpack.c.h.b16 %v5121
    %v5270 = vunpack.c.l.b16 %v5122
    %v5271 = vunpack.c.h.b16 %v5122
    %v5272 = vunpack.c.l.b16 %v5123
    %v5273 = vunpack.c.h.b16 %v5123
    %v5274 = vunpack.c.l.b16 %v5124
    %v5275 = vunpack.c.h.b16 %v5124
    %v5276 = vunpack.c.l.b16 %v5125
    %v5277 = vunpack.c.h.b16 %v5125
    %v5278 = vunpack.c.l.b16 %v5126
    %v5279 = vunpack.c.h.b16 %v5126
    %v5280 = vunpack.c.l.b16 %v5127
    %v5281 = vunpack.c.h.b16 %v5127
    %v5282 = vunpack.c.l.b16 %v5128
    %v5283 = vunpack.c.h.b16 %v5128
    %v5284 = vunpack.c.l.b16 %v5129
    %v5285 = vunpack.c.h.b16 %v5129
    %v5286 = vunpack.c.l.b16 %v5130
    %v5287 = vunpack.c.h.b16 %v5130
    %v5288 = vunpack.c.l.b16 %v5131
    %v5289 = vunpack.c.h.b16 %v5131
    %v5290 = vunpack.c.l.b16 %v5132
    %v5291 = vunpack.c.h.b16 %v5132
    %v5292 = vunpack.c.l.b16 %v5133
    %v5293 = vunpack.c.h.b16 %v5133
    %v5294 = vunpack.c.l.b16 %v5134
    %v5295 = vunpack.c.h.b16 %v5134
    %v5296 = vunpack.c.l.b16 %v5135
    %v5297 = vunpack.c.h.b16 %v5135
    %v5298 = vunpack.c.l.b16 %v5136
    %v5299 = vunpack.c.h.b16 %v5136
    %v5300 = vunpack.c.l.b16 %v5137
    %v5301 = vunpack.c.h.b16 %v5137
    %v5302 = vunpack.c.l.b16 %v5138
    %v5303 = vunpack.c.h.b16 %v5138
    %v5304 = vunpack.c.l.b16 %v5139
    %v5305 = vunpack.c.h.b16 %v5139
    %v5306 = vunpack.c.l.b16 %v5140
    %v5307 = vunpack.c.h.b16 %v5140
    %v5308 = vunpack.c.l.b16 %v5141
    %v5309 = vunpack.c.h.b16 %v5141
    %v5310 = vunpack.c.l.b16 %v5142
    %v5311 = vunpack.c.h.b16 %v5142
    %v5312 = vunpack.c.l.b16 %v5143
    %v5313 = vunpack.c.h.b16 %v5143
    %v5314 = vunpack.c.l.b16 %v5144
    %v5315 = vunpack.c.h.b16 %v5144
    %v5316 = vunpack.c.l.b16 %v5145
    %v5317 = vunpack.c.h.b16 %v5145
    %v5318 = vunpack.c.l.b16 %v5146
    %v5319 = vunpack.c.h.b16 %v5146
    %v5320 = vunpack.c.l.b16 %v5147
    %v5321 = vunpack.c.h.b16 %v5147
    %v5322 = vunpack.c.l.b16 %v5148
    %v5323 = vunpack.c.h.b16 %v5148
    %v5324 = vunpack.c.l.b16 %v5149
    %v5325 = vunpack.c.h.b16 %v5149
    %v5326 = vunpack.c.l.b16 %v5150
    %v5327 = vunpack.c.h.b16 %v5150
    %v5328 = vunpack.c.l.b16 %v5151
    %v5329 = vunpack.c.h.b16 %v5151
    %v5330 = vunpack.c.l.b16 %v5152
    %v5331 = vunpack.c.h.b16 %v5152
    %v5332 = vunpack.c.l.b16 %v5153
    %v5333 = vunpack.c.h.b16 %v5153
    %v5334 = vunpack.c.l.b16 %v5154
    %v5335 = vunpack.c.h.b16 %v5154
    %v5336 = vunpack.c.l.b16 %v5155
    %v5337 = vunpack.c.h.b16 %v5155
    %v5338 = vunpack.c.l.b16 %v5156
    %v5339 = vunpack.c.h.b16 %v5156
    %v5340 = vunpack.c.l.b16 %v5157
    %v5341 = vunpack.c.h.b16 %v5157
    %v5342 = vunpack.c.l.b16 %v5158
    %v5343 = vunpack.c.h.b16 %v5158
    %v5344 = vunpack.c.l.b16 %v5159
    %v5345 = vunpack.c.h.b16 %v5159
    %v5346 = vunpack.c.l.b16 %v5160
    %v5347 = vunpack.c.h.b16 %v5160
    %v5348 = vunpack.c.l.b16 %v5161
    %v5349 = vunpack.c.h.b16 %v5161
    %v5350 = vunpack.c.l.b16 %v5162
    %v5351 = vunpack.c.h.b16 %v5162
    %v5352 = vunpack.c.l.b16 %v5163
    %v5353 = vunpack.c.h.b16 %v5163
    %v5354 = vunpack.c.l.b16 %v5164
    %v5355 = vunpack.c.h.b16 %v5164
    %v5356 = vunpack.c.l.b16 %v5165
    %v5357 = vunpack.c.h.b16 %v5165
    %v5358 = vpack.c.b16 %v5232, %v5230
    %v5359 = vpack.c.b16 %v5233, %v5231
    %v5360 = vpack.c.b16 %v5236, %v5234
    %v5361 = vpack.c.b16 %v5237, %v5235
    %v5362 = vpack.c.b16 %v5240, %v5238
    %v5363 = vpack.c.b16 %v5241, %v5239
    %v5364 = vpack.c.b16 %v5244, %v5242
    %v5365 = vpack.c.b16 %v5245, %v5243
    %v5366 = vpack.c.b16 %v5248, %v5246
    %v5367 = vpack.c.b16 %v5249, %v5247
    %v5368 = vpack.c.b16 %v5252, %v5250
    %v5369 = vpack.c.b16 %v5253, %v5251
    %v5370 = vpack.c.b16 %v5256, %v5254
    %v5371 = vpack.c.b16 %v5257, %v5255
    %v5372 = vpack.c.b16 %v5260, %v5258
    %v5373 = vpack.c.b16 %v5261, %v5259
    %v5374 = vpack.c.b16 %v5264, %v5262
    %v5375 = vpack.c.b16 %v5265, %v5263
    %v5376 = vpack.c.b16 %v5268, %v5266
    %v5377 = vpack.c.b16 %v5269, %v5267
    %v5378 = vpack.c.b16 %v5272, %v5270
    %v5379 = vpack.c.b16 %v5273, %v5271
    %v5380 = vpack.c.b16 %v5276, %v5274
    %v5381 = vpack.c.b16 %v5277, %v5275
    %v5382 = vpack.c.b16 %v5280, %v5278
    %v5383 = vpack.c.b16 %v5281, %v5279
    %v5384 = vpack.c.b16 %v5284, %v5282
    %v5385 = vpack.c.b16 %v5285, %v5283
    %v5386 = vpack.c.b16 %v5288, %v5286
    %v5387 = vpack.c.b16 %v5289, %v5287
    %v5388 = vpack.c.b16 %v5292, %v5290
    %v5389 = vpack.c.b16 %v5293, %v5291
    %v5390 = vpack.c.b16 %v5296, %v5294
    %v5391 = vpack.c.b16 %v5297, %v5295
    %v5392 = vpack.c.b16 %v5300, %v5298
    %v5393 = vpack.c.b16 %v5301, %v5299
    %v5394 = vpack.c.b16 %v5304, %v5302
    %v5395 = vpack.c.b16 %v5305, %v5303
    %v5396 = vpack.c.b16 %v5308, %v5306
    %v5397 = vpack.c.b16 %v5309, %v5307
    %v5398 = vpack.c.b16 %v5312, %v5310
    %v5399 = vpack.c.b16 %v5313, %v5311
    %v5400 = vpack.c.b16 %v5316, %v5314
    %v5401 = vpack.c.b16 %v5317, %v5315
    %v5402 = vpack.c.b16 %v5320, %v5318
    %v5403 = vpack.c.b16 %v5321, %v5319
    %v5404 = vpack.c.b16 %v5324, %v5322
    %v5405 = vpack.c.b16 %v5325, %v5323
    %v5406 = vpack.c.b16 %v5328, %v5326
    %v5407 = vpack.c.b16 %v5329, %v5327
    %v5408 = vpack.c.b16 %v5332, %v5330
    %v5409 = vpack.c.b16 %v5333, %v5331
    %v5410 = vpack.c.b16 %v5336, %v5334
    %v5411 = vpack.c.b16 %v5337, %v5335
    %v5412 = vpack.c.b16 %v5340, %v5338
    %v5413 = vpack.c.b16 %v5341, %v5339
    %v5414 = vpack.c.b16 %v5344, %v5342
    %v5415 = vpack.c.b16 %v5345, %v5343
    %v5416 = vpack.c.b16 %v5348, %v5346
    %v5417 = vpack.c.b16 %v5349, %v5347
    %v5418 = vpack.c.b16 %v5352, %v5350
    %v5419 = vpack.c.b16 %v5353, %v5351
    %v5420 = vpack.c.b16 %v5356, %v5354
    %v5421 = vpack.c.b16 %v5357, %v5355
    %5486 = vmatpush.bf16.msra.mxu0 %v5372
    %5487 = vmatpush.bf16.msra.mxu0 %v5370
    %5488 = vmatpush.bf16.msra.mxu0 %v5368
    %5489 = vmatpush.bf16.msra.mxu0 %v5366
    %5490 = vmatpush.bf16.msra.mxu0 %v5364
    %5491 = vmatpush.bf16.msra.mxu0 %v5362
    %5492 = vmatpush.bf16.msra.mxu0 %v5360
    %5493 = vmatpush.bf16.msra.mxu0 %v5358
    %5494 = vmatmul.bf16.gmra.mxu0 %v5038
    %v5495 = vpop.f32.mrf.mxu0
    %v5496 = vadd.f32 0.0, %v5495
    %v5497 = vpop.f32.mrf.mxu0
    %v5498 = vadd.f32 0.0, %v5497
    %5499 = vmatmul.bf16.gmra.mxu0 %v5042
    %v5500 = vpop.f32.mrf.mxu0
    %v5501 = vadd.f32 0.0, %v5500
    %v5502 = vpop.f32.mrf.mxu0
    %v5503 = vadd.f32 0.0, %v5502
    %5504 = vmatmul.bf16.gmra.mxu0 %v5046
    %v5505 = vpop.f32.mrf.mxu0
    %v5506 = vadd.f32 0.0, %v5505
    %v5507 = vpop.f32.mrf.mxu0
    %v5508 = vadd.f32 0.0, %v5507
    %5509 = vmatmul.bf16.gmra.mxu0 %v5050
    %v5510 = vpop.f32.mrf.mxu0
    %v5511 = vadd.f32 0.0, %v5510
    %v5512 = vpop.f32.mrf.mxu0
    %v5513 = vadd.f32 0.0, %v5512
    %5514 = vmatmul.bf16.gmra.mxu0 %v5054
    %v5515 = vpop.f32.mrf.mxu0
    %v5516 = vadd.f32 0.0, %v5515
    %v5517 = vpop.f32.mrf.mxu0
    %v5518 = vadd.f32 0.0, %v5517
    %5519 = vmatmul.bf16.gmra.mxu0 %v5058
    %v5520 = vpop.f32.mrf.mxu0
    %v5521 = vadd.f32 0.0, %v5520
    %v5522 = vpop.f32.mrf.mxu0
    %v5523 = vadd.f32 0.0, %v5522
    %5524 = vmatmul.bf16.gmra.mxu0 %v5062
    %v5525 = vpop.f32.mrf.mxu0
    %v5526 = vadd.f32 0.0, %v5525
    %v5527 = vpop.f32.mrf.mxu0
    %v5528 = vadd.f32 0.0, %v5527
    %5529 = vmatmul.bf16.gmra.mxu0 %v5066
    %v5530 = vpop.f32.mrf.mxu0
    %v5531 = vadd.f32 0.0, %v5530
    %v5532 = vpop.f32.mrf.mxu0
    %v5533 = vadd.f32 0.0, %v5532
    %5534 = vmatmul.bf16.gmra.mxu0 %v5070
    %v5535 = vpop.f32.mrf.mxu0
    %v5536 = vadd.f32 0.0, %v5535
    %v5537 = vpop.f32.mrf.mxu0
    %v5538 = vadd.f32 0.0, %v5537
    %5539 = vmatmul.bf16.gmra.mxu0 %v5074
    %v5540 = vpop.f32.mrf.mxu0
    %v5541 = vadd.f32 0.0, %v5540
    %v5542 = vpop.f32.mrf.mxu0
    %v5543 = vadd.f32 0.0, %v5542
    %5544 = vmatmul.bf16.gmra.mxu0 %v5078
    %v5545 = vpop.f32.mrf.mxu0
    %v5546 = vadd.f32 0.0, %v5545
    %v5547 = vpop.f32.mrf.mxu0
    %v5548 = vadd.f32 0.0, %v5547
    %5549 = vmatmul.bf16.gmra.mxu0 %v5082
    %v5550 = vpop.f32.mrf.mxu0
    %v5551 = vadd.f32 0.0, %v5550
    %v5552 = vpop.f32.mrf.mxu0
    %v5553 = vadd.f32 0.0, %v5552
    %5554 = vmatmul.bf16.gmra.mxu0 %v5086
    %v5555 = vpop.f32.mrf.mxu0
    %v5556 = vadd.f32 0.0, %v5555
    %v5557 = vpop.f32.mrf.mxu0
    %v5558 = vadd.f32 0.0, %v5557
    %5559 = vmatmul.bf16.gmra.mxu0 %v5090
    %v5560 = vpop.f32.mrf.mxu0
    %v5561 = vadd.f32 0.0, %v5560
    %v5562 = vpop.f32.mrf.mxu0
    %v5563 = vadd.f32 0.0, %v5562
    %5564 = vmatmul.bf16.gmra.mxu0 %v5094
    %v5565 = vpop.f32.mrf.mxu0
    %v5566 = vadd.f32 0.0, %v5565
    %v5567 = vpop.f32.mrf.mxu0
    %v5568 = vadd.f32 0.0, %v5567
    %5569 = vmatmul.bf16.gmra.mxu0 %v5098
    %v5570 = vpop.f32.mrf.mxu0
    %v5571 = vadd.f32 0.0, %v5570
    %v5572 = vpop.f32.mrf.mxu0
    %v5573 = vadd.f32 0.0, %v5572
    %5574 = vdwg.mxu0
    %5575 = vmatpush.bf16.msra.mxu0 %v5388
    %5576 = vmatpush.bf16.msra.mxu0 %v5386
    %5577 = vmatpush.bf16.msra.mxu0 %v5384
    %5578 = vmatpush.bf16.msra.mxu0 %v5382
    %5579 = vmatpush.bf16.msra.mxu0 %v5380
    %5580 = vmatpush.bf16.msra.mxu0 %v5378
    %5581 = vmatpush.bf16.msra.mxu0 %v5376
    %5582 = vmatpush.bf16.msra.mxu0 %v5374
    %5583 = vmatmul.bf16.gmra.mxu0 %v5039
    %v5584 = vpop.f32.mrf.mxu0
    %v5585 = vadd.f32 %v5496, %v5584
    %v5586 = vpop.f32.mrf.mxu0
    %v5587 = vadd.f32 %v5498, %v5586
    %5588 = vmatmul.bf16.gmra.mxu0 %v5043
    %v5589 = vpop.f32.mrf.mxu0
    %v5590 = vadd.f32 %v5501, %v5589
    %v5591 = vpop.f32.mrf.mxu0
    %v5592 = vadd.f32 %v5503, %v5591
    %5593 = vmatmul.bf16.gmra.mxu0 %v5047
    %v5594 = vpop.f32.mrf.mxu0
    %v5595 = vadd.f32 %v5506, %v5594
    %v5596 = vpop.f32.mrf.mxu0
    %v5597 = vadd.f32 %v5508, %v5596
    %5598 = vmatmul.bf16.gmra.mxu0 %v5051
    %v5599 = vpop.f32.mrf.mxu0
    %v5600 = vadd.f32 %v5511, %v5599
    %v5601 = vpop.f32.mrf.mxu0
    %v5602 = vadd.f32 %v5513, %v5601
    %5603 = vmatmul.bf16.gmra.mxu0 %v5055
    %v5604 = vpop.f32.mrf.mxu0
    %v5605 = vadd.f32 %v5516, %v5604
    %v5606 = vpop.f32.mrf.mxu0
    %v5607 = vadd.f32 %v5518, %v5606
    %5608 = vmatmul.bf16.gmra.mxu0 %v5059
    %v5609 = vpop.f32.mrf.mxu0
    %v5610 = vadd.f32 %v5521, %v5609
    %v5611 = vpop.f32.mrf.mxu0
    %v5612 = vadd.f32 %v5523, %v5611
    %5613 = vmatmul.bf16.gmra.mxu0 %v5063
    %v5614 = vpop.f32.mrf.mxu0
    %v5615 = vadd.f32 %v5526, %v5614
    %v5616 = vpop.f32.mrf.mxu0
    %v5617 = vadd.f32 %v5528, %v5616
    %5618 = vmatmul.bf16.gmra.mxu0 %v5067
    %v5619 = vpop.f32.mrf.mxu0
    %v5620 = vadd.f32 %v5531, %v5619
    %v5621 = vpop.f32.mrf.mxu0
    %v5622 = vadd.f32 %v5533, %v5621
    %5623 = vmatmul.bf16.gmra.mxu0 %v5071
    %v5624 = vpop.f32.mrf.mxu0
    %v5625 = vadd.f32 %v5536, %v5624
    %v5626 = vpop.f32.mrf.mxu0
    %v5627 = vadd.f32 %v5538, %v5626
    %5628 = vmatmul.bf16.gmra.mxu0 %v5075
    %v5629 = vpop.f32.mrf.mxu0
    %v5630 = vadd.f32 %v5541, %v5629
    %v5631 = vpop.f32.mrf.mxu0
    %v5632 = vadd.f32 %v5543, %v5631
    %5633 = vmatmul.bf16.gmra.mxu0 %v5079
    %v5634 = vpop.f32.mrf.mxu0
    %v5635 = vadd.f32 %v5546, %v5634
    %v5636 = vpop.f32.mrf.mxu0
    %v5637 = vadd.f32 %v5548, %v5636
    %5638 = vmatmul.bf16.gmra.mxu0 %v5083
    %v5639 = vpop.f32.mrf.mxu0
    %v5640 = vadd.f32 %v5551, %v5639
    %v5641 = vpop.f32.mrf.mxu0
    %v5642 = vadd.f32 %v5553, %v5641
    %5643 = vmatmul.bf16.gmra.mxu0 %v5087
    %v5644 = vpop.f32.mrf.mxu0
    %v5645 = vadd.f32 %v5556, %v5644
    %v5646 = vpop.f32.mrf.mxu0
    %v5647 = vadd.f32 %v5558, %v5646
    %5648 = vmatmul.bf16.gmra.mxu0 %v5091
    %v5649 = vpop.f32.mrf.mxu0
    %v5650 = vadd.f32 %v5561, %v5649
    %v5651 = vpop.f32.mrf.mxu0
    %v5652 = vadd.f32 %v5563, %v5651
    %5653 = vmatmul.bf16.gmra.mxu0 %v5095
    %v5654 = vpop.f32.mrf.mxu0
    %v5655 = vadd.f32 %v5566, %v5654
    %v5656 = vpop.f32.mrf.mxu0
    %v5657 = vadd.f32 %v5568, %v5656
    %5658 = vmatmul.bf16.gmra.mxu0 %v5099
    %v5659 = vpop.f32.mrf.mxu0
    %v5660 = vadd.f32 %v5571, %v5659
    %v5661 = vpop.f32.mrf.mxu0
    %v5662 = vadd.f32 %v5573, %v5661
    %5663 = vdwg.mxu0
    %5664 = vmatpush.bf16.msra.mxu0 %v5404
    %5665 = vmatpush.bf16.msra.mxu0 %v5402
    %5666 = vmatpush.bf16.msra.mxu0 %v5400
    %5667 = vmatpush.bf16.msra.mxu0 %v5398
    %5668 = vmatpush.bf16.msra.mxu0 %v5396
    %5669 = vmatpush.bf16.msra.mxu0 %v5394
    %5670 = vmatpush.bf16.msra.mxu0 %v5392
    %5671 = vmatpush.bf16.msra.mxu0 %v5390
    %5672 = vmatmul.bf16.gmra.mxu0 %v5040
    %v5673 = vpop.f32.mrf.mxu0
    %v5674 = vadd.f32 %v5585, %v5673
    %v5675 = vpop.f32.mrf.mxu0
    %v5676 = vadd.f32 %v5587, %v5675
    %5677 = vmatmul.bf16.gmra.mxu0 %v5044
    %v5678 = vpop.f32.mrf.mxu0
    %v5679 = vadd.f32 %v5590, %v5678
    %v5680 = vpop.f32.mrf.mxu0
    %v5681 = vadd.f32 %v5592, %v5680
    %5682 = vmatmul.bf16.gmra.mxu0 %v5048
    %v5683 = vpop.f32.mrf.mxu0
    %v5684 = vadd.f32 %v5595, %v5683
    %v5685 = vpop.f32.mrf.mxu0
    %v5686 = vadd.f32 %v5597, %v5685
    %5687 = vmatmul.bf16.gmra.mxu0 %v5052
    %v5688 = vpop.f32.mrf.mxu0
    %v5689 = vadd.f32 %v5600, %v5688
    %v5690 = vpop.f32.mrf.mxu0
    %v5691 = vadd.f32 %v5602, %v5690
    %5692 = vmatmul.bf16.gmra.mxu0 %v5056
    %v5693 = vpop.f32.mrf.mxu0
    %v5694 = vadd.f32 %v5605, %v5693
    %v5695 = vpop.f32.mrf.mxu0
    %v5696 = vadd.f32 %v5607, %v5695
    %5697 = vmatmul.bf16.gmra.mxu0 %v5060
    %v5698 = vpop.f32.mrf.mxu0
    %v5699 = vadd.f32 %v5610, %v5698
    %v5700 = vpop.f32.mrf.mxu0
    %v5701 = vadd.f32 %v5612, %v5700
    %5702 = vmatmul.bf16.gmra.mxu0 %v5064
    %v5703 = vpop.f32.mrf.mxu0
    %v5704 = vadd.f32 %v5615, %v5703
    %v5705 = vpop.f32.mrf.mxu0
    %v5706 = vadd.f32 %v5617, %v5705
    %5707 = vmatmul.bf16.gmra.mxu0 %v5068
    %v5708 = vpop.f32.mrf.mxu0
    %v5709 = vadd.f32 %v5620, %v5708
    %v5710 = vpop.f32.mrf.mxu0
    %v5711 = vadd.f32 %v5622, %v5710
    %5712 = vmatmul.bf16.gmra.mxu0 %v5072
    %v5713 = vpop.f32.mrf.mxu0
    %v5714 = vadd.f32 %v5625, %v5713
    %v5715 = vpop.f32.mrf.mxu0
    %v5716 = vadd.f32 %v5627, %v5715
    %5717 = vmatmul.bf16.gmra.mxu0 %v5076
    %v5718 = vpop.f32.mrf.mxu0
    %v5719 = vadd.f32 %v5630, %v5718
    %v5720 = vpop.f32.mrf.mxu0
    %v5721 = vadd.f32 %v5632, %v5720
    %5722 = vmatmul.bf16.gmra.mxu0 %v5080
    %v5723 = vpop.f32.mrf.mxu0
    %v5724 = vadd.f32 %v5635, %v5723
    %v5725 = vpop.f32.mrf.mxu0
    %v5726 = vadd.f32 %v5637, %v5725
    %5727 = vmatmul.bf16.gmra.mxu0 %v5084
    %v5728 = vpop.f32.mrf.mxu0
    %v5729 = vadd.f32 %v5640, %v5728
    %v5730 = vpop.f32.mrf.mxu0
    %v5731 = vadd.f32 %v5642, %v5730
    %5732 = vmatmul.bf16.gmra.mxu0 %v5088
    %v5733 = vpop.f32.mrf.mxu0
    %v5734 = vadd.f32 %v5645, %v5733
    %v5735 = vpop.f32.mrf.mxu0
    %v5736 = vadd.f32 %v5647, %v5735
    %5737 = vmatmul.bf16.gmra.mxu0 %v5092
    %v5738 = vpop.f32.mrf.mxu0
    %v5739 = vadd.f32 %v5650, %v5738
    %v5740 = vpop.f32.mrf.mxu0
    %v5741 = vadd.f32 %v5652, %v5740
    %5742 = vmatmul.bf16.gmra.mxu0 %v5096
    %v5743 = vpop.f32.mrf.mxu0
    %v5744 = vadd.f32 %v5655, %v5743
    %v5745 = vpop.f32.mrf.mxu0
    %v5746 = vadd.f32 %v5657, %v5745
    %5747 = vmatmul.bf16.gmra.mxu0 %v5100
    %v5748 = vpop.f32.mrf.mxu0
    %v5749 = vadd.f32 %v5660, %v5748
    %v5750 = vpop.f32.mrf.mxu0
    %v5751 = vadd.f32 %v5662, %v5750
    %5752 = vdwg.mxu0
    %5753 = vmatpush.bf16.msra.mxu0 %v5420
    %5754 = vmatpush.bf16.msra.mxu0 %v5418
    %5755 = vmatpush.bf16.msra.mxu0 %v5416
    %5756 = vmatpush.bf16.msra.mxu0 %v5414
    %5757 = vmatpush.bf16.msra.mxu0 %v5412
    %5758 = vmatpush.bf16.msra.mxu0 %v5410
    %5759 = vmatpush.bf16.msra.mxu0 %v5408
    %5760 = vmatpush.bf16.msra.mxu0 %v5406
    %5761 = vmatmul.bf16.gmra.mxu0 %v5041
    %v5762 = vpop.f32.mrf.mxu0
    %v5763 = vadd.f32 %v5674, %v5762
    %v5764 = vpop.f32.mrf.mxu0
    %v5765 = vadd.f32 %v5676, %v5764
    %5766 = vmatmul.bf16.gmra.mxu0 %v5045
    %v5767 = vpop.f32.mrf.mxu0
    %v5768 = vadd.f32 %v5679, %v5767
    %v5769 = vpop.f32.mrf.mxu0
    %v5770 = vadd.f32 %v5681, %v5769
    %5771 = vmatmul.bf16.gmra.mxu0 %v5049
    %v5772 = vpop.f32.mrf.mxu0
    %v5773 = vadd.f32 %v5684, %v5772
    %v5774 = vpop.f32.mrf.mxu0
    %v5775 = vadd.f32 %v5686, %v5774
    %5776 = vmatmul.bf16.gmra.mxu0 %v5053
    %v5777 = vpop.f32.mrf.mxu0
    %v5778 = vadd.f32 %v5689, %v5777
    %v5779 = vpop.f32.mrf.mxu0
    %v5780 = vadd.f32 %v5691, %v5779
    %5781 = vmatmul.bf16.gmra.mxu0 %v5057
    %v5782 = vpop.f32.mrf.mxu0
    %v5783 = vadd.f32 %v5694, %v5782
    %v5784 = vpop.f32.mrf.mxu0
    %v5785 = vadd.f32 %v5696, %v5784
    %5786 = vmatmul.bf16.gmra.mxu0 %v5061
    %v5787 = vpop.f32.mrf.mxu0
    %v5788 = vadd.f32 %v5699, %v5787
    %v5789 = vpop.f32.mrf.mxu0
    %v5790 = vadd.f32 %v5701, %v5789
    %5791 = vmatmul.bf16.gmra.mxu0 %v5065
    %v5792 = vpop.f32.mrf.mxu0
    %v5793 = vadd.f32 %v5704, %v5792
    %v5794 = vpop.f32.mrf.mxu0
    %v5795 = vadd.f32 %v5706, %v5794
    %5796 = vmatmul.bf16.gmra.mxu0 %v5069
    %v5797 = vpop.f32.mrf.mxu0
    %v5798 = vadd.f32 %v5709, %v5797
    %v5799 = vpop.f32.mrf.mxu0
    %v5800 = vadd.f32 %v5711, %v5799
    %5801 = vmatmul.bf16.gmra.mxu0 %v5073
    %v5802 = vpop.f32.mrf.mxu0
    %v5803 = vadd.f32 %v5714, %v5802
    %v5804 = vpop.f32.mrf.mxu0
    %v5805 = vadd.f32 %v5716, %v5804
    %5806 = vmatmul.bf16.gmra.mxu0 %v5077
    %v5807 = vpop.f32.mrf.mxu0
    %v5808 = vadd.f32 %v5719, %v5807
    %v5809 = vpop.f32.mrf.mxu0
    %v5810 = vadd.f32 %v5721, %v5809
    %5811 = vmatmul.bf16.gmra.mxu0 %v5081
    %v5812 = vpop.f32.mrf.mxu0
    %v5813 = vadd.f32 %v5724, %v5812
    %v5814 = vpop.f32.mrf.mxu0
    %v5815 = vadd.f32 %v5726, %v5814
    %5816 = vmatmul.bf16.gmra.mxu0 %v5085
    %v5817 = vpop.f32.mrf.mxu0
    %v5818 = vadd.f32 %v5729, %v5817
    %v5819 = vpop.f32.mrf.mxu0
    %v5820 = vadd.f32 %v5731, %v5819
    %5821 = vmatmul.bf16.gmra.mxu0 %v5089
    %v5822 = vpop.f32.mrf.mxu0
    %v5823 = vadd.f32 %v5734, %v5822
    %v5824 = vpop.f32.mrf.mxu0
    %v5825 = vadd.f32 %v5736, %v5824
    %5826 = vmatmul.bf16.gmra.mxu0 %v5093
    %v5827 = vpop.f32.mrf.mxu0
    %v5828 = vadd.f32 %v5739, %v5827
    %v5829 = vpop.f32.mrf.mxu0
    %v5830 = vadd.f32 %v5741, %v5829
    %5831 = vmatmul.bf16.gmra.mxu0 %v5097
    %v5832 = vpop.f32.mrf.mxu0
    %v5833 = vadd.f32 %v5744, %v5832
    %v5834 = vpop.f32.mrf.mxu0
    %v5835 = vadd.f32 %v5746, %v5834
    %5836 = vmatmul.bf16.gmra.mxu0 %v5101
    %v5837 = vpop.f32.mrf.mxu0
    %v5838 = vadd.f32 %v5749, %v5837
    %v5839 = vpop.f32.mrf.mxu0
    %v5840 = vadd.f32 %v5751, %v5839
    %5841 = vdwg.mxu0
    %5842 = vmatpush.bf16.msra.mxu0 %v5373
    %5843 = vmatpush.bf16.msra.mxu0 %v5371
    %5844 = vmatpush.bf16.msra.mxu0 %v5369
    %5845 = vmatpush.bf16.msra.mxu0 %v5367
    %5846 = vmatpush.bf16.msra.mxu0 %v5365
    %5847 = vmatpush.bf16.msra.mxu0 %v5363
    %5848 = vmatpush.bf16.msra.mxu0 %v5361
    %5849 = vmatpush.bf16.msra.mxu0 %v5359
    %5850 = vmatmul.bf16.gmra.mxu0 %v5038
    %v5851 = vpop.f32.mrf.mxu0
    %v5852 = vadd.f32 0.0, %v5851
    %v5853 = vpop.f32.mrf.mxu0
    %v5854 = vadd.f32 0.0, %v5853
    %5855 = vmatmul.bf16.gmra.mxu0 %v5042
    %v5856 = vpop.f32.mrf.mxu0
    %v5857 = vadd.f32 0.0, %v5856
    %v5858 = vpop.f32.mrf.mxu0
    %v5859 = vadd.f32 0.0, %v5858
    %5860 = vmatmul.bf16.gmra.mxu0 %v5046
    %v5861 = vpop.f32.mrf.mxu0
    %v5862 = vadd.f32 0.0, %v5861
    %v5863 = vpop.f32.mrf.mxu0
    %v5864 = vadd.f32 0.0, %v5863
    %5865 = vmatmul.bf16.gmra.mxu0 %v5050
    %v5866 = vpop.f32.mrf.mxu0
    %v5867 = vadd.f32 0.0, %v5866
    %v5868 = vpop.f32.mrf.mxu0
    %v5869 = vadd.f32 0.0, %v5868
    %5870 = vmatmul.bf16.gmra.mxu0 %v5054
    %v5871 = vpop.f32.mrf.mxu0
    %v5872 = vadd.f32 0.0, %v5871
    %v5873 = vpop.f32.mrf.mxu0
    %v5874 = vadd.f32 0.0, %v5873
    %5875 = vmatmul.bf16.gmra.mxu0 %v5058
    %v5876 = vpop.f32.mrf.mxu0
    %v5877 = vadd.f32 0.0, %v5876
    %v5878 = vpop.f32.mrf.mxu0
    %v5879 = vadd.f32 0.0, %v5878
    %5880 = vmatmul.bf16.gmra.mxu0 %v5062
    %v5881 = vpop.f32.mrf.mxu0
    %v5882 = vadd.f32 0.0, %v5881
    %v5883 = vpop.f32.mrf.mxu0
    %v5884 = vadd.f32 0.0, %v5883
    %5885 = vmatmul.bf16.gmra.mxu0 %v5066
    %v5886 = vpop.f32.mrf.mxu0
    %v5887 = vadd.f32 0.0, %v5886
    %v5888 = vpop.f32.mrf.mxu0
    %v5889 = vadd.f32 0.0, %v5888
    %5890 = vmatmul.bf16.gmra.mxu0 %v5070
    %v5891 = vpop.f32.mrf.mxu0
    %v5892 = vadd.f32 0.0, %v5891
    %v5893 = vpop.f32.mrf.mxu0
    %v5894 = vadd.f32 0.0, %v5893
    %5895 = vmatmul.bf16.gmra.mxu0 %v5074
    %v5896 = vpop.f32.mrf.mxu0
    %v5897 = vadd.f32 0.0, %v5896
    %v5898 = vpop.f32.mrf.mxu0
    %v5899 = vadd.f32 0.0, %v5898
    %5900 = vmatmul.bf16.gmra.mxu0 %v5078
    %v5901 = vpop.f32.mrf.mxu0
    %v5902 = vadd.f32 0.0, %v5901
    %v5903 = vpop.f32.mrf.mxu0
    %v5904 = vadd.f32 0.0, %v5903
    %5905 = vmatmul.bf16.gmra.mxu0 %v5082
    %v5906 = vpop.f32.mrf.mxu0
    %v5907 = vadd.f32 0.0, %v5906
    %v5908 = vpop.f32.mrf.mxu0
    %v5909 = vadd.f32 0.0, %v5908
    %5910 = vmatmul.bf16.gmra.mxu0 %v5086
    %v5911 = vpop.f32.mrf.mxu0
    %v5912 = vadd.f32 0.0, %v5911
    %v5913 = vpop.f32.mrf.mxu0
    %v5914 = vadd.f32 0.0, %v5913
    %5915 = vmatmul.bf16.gmra.mxu0 %v5090
    %v5916 = vpop.f32.mrf.mxu0
    %v5917 = vadd.f32 0.0, %v5916
    %v5918 = vpop.f32.mrf.mxu0
    %v5919 = vadd.f32 0.0, %v5918
    %5920 = vmatmul.bf16.gmra.mxu0 %v5094
    %v5921 = vpop.f32.mrf.mxu0
    %v5922 = vadd.f32 0.0, %v5921
    %v5923 = vpop.f32.mrf.mxu0
    %v5924 = vadd.f32 0.0, %v5923
    %5925 = vmatmul.bf16.gmra.mxu0 %v5098
    %v5926 = vpop.f32.mrf.mxu0
    %v5927 = vadd.f32 0.0, %v5926
    %v5928 = vpop.f32.mrf.mxu0
    %v5929 = vadd.f32 0.0, %v5928
    %5930 = vdwg.mxu0
    %5931 = vmatpush.bf16.msra.mxu0 %v5389
    %5932 = vmatpush.bf16.msra.mxu0 %v5387
    %5933 = vmatpush.bf16.msra.mxu0 %v5385
    %5934 = vmatpush.bf16.msra.mxu0 %v5383
    %5935 = vmatpush.bf16.msra.mxu0 %v5381
    %5936 = vmatpush.bf16.msra.mxu0 %v5379
    %5937 = vmatpush.bf16.msra.mxu0 %v5377
    %5938 = vmatpush.bf16.msra.mxu0 %v5375
    %5939 = vmatmul.bf16.gmra.mxu0 %v5039
    %v5940 = vpop.f32.mrf.mxu0
    %v5941 = vadd.f32 %v5852, %v5940
    %v5942 = vpop.f32.mrf.mxu0
    %v5943 = vadd.f32 %v5854, %v5942
    %5944 = vmatmul.bf16.gmra.mxu0 %v5043
    %v5945 = vpop.f32.mrf.mxu0
    %v5946 = vadd.f32 %v5857, %v5945
    %v5947 = vpop.f32.mrf.mxu0
    %v5948 = vadd.f32 %v5859, %v5947
    %5949 = vmatmul.bf16.gmra.mxu0 %v5047
    %v5950 = vpop.f32.mrf.mxu0
    %v5951 = vadd.f32 %v5862, %v5950
    %v5952 = vpop.f32.mrf.mxu0
    %v5953 = vadd.f32 %v5864, %v5952
    %5954 = vmatmul.bf16.gmra.mxu0 %v5051
    %v5955 = vpop.f32.mrf.mxu0
    %v5956 = vadd.f32 %v5867, %v5955
    %v5957 = vpop.f32.mrf.mxu0
    %v5958 = vadd.f32 %v5869, %v5957
    %5959 = vmatmul.bf16.gmra.mxu0 %v5055
    %v5960 = vpop.f32.mrf.mxu0
    %v5961 = vadd.f32 %v5872, %v5960
    %v5962 = vpop.f32.mrf.mxu0
    %v5963 = vadd.f32 %v5874, %v5962
    %5964 = vmatmul.bf16.gmra.mxu0 %v5059
    %v5965 = vpop.f32.mrf.mxu0
    %v5966 = vadd.f32 %v5877, %v5965
    %v5967 = vpop.f32.mrf.mxu0
    %v5968 = vadd.f32 %v5879, %v5967
    %5969 = vmatmul.bf16.gmra.mxu0 %v5063
    %v5970 = vpop.f32.mrf.mxu0
    %v5971 = vadd.f32 %v5882, %v5970
    %v5972 = vpop.f32.mrf.mxu0
    %v5973 = vadd.f32 %v5884, %v5972
    %5974 = vmatmul.bf16.gmra.mxu0 %v5067
    %v5975 = vpop.f32.mrf.mxu0
    %v5976 = vadd.f32 %v5887, %v5975
    %v5977 = vpop.f32.mrf.mxu0
    %v5978 = vadd.f32 %v5889, %v5977
    %5979 = vmatmul.bf16.gmra.mxu0 %v5071
    %v5980 = vpop.f32.mrf.mxu0
    %v5981 = vadd.f32 %v5892, %v5980
    %v5982 = vpop.f32.mrf.mxu0
    %v5983 = vadd.f32 %v5894, %v5982
    %5984 = vmatmul.bf16.gmra.mxu0 %v5075
    %v5985 = vpop.f32.mrf.mxu0
    %v5986 = vadd.f32 %v5897, %v5985
    %v5987 = vpop.f32.mrf.mxu0
    %v5988 = vadd.f32 %v5899, %v5987
    %5989 = vmatmul.bf16.gmra.mxu0 %v5079
    %v5990 = vpop.f32.mrf.mxu0
    %v5991 = vadd.f32 %v5902, %v5990
    %v5992 = vpop.f32.mrf.mxu0
    %v5993 = vadd.f32 %v5904, %v5992
    %5994 = vmatmul.bf16.gmra.mxu0 %v5083
    %v5995 = vpop.f32.mrf.mxu0
    %v5996 = vadd.f32 %v5907, %v5995
    %v5997 = vpop.f32.mrf.mxu0
    %v5998 = vadd.f32 %v5909, %v5997
    %5999 = vmatmul.bf16.gmra.mxu0 %v5087
    %v6000 = vpop.f32.mrf.mxu0
    %v6001 = vadd.f32 %v5912, %v6000
    %v6002 = vpop.f32.mrf.mxu0
    %v6003 = vadd.f32 %v5914, %v6002
    %6004 = vmatmul.bf16.gmra.mxu0 %v5091
    %v6005 = vpop.f32.mrf.mxu0
    %v6006 = vadd.f32 %v5917, %v6005
    %v6007 = vpop.f32.mrf.mxu0
    %v6008 = vadd.f32 %v5919, %v6007
    %6009 = vmatmul.bf16.gmra.mxu0 %v5095
    %v6010 = vpop.f32.mrf.mxu0
    %v6011 = vadd.f32 %v5922, %v6010
    %v6012 = vpop.f32.mrf.mxu0
    %v6013 = vadd.f32 %v5924, %v6012
    %6014 = vmatmul.bf16.gmra.mxu0 %v5099
    %v6015 = vpop.f32.mrf.mxu0
    %v6016 = vadd.f32 %v5927, %v6015
    %v6017 = vpop.f32.mrf.mxu0
    %v6018 = vadd.f32 %v5929, %v6017
    %6019 = vdwg.mxu0
    %6020 = vmatpush.bf16.msra.mxu0 %v5405
    %6021 = vmatpush.bf16.msra.mxu0 %v5403
    %6022 = vmatpush.bf16.msra.mxu0 %v5401
    %6023 = vmatpush.bf16.msra.mxu0 %v5399
    %6024 = vmatpush.bf16.msra.mxu0 %v5397
    %6025 = vmatpush.bf16.msra.mxu0 %v5395
    %6026 = vmatpush.bf16.msra.mxu0 %v5393
    %6027 = vmatpush.bf16.msra.mxu0 %v5391
    %6028 = vmatmul.bf16.gmra.mxu0 %v5040
    %v6029 = vpop.f32.mrf.mxu0
    %v6030 = vadd.f32 %v5941, %v6029
    %v6031 = vpop.f32.mrf.mxu0
    %v6032 = vadd.f32 %v5943, %v6031
    %6033 = vmatmul.bf16.gmra.mxu0 %v5044
    %v6034 = vpop.f32.mrf.mxu0
    %v6035 = vadd.f32 %v5946, %v6034
    %v6036 = vpop.f32.mrf.mxu0
    %v6037 = vadd.f32 %v5948, %v6036
    %6038 = vmatmul.bf16.gmra.mxu0 %v5048
    %v6039 = vpop.f32.mrf.mxu0
    %v6040 = vadd.f32 %v5951, %v6039
    %v6041 = vpop.f32.mrf.mxu0
    %v6042 = vadd.f32 %v5953, %v6041
    %6043 = vmatmul.bf16.gmra.mxu0 %v5052
    %v6044 = vpop.f32.mrf.mxu0
    %v6045 = vadd.f32 %v5956, %v6044
    %v6046 = vpop.f32.mrf.mxu0
    %v6047 = vadd.f32 %v5958, %v6046
    %6048 = vmatmul.bf16.gmra.mxu0 %v5056
    %v6049 = vpop.f32.mrf.mxu0
    %v6050 = vadd.f32 %v5961, %v6049
    %v6051 = vpop.f32.mrf.mxu0
    %v6052 = vadd.f32 %v5963, %v6051
    %6053 = vmatmul.bf16.gmra.mxu0 %v5060
    %v6054 = vpop.f32.mrf.mxu0
    %v6055 = vadd.f32 %v5966, %v6054
    %v6056 = vpop.f32.mrf.mxu0
    %v6057 = vadd.f32 %v5968, %v6056
    %6058 = vmatmul.bf16.gmra.mxu0 %v5064
    %v6059 = vpop.f32.mrf.mxu0
    %v6060 = vadd.f32 %v5971, %v6059
    %v6061 = vpop.f32.mrf.mxu0
    %v6062 = vadd.f32 %v5973, %v6061
    %6063 = vmatmul.bf16.gmra.mxu0 %v5068
    %v6064 = vpop.f32.mrf.mxu0
    %v6065 = vadd.f32 %v5976, %v6064
    %v6066 = vpop.f32.mrf.mxu0
    %v6067 = vadd.f32 %v5978, %v6066
    %6068 = vmatmul.bf16.gmra.mxu0 %v5072
    %v6069 = vpop.f32.mrf.mxu0
    %v6070 = vadd.f32 %v5981, %v6069
    %v6071 = vpop.f32.mrf.mxu0
    %v6072 = vadd.f32 %v5983, %v6071
    %6073 = vmatmul.bf16.gmra.mxu0 %v5076
    %v6074 = vpop.f32.mrf.mxu0
    %v6075 = vadd.f32 %v5986, %v6074
    %v6076 = vpop.f32.mrf.mxu0
    %v6077 = vadd.f32 %v5988, %v6076
    %6078 = vmatmul.bf16.gmra.mxu0 %v5080
    %v6079 = vpop.f32.mrf.mxu0
    %v6080 = vadd.f32 %v5991, %v6079
    %v6081 = vpop.f32.mrf.mxu0
    %v6082 = vadd.f32 %v5993, %v6081
    %6083 = vmatmul.bf16.gmra.mxu0 %v5084
    %v6084 = vpop.f32.mrf.mxu0
    %v6085 = vadd.f32 %v5996, %v6084
    %v6086 = vpop.f32.mrf.mxu0
    %v6087 = vadd.f32 %v5998, %v6086
    %6088 = vmatmul.bf16.gmra.mxu0 %v5088
    %v6089 = vpop.f32.mrf.mxu0
    %v6090 = vadd.f32 %v6001, %v6089
    %v6091 = vpop.f32.mrf.mxu0
    %v6092 = vadd.f32 %v6003, %v6091
    %6093 = vmatmul.bf16.gmra.mxu0 %v5092
    %v6094 = vpop.f32.mrf.mxu0
    %v6095 = vadd.f32 %v6006, %v6094
    %v6096 = vpop.f32.mrf.mxu0
    %v6097 = vadd.f32 %v6008, %v6096
    %6098 = vmatmul.bf16.gmra.mxu0 %v5096
    %v6099 = vpop.f32.mrf.mxu0
    %v6100 = vadd.f32 %v6011, %v6099
    %v6101 = vpop.f32.mrf.mxu0
    %v6102 = vadd.f32 %v6013, %v6101
    %6103 = vmatmul.bf16.gmra.mxu0 %v5100
    %v6104 = vpop.f32.mrf.mxu0
    %v6105 = vadd.f32 %v6016, %v6104
    %v6106 = vpop.f32.mrf.mxu0
    %v6107 = vadd.f32 %v6018, %v6106
    %6108 = vdwg.mxu0
    %6109 = vmatpush.bf16.msra.mxu0 %v5421
    %6110 = vmatpush.bf16.msra.mxu0 %v5419
    %6111 = vmatpush.bf16.msra.mxu0 %v5417
    %6112 = vmatpush.bf16.msra.mxu0 %v5415
    %6113 = vmatpush.bf16.msra.mxu0 %v5413
    %6114 = vmatpush.bf16.msra.mxu0 %v5411
    %6115 = vmatpush.bf16.msra.mxu0 %v5409
    %6116 = vmatpush.bf16.msra.mxu0 %v5407
    %6117 = vmatmul.bf16.gmra.mxu0 %v5041
    %v6118 = vpop.f32.mrf.mxu0
    %v6119 = vadd.f32 %v6030, %v6118
    %v6120 = vpop.f32.mrf.mxu0
    %v6121 = vadd.f32 %v6032, %v6120
    %6122 = vmatmul.bf16.gmra.mxu0 %v5045
    %v6123 = vpop.f32.mrf.mxu0
    %v6124 = vadd.f32 %v6035, %v6123
    %v6125 = vpop.f32.mrf.mxu0
    %v6126 = vadd.f32 %v6037, %v6125
    %6127 = vmatmul.bf16.gmra.mxu0 %v5049
    %v6128 = vpop.f32.mrf.mxu0
    %v6129 = vadd.f32 %v6040, %v6128
    %v6130 = vpop.f32.mrf.mxu0
    %v6131 = vadd.f32 %v6042, %v6130
    %6132 = vmatmul.bf16.gmra.mxu0 %v5053
    %v6133 = vpop.f32.mrf.mxu0
    %v6134 = vadd.f32 %v6045, %v6133
    %v6135 = vpop.f32.mrf.mxu0
    %v6136 = vadd.f32 %v6047, %v6135
    %6137 = vmatmul.bf16.gmra.mxu0 %v5057
    %v6138 = vpop.f32.mrf.mxu0
    %v6139 = vadd.f32 %v6050, %v6138
    %v6140 = vpop.f32.mrf.mxu0
    %v6141 = vadd.f32 %v6052, %v6140
    %6142 = vmatmul.bf16.gmra.mxu0 %v5061
    %v6143 = vpop.f32.mrf.mxu0
    %v6144 = vadd.f32 %v6055, %v6143
    %v6145 = vpop.f32.mrf.mxu0
    %v6146 = vadd.f32 %v6057, %v6145
    %6147 = vmatmul.bf16.gmra.mxu0 %v5065
    %v6148 = vpop.f32.mrf.mxu0
    %v6149 = vadd.f32 %v6060, %v6148
    %v6150 = vpop.f32.mrf.mxu0
    %v6151 = vadd.f32 %v6062, %v6150
    %6152 = vmatmul.bf16.gmra.mxu0 %v5069
    %v6153 = vpop.f32.mrf.mxu0
    %v6154 = vadd.f32 %v6065, %v6153
    %v6155 = vpop.f32.mrf.mxu0
    %v6156 = vadd.f32 %v6067, %v6155
    %6157 = vmatmul.bf16.gmra.mxu0 %v5073
    %v6158 = vpop.f32.mrf.mxu0
    %v6159 = vadd.f32 %v6070, %v6158
    %v6160 = vpop.f32.mrf.mxu0
    %v6161 = vadd.f32 %v6072, %v6160
    %6162 = vmatmul.bf16.gmra.mxu0 %v5077
    %v6163 = vpop.f32.mrf.mxu0
    %v6164 = vadd.f32 %v6075, %v6163
    %v6165 = vpop.f32.mrf.mxu0
    %v6166 = vadd.f32 %v6077, %v6165
    %6167 = vmatmul.bf16.gmra.mxu0 %v5081
    %v6168 = vpop.f32.mrf.mxu0
    %v6169 = vadd.f32 %v6080, %v6168
    %v6170 = vpop.f32.mrf.mxu0
    %v6171 = vadd.f32 %v6082, %v6170
    %6172 = vmatmul.bf16.gmra.mxu0 %v5085
    %v6173 = vpop.f32.mrf.mxu0
    %v6174 = vadd.f32 %v6085, %v6173
    %v6175 = vpop.f32.mrf.mxu0
    %v6176 = vadd.f32 %v6087, %v6175
    %6177 = vmatmul.bf16.gmra.mxu0 %v5089
    %v6178 = vpop.f32.mrf.mxu0
    %v6179 = vadd.f32 %v6090, %v6178
    %v6180 = vpop.f32.mrf.mxu0
    %v6181 = vadd.f32 %v6092, %v6180
    %6182 = vmatmul.bf16.gmra.mxu0 %v5093
    %v6183 = vpop.f32.mrf.mxu0
    %v6184 = vadd.f32 %v6095, %v6183
    %v6185 = vpop.f32.mrf.mxu0
    %v6186 = vadd.f32 %v6097, %v6185
    %6187 = vmatmul.bf16.gmra.mxu0 %v5097
    %v6188 = vpop.f32.mrf.mxu0
    %v6189 = vadd.f32 %v6100, %v6188
    %v6190 = vpop.f32.mrf.mxu0
    %v6191 = vadd.f32 %v6102, %v6190
    %6192 = vmatmul.bf16.gmra.mxu0 %v5101
    %v6193 = vpop.f32.mrf.mxu0
    %v6194 = vadd.f32 %v6105, %v6193
    %v6195 = vpop.f32.mrf.mxu0
    %v6196 = vadd.f32 %v6107, %v6195
    %6197 = vdwg.mxu0
    %6198 = vst [vmem:[#allocation8] sm:$0xff] %v5763
    %6199 = vst [vmem:[#allocation8 + $0x8] sm:$0xff] %v6119
    %6200 = vst [vmem:[#allocation8 + $0x10] sm:$0xff] %v5765
    %6201 = vst [vmem:[#allocation8 + $0x18] sm:$0xff] %v6121
    %6202 = vst [vmem:[#allocation8 + $0x20] sm:$0xff] %v5768
    %6203 = vst [vmem:[#allocation8 + $0x28] sm:$0xff] %v6124
    %6204 = vst [vmem:[#allocation8 + $0x30] sm:$0xff] %v5770
    %6205 = vst [vmem:[#allocation8 + $0x38] sm:$0xff] %v6126
    %6206 = vst [vmem:[#allocation8 + $0x40] sm:$0xff] %v5773
    %6207 = vst [vmem:[#allocation8 + $0x48] sm:$0xff] %v6129
    %6208 = vst [vmem:[#allocation8 + $0x50] sm:$0xff] %v5775
    %6209 = vst [vmem:[#allocation8 + $0x58] sm:$0xff] %v6131
    %6210 = vst [vmem:[#allocation8 + $0x60] sm:$0xff] %v5778
    %6211 = vst [vmem:[#allocation8 + $0x68] sm:$0xff] %v6134
    %6212 = vst [vmem:[#allocation8 + $0x70] sm:$0xff] %v5780
    %6213 = vst [vmem:[#allocation8 + $0x78] sm:$0xff] %v6136
    %6214 = vst [vmem:[#allocation8 + $0x80] sm:$0xff] %v5783
    %6215 = vst [vmem:[#allocation8 + $0x88] sm:$0xff] %v6139
    %6216 = vst [vmem:[#allocation8 + $0x90] sm:$0xff] %v5785
    %6217 = vst [vmem:[#allocation8 + $0x98] sm:$0xff] %v6141
    %6218 = vst [vmem:[#allocation8 + $0xa0] sm:$0xff] %v5788
    %6219 = vst [vmem:[#allocation8 + $0xa8] sm:$0xff] %v6144
    %6220 = vst [vmem:[#allocation8 + $0xb0] sm:$0xff] %v5790
    %6221 = vst [vmem:[#allocation8 + $0xb8] sm:$0xff] %v6146
    %6222 = vst [vmem:[#allocation8 + $0xc0] sm:$0xff] %v5793
    %6223 = vst [vmem:[#allocation8 + $0xc8] sm:$0xff] %v6149
    %6224 = vst [vmem:[#allocation8 + $0xd0] sm:$0xff] %v5795
    %6225 = vst [vmem:[#allocation8 + $0xd8] sm:$0xff] %v6151
    %6226 = vst [vmem:[#allocation8 + $0xe0] sm:$0xff] %v5798
    %6227 = vst [vmem:[#allocation8 + $0xe8] sm:$0xff] %v6154
    %6228 = vst [vmem:[#allocation8 + $0xf0] sm:$0xff] %v5800
    %6229 = vst [vmem:[#allocation8 + $0xf8] sm:$0xff] %v6156
    %6230 = vst [vmem:[#allocation8 + $0x100] sm:$0xff] %v5803
    %6231 = vst [vmem:[#allocation8 + $0x108] sm:$0xff] %v6159
    %6232 = vst [vmem:[#allocation8 + $0x110] sm:$0xff] %v5805
    %6233 = vst [vmem:[#allocation8 + $0x118] sm:$0xff] %v6161
    %6234 = vst [vmem:[#allocation8 + $0x120] sm:$0xff] %v5808
    %6235 = vst [vmem:[#allocation8 + $0x128] sm:$0xff] %v6164
    %6236 = vst [vmem:[#allocation8 + $0x130] sm:$0xff] %v5810
    %6237 = vst [vmem:[#allocation8 + $0x138] sm:$0xff] %v6166
    %6238 = vst [vmem:[#allocation8 + $0x140] sm:$0xff] %v5813
    %6239 = vst [vmem:[#allocation8 + $0x148] sm:$0xff] %v6169
    %6240 = vst [vmem:[#allocation8 + $0x150] sm:$0xff] %v5815
    %6241 = vst [vmem:[#allocation8 + $0x158] sm:$0xff] %v6171
    %6242 = vst [vmem:[#allocation8 + $0x160] sm:$0xff] %v5818
    %6243 = vst [vmem:[#allocation8 + $0x168] sm:$0xff] %v6174
    %6244 = vst [vmem:[#allocation8 + $0x170] sm:$0xff] %v5820
    %6245 = vst [vmem:[#allocation8 + $0x178] sm:$0xff] %v6176
    %6246 = vst [vmem:[#allocation8 + $0x180] sm:$0xff] %v5823
    %6247 = vst [vmem:[#allocation8 + $0x188] sm:$0xff] %v6179
    %6248 = vst [vmem:[#allocation8 + $0x190] sm:$0xff] %v5825
    %6249 = vst [vmem:[#allocation8 + $0x198] sm:$0xff] %v6181
    %6250 = vst [vmem:[#allocation8 + $0x1a0] sm:$0xff] %v5828
    %6251 = vst [vmem:[#allocation8 + $0x1a8] sm:$0xff] %v6184
    %6252 = vst [vmem:[#allocation8 + $0x1b0] sm:$0xff] %v5830
    %6253 = vst [vmem:[#allocation8 + $0x1b8] sm:$0xff] %v6186
    %6254 = vst [vmem:[#allocation8 + $0x1c0] sm:$0xff] %v5833
    %6255 = vst [vmem:[#allocation8 + $0x1c8] sm:$0xff] %v6189
    %6256 = vst [vmem:[#allocation8 + $0x1d0] sm:$0xff] %v5835
    %6257 = vst [vmem:[#allocation8 + $0x1d8] sm:$0xff] %v6191
    %6258 = vst [vmem:[#allocation8 + $0x1e0] sm:$0xff] %v5838
    %6259 = vst [vmem:[#allocation8 + $0x1e8] sm:$0xff] %v6194
    %6260 = vst [vmem:[#allocation8 + $0x1f0] sm:$0xff] %v5840
    %6261 = vst [vmem:[#allocation8 + $0x1f8] sm:$0xff] %v6196
    // Predicated region
    $region26: #{tpu_custom_call.1} parent=1 // pred_check
      _
    $region27: #{tpu_custom_call.1} parent=1 // pred_check_branch
      %6263 = sbr.rel (0) target = $region29
    $region28: #{tpu_custom_call.1} parent=1 // pred_region
      %6265 = vsyncadd [#allocation4], 0
      %s6266 = sshll.u32 [#allocation8], 4
      %s6267 = int_to_ptr.vmem [resolvable:$true] %s6266
      %s6268 = sshll.u32 %s3, 4
      %s6269 = int_to_ptr.hbm [resolvable:$true] %s6268
      %6274 = dma.vmem_to_hbm [thread:$0]  %s6267, 8192, %s6269, [#allocation4], 256, 256, 16
    $region29: #{tpu_custom_call.1} parent=1 // pred_fallthru
      _
    // Predicated region
    $region30: #{tpu_custom_call.1} parent=1 // pred_check
      _
    $region31: #{tpu_custom_call.1} parent=1 // pred_check_branch
      %6276 = sbr.rel (0) target = $region33
    $region32: #{tpu_custom_call.1} parent=1 // pred_region
      %6278 = dma.done [#allocation4], 8192
    $region33: #{tpu_custom_call.1} parent=1 // pred_fallthru
      _
    %6279 = vsyncpa [#allocation3], 1
    %6280 = vsyncpa [#allocation6], 1
    %6281 = vsyncpa [#allocation4], 1

</llo_original>
